<compile_context>
chip_gen: v7x
topology: tpu7x:2x2x1
jax: 0.10.0
libtpu: 0.0.40
codegen_flags: <defaults>
</compile_context>

<pallas_src>
import jax
import jax.numpy as jnp
import numpy as np
from jax.experimental import pallas as pl
from jax.experimental.pallas import tpu as pltpu

# ----- scaled-down analog of resnet152 layer4 (structure preserved) -----
IN_PLANES = 16        # analog of 1024
PLANES = 8            # analog of 512
EXPANSION = 4
OUT_PLANES = PLANES * EXPANSION   # analog of 2048
NUM_BLOCKS = 3        # layer4 of resnet152 has 3 Bottleneck blocks
CLASS_SIZE = 10
SPATIAL = 8           # input H=W (layer4 halves it: 8 -> 4)
HO = SPATIAL // 2     # spatial after the stride-2 block

CPAD = 128            # lane width for every weight's output-channel axis
KPAD1 = 32            # conv1 contraction rows (= max(IN_PLANES, OUT_PLANES))
KPAD2 = 128           # stacked 3x3 tap contraction rows (72 real, zero-padded)

SAMPLES_PER_TILE = 2
ROWS_IN = SAMPLES_PER_TILE * SPATIAL * SPATIAL    # 128 rows per tile before stride-2
ROWS_OUT = SAMPLES_PER_TILE * HO * HO             # 32 live rows per tile after stride-2
TAPS = [(ky, kx) for ky in range(3) for kx in range(3)]
DELTAS = [(ky - 1) * HO + (kx - 1) for (ky, kx) in TAPS]   # stride-1 sublane shifts

assert SAMPLES_PER_TILE <= 8 and ROWS_OUT % 8 == 0 and ROWS_IN % 8 == 0


# ---------------------------------------------------------------------------
# Fused Pallas kernel: 3 bottlenecks + global-avg-pool + fc for ONE sample-pair tile
# ---------------------------------------------------------------------------
def _fused_forward_kernel(x_ref, w1_ref, b1_ref, w2_ref, b2_ref, w3_ref, b3_ref,
                          tsel0_ref, sd_ref, wd_ref, bd_ref, mask_ref,
                          pool_ref, wfc_ref, bfc_ref, out_ref):
    f32 = jnp.float32
    bf16 = jnp.bfloat16
    x0 = x_ref[0]                                       # (ROWS_IN, KPAD1) f32
    x0_b = x0.astype(bf16)

    # ---------------- block 0 (stride 2, projection shortcut) ----------------
    # conv1 1x1 + folded BN + ReLU at full 8x8 resolution
    y = jnp.dot(x0_b, w1_ref[0], preferred_element_type=f32) + b1_ref[0]
    y = jnp.maximum(y, 0.0)                              # (ROWS_IN, CPAD), 8 real ch
    y_b = y.astype(bf16)
    # conv2 3x3 stride-2 pad-1: 9 block-diagonal row-gather dots, taps packed into
    # lanes via lane-roll, then ONE stacked-tap MXU dot.
    gathered = None
    for k in range(9):
        part = jnp.dot(tsel0_ref[k], y_b, preferred_element_type=f32)   # (ROWS_OUT, CPAD)
        if k:
            part = pltpu.roll(part, 8 * k, axis=1)       # channels -> lanes [8k, 8k+8)
        gathered = part if gathered is None else gathered + part
    y = jnp.dot(gathered.astype(bf16), w2_ref[0], preferred_element_type=f32) + b2_ref[0]
    y = jnp.maximum(y, 0.0)                              # (ROWS_OUT, CPAD), 8 real ch
    # conv3 1x1 + folded BN
    y = jnp.dot(y[:, :PLANES].astype(bf16), w3_ref[0],
                preferred_element_type=f32) + b3_ref[0]
    # projection shortcut: stride-2 spatial subsample + 1x1 conv + folded BN
    res = jnp.dot(sd_ref[...], x0_b, preferred_element_type=f32)        # (ROWS_OUT, KPAD1)
    res = jnp.dot(res[:, :IN_PLANES].astype(bf16), wd_ref[...],
                  preferred_element_type=f32) + bd_ref[...]
    x = jnp.maximum(y + res, 0.0)                        # (ROWS_OUT, CPAD), 32 real ch

    # ---------------- blocks 1..2 (stride 1, identity shortcut) --------------
    for i in range(1, NUM_BLOCKS):
        y = jnp.dot(x[:, :OUT_PLANES].astype(bf16), w1_ref[i],
                    preferred_element_type=f32) + b1_ref[i]
        y = jnp.maximum(y, 0.0)                          # (ROWS_OUT, CPAD), 8 real ch
        # conv2 3x3 stride-1 pad-1: sublane roll + boundary mask per tap (XLU/VPU),
        # lane-roll packs the 9 taps, ONE stacked-tap MXU dot.
        gathered = None
        for k in range(9):
            d = DELTAS[k]
            part = pltpu.roll(y, (-d) % ROWS_OUT, axis=0) if d != 0 else y
            part = part * mask_ref[k]                    # f32 pad-1 boundary mask
            if k:
                part = pltpu.roll(part, 8 * k, axis=1)
            gathered = part if gathered is None else gathered + part
        y = jnp.dot(gathered.astype(bf16), w2_ref[i],
                    preferred_element_type=f32) + b2_ref[i]
        y = jnp.maximum(y, 0.0)
        y = jnp.dot(y[:, :PLANES].astype(bf16), w3_ref[i],
                    preferred_element_type=f32) + b3_ref[i]
        x = jnp.maximum(y + x, 0.0)                      # identity residual (VMEM/vregs)

    # ---------------- AdaptiveAvgPool2d((1,1)) + Linear epilogue -------------
    pooled = jnp.dot(pool_ref[...], x[:, :OUT_PLANES].astype(bf16),
                     preferred_element_type=f32)                         # (8, OUT_PLANES)
    out_ref[0] = jnp.dot(pooled.astype(bf16), wfc_ref[...],
                         preferred_element_type=f32) + bfc_ref[...]      # (8, CPAD)


# ---------------------------------------------------------------------------
# Host-side one-time packing: fold BN scales, trim weight contraction rows,
# lane-pad output channels to 128, build tiny selector / mask / pool constants.
# ---------------------------------------------------------------------------
def _pad_cols(w, cpad=CPAD):
    w = np.asarray(w, np.float32)
    return np.pad(w, ((0, 0), (0, cpad - w.shape[1])))


def _build_tap_select_s2():
    """(9, ROWS_OUT, ROWS_IN): block-diagonal row-gather selectors for the
    3x3 / stride-2 / pad-1 conv of block 0 (SAMPLES_PER_TILE samples per tile)."""
    t = np.zeros((9, ROWS_OUT, ROWS_IN), np.float32)
    for k, (ky, kx) in enumerate(TAPS):
        for s in range(SAMPLES_PER_TILE):
            for oy in range(HO):
                for ox in range(HO):
                    iy, ix = 2 * oy + ky - 1, 2 * ox + kx - 1
                    if 0 <= iy < SPATIAL and 0 <= ix < SPATIAL:
                        t[k, s * HO * HO + oy * HO + ox,
                          s * SPATIAL * SPATIAL + iy * SPATIAL + ix] = 1.0
    return t


def _build_ds_select():
    """(ROWS_OUT, ROWS_IN): stride-2 spatial subsample for the projection shortcut."""
    sdm = np.zeros((ROWS_OUT, ROWS_IN), np.float32)
    for s in range(SAMPLES_PER_TILE):
        for oy in range(HO):
            for ox in range(HO):
                sdm[s * HO * HO + oy * HO + ox,
                    s * SPATIAL * SPATIAL + (2 * oy) * SPATIAL + 2 * ox] = 1.0
    return sdm


def _build_tap_masks_s1():
    """(9, ROWS_OUT, 1): pad-1 boundary masks for the roll-based stride-1 3x3 convs."""
    m = np.zeros((9, ROWS_OUT, 1), np.float32)
    for k, (ky, kx) in enumerate(TAPS):
        for s in range(SAMPLES_PER_TILE):
            for oy in range(HO):
                for ox in range(HO):
                    if 0 <= oy + ky - 1 < HO and 0 <= ox + kx - 1 < HO:
                        m[k, s * HO * HO + oy * HO + ox, 0] = 1.0
    return m


def _build_pool_matrix():
    """(8, ROWS_OUT): row s averages sample s's HO*HO spatial positions."""
    p = np.zeros((8, ROWS_OUT), np.float32)
    for s in range(SAMPLES_PER_TILE):
        p[s, s * HO * HO:(s + 1) * HO * HO] = 1.0 / float(HO * HO)
    return p


def pack_params(params):
    """Call ONCE; the result is reused by every forward call."""
    blocks = params['blocks']
    w1s, b1s, w2s, b2s, w3s, b3s = [], [], [], [], [], []
    for bp in blocks:
        w1 = np.asarray(bp['w1'], np.float32) * np.asarray(bp['s1'], np.float32)[None, :]
        w1 = np.pad(w1, ((0, KPAD1 - w1.shape[0]), (0, 0)))          # K -> 32
        w1s.append(_pad_cols(w1))
        b1s.append(_pad_cols(np.asarray(bp['b1'], np.float32)[None, :]))
        w2 = (np.asarray(bp['w2'], np.float32)
              * np.asarray(bp['s2'], np.float32)[None, None, None, :])
        w2 = np.concatenate([w2[ky, kx] for (ky, kx) in TAPS], axis=0)  # (72, PLANES)
        w2 = np.pad(w2, ((0, KPAD2 - w2.shape[0]), (0, 0)))             # (128, PLANES)
        w2s.append(_pad_cols(w2))
        b2s.append(_pad_cols(np.asarray(bp['b2'], np.float32)[None, :]))
        w3 = np.asarray(bp['w3'], np.float32) * np.asarray(bp['s3'], np.float32)[None, :]
        w3s.append(_pad_cols(w3))
        b3s.append(_pad_cols(np.asarray(bp['b3'], np.float32)[None, :]))
    wd = _pad_cols(np.asarray(blocks[0]['wd'], np.float32)
                   * np.asarray(blocks[0]['sd'], np.float32)[None, :])
    bd = _pad_cols(np.asarray(blocks[0]['bd'], np.float32)[None, :])
    wfc = _pad_cols(np.asarray(params['fc_w'], np.float32))
    bfc = _pad_cols(np.asarray(params['fc_b'], np.float32)[None, :])

    bf = jnp.bfloat16
    return dict(
        w1=jnp.asarray(np.stack(w1s), bf), b1=jnp.asarray(np.stack(b1s), jnp.float32),
        w2=jnp.asarray(np.stack(w2s), bf), b2=jnp.asarray(np.stack(b2s), jnp.float32),
        w3=jnp.asarray(np.stack(w3s), bf), b3=jnp.asarray(np.stack(b3s), jnp.float32),
        tsel0=jnp.asarray(_build_tap_select_s2(), bf),
        sd=jnp.asarray(_build_ds_select(), bf),
        wd=jnp.asarray(wd, bf), bd=jnp.asarray(bd, jnp.float32),
        mask=jnp.asarray(_build_tap_masks_s1(), jnp.float32),
        pool=jnp.asarray(_build_pool_matrix(), bf),
        wfc=jnp.asarray(wfc, bf), bfc=jnp.asarray(bfc, jnp.float32),
    )


# ---------------------------------------------------------------------------
# Public forward: one pallas_call for the whole module (packed params reused)
# ---------------------------------------------------------------------------
def conv_classify_forward(x_nchw, packed):
    n = x_nchw.shape[0]
    assert n % SAMPLES_PER_TILE == 0
    num_tiles = n // SAMPLES_PER_TILE
    # NCHW -> NHWC -> (N, H*W, Cin) -> pad channels 16->32 -> stack sample pairs into M
    x = jnp.transpose(x_nchw, (0, 2, 3, 1)).astype(jnp.float32)
    x = x.reshape(n, SPATIAL * SPATIAL, IN_PLANES)
    x = jnp.pad(x, ((0, 0), (0, 0), (0, KPAD1 - IN_PLANES)))
    x = x.reshape(num_tiles, ROWS_IN, KPAD1)

    nb = NUM_BLOCKS
    const3 = lambda i: (0, 0, 0)
    const2 = lambda i: (0, 0)
    out = pl.pallas_call(
        _fused_forward_kernel,
        out_shape=jax.ShapeDtypeStruct((num_tiles, 8, CPAD), jnp.float32),
        grid=(num_tiles,),
        in_specs=[
            pl.BlockSpec((1, ROWS_IN, KPAD1), lambda i: (i, 0, 0)),   # x (sample pair)
            pl.BlockSpec((nb, KPAD1, CPAD), const3),                  # w1 (BN folded)
            pl.BlockSpec((nb, 1, CPAD), const3),                      # b1
            pl.BlockSpec((nb, KPAD2, CPAD), const3),                  # w2 stacked taps
            pl.BlockSpec((nb, 1, CPAD), const3),                      # b2
            pl.BlockSpec((nb, PLANES, CPAD), const3),                 # w3
            pl.BlockSpec((nb, 1, CPAD), const3),                      # b3
            pl.BlockSpec((9, ROWS_OUT, ROWS_IN), const3),             # block-0 tap selectors
            pl.BlockSpec((ROWS_OUT, ROWS_IN), const2),                # downsample selector
            pl.BlockSpec((IN_PLANES, CPAD), const2),                  # downsample w
            pl.BlockSpec((1, CPAD), const2),                          # downsample b
            pl.BlockSpec((9, ROWS_OUT, 1), const3),                   # stride-1 tap masks
            pl.BlockSpec((8, ROWS_OUT), const2),                      # avg-pool matrix
            pl.BlockSpec((OUT_PLANES, CPAD), const2),                 # fc w
            pl.BlockSpec((1, CPAD), const2),                          # fc b
        ],
        out_specs=pl.BlockSpec((1, 8, CPAD), lambda i: (i, 0, 0)),
        compiler_params=pltpu.CompilerParams(
            dimension_semantics=("parallel",),       # megacore-shardable for batch > 2
            vmem_limit_bytes=32 * 1024 * 1024),
    )(x, packed['w1'], packed['b1'], packed['w2'], packed['b2'],
      packed['w3'], packed['b3'], packed['tsel0'], packed['sd'],
      packed['wd'], packed['bd'], packed['mask'], packed['pool'],
      packed['wfc'], packed['bfc'])
    return out[:, :SAMPLES_PER_TILE, :CLASS_SIZE].reshape(n, CLASS_SIZE)


# ---------------------------------------------------------------------------
# Deterministic parameter init (folded inference-mode BN)
# ---------------------------------------------------------------------------
def init_params(key):
    def bn_fold(k, c):
        kg, kb, km, kv = jax.random.split(k, 4)
        gamma = jax.random.uniform(kg, (c,), minval=0.5, maxval=1.5)
        beta = jax.random.normal(kb, (c,)) * 0.1
        mean = jax.random.normal(km, (c,)) * 0.1
        var = jax.random.uniform(kv, (c,), minval=0.5, maxval=1.5)
        scale = gamma / jnp.sqrt(var + 1e-5)
        bias = beta - mean * scale
        return scale.astype(jnp.float32), bias.astype(jnp.float32)

    blocks = []
    cin = IN_PLANES
    for i in range(NUM_BLOCKS):
        key, k1, k2, k3, k4, k5, k6, k7, k8 = jax.random.split(key, 9)
        bp = {
            'w1': jax.random.normal(k1, (cin, PLANES), jnp.float32) * 0.1,
            'w2': jax.random.normal(k2, (3, 3, PLANES, PLANES), jnp.float32) * 0.1,
            'w3': jax.random.normal(k3, (PLANES, OUT_PLANES), jnp.float32) * 0.1,
        }
        bp['s1'], bp['b1'] = bn_fold(k4, PLANES)
        bp['s2'], bp['b2'] = bn_fold(k5, PLANES)
        bp['s3'], bp['b3'] = bn_fold(k6, OUT_PLANES)
        if i == 0:
            bp['wd'] = jax.random.normal(k7, (cin, OUT_PLANES), jnp.float32) * 0.1
            bp['sd'], bp['bd'] = bn_fold(k8, OUT_PLANES)
        blocks.append(bp)
        cin = OUT_PLANES
    key, kw, kb = jax.random.split(key, 3)
    fc_w = jax.random.normal(kw, (OUT_PLANES, CLASS_SIZE), jnp.float32) * 0.1
    fc_b = jax.random.normal(kb, (CLASS_SIZE,), jnp.float32) * 0.1
    return {'blocks': blocks, 'fc_w': fc_w, 'fc_b': fc_b}


# ---------------------------------------------------------------------------
# Pure-JAX f32 reference (lax.conv) for correctness check
# ---------------------------------------------------------------------------
def _conv(x, w, stride, padding):
    return jax.lax.conv_general_dilated(
        x, w, window_strides=(stride, stride), padding=padding,
        dimension_numbers=('NHWC', 'HWIO', 'NHWC'))


def ref_forward(x_nchw, params):
    x = jnp.transpose(x_nchw, (0, 2, 3, 1)).astype(jnp.float32)
    for i, bp in enumerate(params['blocks']):
        stride = 2 if i == 0 else 1
        y = _conv(x, bp['w1'][None, None], 1, 'VALID') * bp['s1'] + bp['b1']
        y = jnp.maximum(y, 0.0)
        y = _conv(y, bp['w2'], stride, ((1, 1), (1, 1))) * bp['s2'] + bp['b2']
        y = jnp.maximum(y, 0.0)
        y = _conv(y, bp['w3'][None, None], 1, 'VALID') * bp['s3'] + bp['b3']
        if 'wd' in bp:
            res = _conv(x, bp['wd'][None, None], stride, 'VALID') * bp['sd'] + bp['bd']
        else:
            res = x
        x = jnp.maximum(y + res, 0.0)
    pooled = jnp.mean(x, axis=(1, 2))
    return pooled @ params['fc_w'] + params['fc_b']


if __name__ == "__main__":
    key = jax.random.PRNGKey(0)
    kx, kp = jax.random.split(key)
    # x is NCHW like the PyTorch module's `features`
    x = jax.random.normal(kx, (2, IN_PLANES, SPATIAL, SPATIAL), jnp.float32)
    params = init_params(kp)

    packed = pack_params(params)                 # hoisted: pack once, reuse
    fwd = jax.jit(conv_classify_forward)

    out = fwd(x, packed)
    out = jax.block_until_ready(out)
    assert out.shape == (2, CLASS_SIZE), out.shape

    ref = ref_forward(x, params)
    # bf16 matmul operands -> slightly looser tolerance than the pure-f32 version.
    if not bool(jnp.allclose(out, ref, atol=3e-2, rtol=3e-2)):
        raise AssertionError(
            f"Pallas output mismatch vs reference: max err "
            f"{float(jnp.max(jnp.abs(out - ref)))}")

    print("KERNEL_OK")
</pallas_src>

<mosaic_0001>
module attributes {stable_mosaic.version = 11 : i64} {
  func.func @_fused_forward_kernel(%arg0: i32, %arg1: memref<1x128x32xf32, #tpu.memory_space<vmem>>, %arg2: memref<3x32x128xbf16, #tpu.memory_space<vmem>>, %arg3: memref<3x1x128xf32, #tpu.memory_space<vmem>>, %arg4: memref<3x128x128xbf16, #tpu.memory_space<vmem>>, %arg5: memref<3x1x128xf32, #tpu.memory_space<vmem>>, %arg6: memref<3x8x128xbf16, #tpu.memory_space<vmem>>, %arg7: memref<3x1x128xf32, #tpu.memory_space<vmem>>, %arg8: memref<9x32x128xbf16, #tpu.memory_space<vmem>>, %arg9: memref<32x128xbf16, #tpu.memory_space<vmem>>, %arg10: memref<16x128xbf16, #tpu.memory_space<vmem>>, %arg11: memref<1x128xf32, #tpu.memory_space<vmem>>, %arg12: memref<9x32x1xf32, #tpu.memory_space<vmem>>, %arg13: memref<8x32xbf16, #tpu.memory_space<vmem>>, %arg14: memref<32x128xbf16, #tpu.memory_space<vmem>>, %arg15: memref<1x128xf32, #tpu.memory_space<vmem>>, %arg16: memref<1x8x128xf32, #tpu.memory_space<vmem>>) attributes {dimension_semantics = [#tpu.dimension_semantics<parallel>], iteration_bounds = array<i64: 1>, scalar_prefetch = 0 : i64, scratch_operands = 0 : i64, tpu.core_type = #tpu.core_type<tc>, window_params = [{transform_indices = @transform_0, window_bounds = array<i64: 1, 128, 32>}, {pipeline_mode = #tpu.pipeline_mode<synchronous>, transform_indices = @transform_1, window_bounds = array<i64: 3, 32, 128>}, {pipeline_mode = #tpu.pipeline_mode<synchronous>, transform_indices = @transform_2, window_bounds = array<i64: 3, 1, 128>}, {pipeline_mode = #tpu.pipeline_mode<synchronous>, transform_indices = @transform_3, window_bounds = array<i64: 3, 128, 128>}, {pipeline_mode = #tpu.pipeline_mode<synchronous>, transform_indices = @transform_4, window_bounds = array<i64: 3, 1, 128>}, {pipeline_mode = #tpu.pipeline_mode<synchronous>, transform_indices = @transform_5, window_bounds = array<i64: 3, 8, 128>}, {pipeline_mode = #tpu.pipeline_mode<synchronous>, transform_indices = @transform_6, window_bounds = array<i64: 3, 1, 128>}, {pipeline_mode = #tpu.pipeline_mode<synchronous>, transform_indices = @transform_7, window_bounds = array<i64: 9, 32, 128>}, {pipeline_mode = #tpu.pipeline_mode<synchronous>, transform_indices = @transform_8, window_bounds = array<i64: 32, 128>}, {pipeline_mode = #tpu.pipeline_mode<synchronous>, transform_indices = @transform_9, window_bounds = array<i64: 16, 128>}, {pipeline_mode = #tpu.pipeline_mode<synchronous>, transform_indices = @transform_10, window_bounds = array<i64: 1, 128>}, {pipeline_mode = #tpu.pipeline_mode<synchronous>, transform_indices = @transform_11, window_bounds = array<i64: 9, 32, 1>}, {pipeline_mode = #tpu.pipeline_mode<synchronous>, transform_indices = @transform_12, window_bounds = array<i64: 8, 32>}, {pipeline_mode = #tpu.pipeline_mode<synchronous>, transform_indices = @transform_13, window_bounds = array<i64: 32, 128>}, {pipeline_mode = #tpu.pipeline_mode<synchronous>, transform_indices = @transform_14, window_bounds = array<i64: 1, 128>}, {transform_indices = @transform_15, window_bounds = array<i64: 1, 8, 128>}]} {
    %c0 = arith.constant 0 : index
    %c0_0 = arith.constant 0 : index
    %c0_1 = arith.constant 0 : index
    %0 = vector.load %arg1[%c0, %c0_0, %c0_1] : memref<1x128x32xf32, #tpu.memory_space<vmem>>, vector<1x128x32xf32>
    %1 = vector.shape_cast %0 : vector<1x128x32xf32> to vector<128x32xf32>
    %2 = arith.truncf %1 : vector<128x32xf32> to vector<128x32xbf16>
    %c0_2 = arith.constant 0 : index
    %c0_3 = arith.constant 0 : index
    %c0_4 = arith.constant 0 : index
    %3 = vector.load %arg2[%c0_2, %c0_3, %c0_4] : memref<3x32x128xbf16, #tpu.memory_space<vmem>>, vector<1x32x128xbf16>
    %4 = vector.shape_cast %3 : vector<1x32x128xbf16> to vector<32x128xbf16>
    %cst = arith.constant dense<0.000000e+00> : vector<128x128xf32>
    %5 = tpu.matmul %2, %4, %cst {dimension_numbers = #tpu.dot_dimension_numbers<[1], [0], [0], [1], [0, 0, 1, 1], [], []>} : vector<128x32xbf16>, vector<32x128xbf16>, vector<128x128xf32> -> vector<128x128xf32>
    %c0_5 = arith.constant 0 : index
    %c0_6 = arith.constant 0 : index
    %c0_7 = arith.constant 0 : index
    %6 = vector.load %arg3[%c0_5, %c0_6, %c0_7] : memref<3x1x128xf32, #tpu.memory_space<vmem>>, vector<1x1x128xf32>
    %7 = vector.shape_cast %6 : vector<1x1x128xf32> to vector<1x128xf32>
    %8 = vector.broadcast %7 : vector<1x128xf32> to vector<128x128xf32>
    %9 = arith.addf %5, %8 : vector<128x128xf32>
    %cst_8 = arith.constant 0.000000e+00 : f32
    %10 = vector.broadcast %cst_8 : f32 to vector<128x128xf32>
    %11 = arith.maximumf %9, %10 : vector<128x128xf32>
    %12 = arith.truncf %11 : vector<128x128xf32> to vector<128x128xbf16>
    %c0_9 = arith.constant 0 : index
    %c0_10 = arith.constant 0 : index
    %c0_11 = arith.constant 0 : index
    %13 = vector.load %arg8[%c0_9, %c0_10, %c0_11] : memref<9x32x128xbf16, #tpu.memory_space<vmem>>, vector<1x32x128xbf16>
    %14 = vector.shape_cast %13 : vector<1x32x128xbf16> to vector<32x128xbf16>
    %cst_12 = arith.constant dense<0.000000e+00> : vector<32x128xf32>
    %15 = tpu.matmul %14, %12, %cst_12 {dimension_numbers = #tpu.dot_dimension_numbers<[1], [0], [0], [1], [0, 0, 1, 1], [], []>} : vector<32x128xbf16>, vector<128x128xbf16>, vector<32x128xf32> -> vector<32x128xf32>
    %c1 = arith.constant 1 : index
    %c0_13 = arith.constant 0 : index
    %c0_14 = arith.constant 0 : index
    %16 = vector.load %arg8[%c1, %c0_13, %c0_14] : memref<9x32x128xbf16, #tpu.memory_space<vmem>>, vector<1x32x128xbf16>
    %17 = vector.shape_cast %16 : vector<1x32x128xbf16> to vector<32x128xbf16>
    %cst_15 = arith.constant dense<0.000000e+00> : vector<32x128xf32>
    %18 = tpu.matmul %17, %12, %cst_15 {dimension_numbers = #tpu.dot_dimension_numbers<[1], [0], [0], [1], [0, 0, 1, 1], [], []>} : vector<32x128xbf16>, vector<128x128xbf16>, vector<32x128xf32> -> vector<32x128xf32>
    %c8_i32 = arith.constant 8 : i32
    %19 = tpu.dynamic_rotate %18 by %c8_i32 dim 1 : vector<32x128xf32>, i32 -> vector<32x128xf32>
    %20 = arith.addf %15, %19 : vector<32x128xf32>
    %c2 = arith.constant 2 : index
    %c0_16 = arith.constant 0 : index
    %c0_17 = arith.constant 0 : index
    %21 = vector.load %arg8[%c2, %c0_16, %c0_17] : memref<9x32x128xbf16, #tpu.memory_space<vmem>>, vector<1x32x128xbf16>
    %22 = vector.shape_cast %21 : vector<1x32x128xbf16> to vector<32x128xbf16>
    %cst_18 = arith.constant dense<0.000000e+00> : vector<32x128xf32>
    %23 = tpu.matmul %22, %12, %cst_18 {dimension_numbers = #tpu.dot_dimension_numbers<[1], [0], [0], [1], [0, 0, 1, 1], [], []>} : vector<32x128xbf16>, vector<128x128xbf16>, vector<32x128xf32> -> vector<32x128xf32>
    %c16_i32 = arith.constant 16 : i32
    %24 = tpu.dynamic_rotate %23 by %c16_i32 dim 1 : vector<32x128xf32>, i32 -> vector<32x128xf32>
    %25 = arith.addf %20, %24 : vector<32x128xf32>
    %c3 = arith.constant 3 : index
    %c0_19 = arith.constant 0 : index
    %c0_20 = arith.constant 0 : index
    %26 = vector.load %arg8[%c3, %c0_19, %c0_20] : memref<9x32x128xbf16, #tpu.memory_space<vmem>>, vector<1x32x128xbf16>
    %27 = vector.shape_cast %26 : vector<1x32x128xbf16> to vector<32x128xbf16>
    %cst_21 = arith.constant dense<0.000000e+00> : vector<32x128xf32>
    %28 = tpu.matmul %27, %12, %cst_21 {dimension_numbers = #tpu.dot_dimension_numbers<[1], [0], [0], [1], [0, 0, 1, 1], [], []>} : vector<32x128xbf16>, vector<128x128xbf16>, vector<32x128xf32> -> vector<32x128xf32>
    %c24_i32 = arith.constant 24 : i32
    %29 = tpu.dynamic_rotate %28 by %c24_i32 dim 1 : vector<32x128xf32>, i32 -> vector<32x128xf32>
    %30 = arith.addf %25, %29 : vector<32x128xf32>
    %c4 = arith.constant 4 : index
    %c0_22 = arith.constant 0 : index
    %c0_23 = arith.constant 0 : index
    %31 = vector.load %arg8[%c4, %c0_22, %c0_23] : memref<9x32x128xbf16, #tpu.memory_space<vmem>>, vector<1x32x128xbf16>
    %32 = vector.shape_cast %31 : vector<1x32x128xbf16> to vector<32x128xbf16>
    %cst_24 = arith.constant dense<0.000000e+00> : vector<32x128xf32>
    %33 = tpu.matmul %32, %12, %cst_24 {dimension_numbers = #tpu.dot_dimension_numbers<[1], [0], [0], [1], [0, 0, 1, 1], [], []>} : vector<32x128xbf16>, vector<128x128xbf16>, vector<32x128xf32> -> vector<32x128xf32>
    %c32_i32 = arith.constant 32 : i32
    %34 = tpu.dynamic_rotate %33 by %c32_i32 dim 1 : vector<32x128xf32>, i32 -> vector<32x128xf32>
    %35 = arith.addf %30, %34 : vector<32x128xf32>
    %c5 = arith.constant 5 : index
    %c0_25 = arith.constant 0 : index
    %c0_26 = arith.constant 0 : index
    %36 = vector.load %arg8[%c5, %c0_25, %c0_26] : memref<9x32x128xbf16, #tpu.memory_space<vmem>>, vector<1x32x128xbf16>
    %37 = vector.shape_cast %36 : vector<1x32x128xbf16> to vector<32x128xbf16>
    %cst_27 = arith.constant dense<0.000000e+00> : vector<32x128xf32>
    %38 = tpu.matmul %37, %12, %cst_27 {dimension_numbers = #tpu.dot_dimension_numbers<[1], [0], [0], [1], [0, 0, 1, 1], [], []>} : vector<32x128xbf16>, vector<128x128xbf16>, vector<32x128xf32> -> vector<32x128xf32>
    %c40_i32 = arith.constant 40 : i32
    %39 = tpu.dynamic_rotate %38 by %c40_i32 dim 1 : vector<32x128xf32>, i32 -> vector<32x128xf32>
    %40 = arith.addf %35, %39 : vector<32x128xf32>
    %c6 = arith.constant 6 : index
    %c0_28 = arith.constant 0 : index
    %c0_29 = arith.constant 0 : index
    %41 = vector.load %arg8[%c6, %c0_28, %c0_29] : memref<9x32x128xbf16, #tpu.memory_space<vmem>>, vector<1x32x128xbf16>
    %42 = vector.shape_cast %41 : vector<1x32x128xbf16> to vector<32x128xbf16>
    %cst_30 = arith.constant dense<0.000000e+00> : vector<32x128xf32>
    %43 = tpu.matmul %42, %12, %cst_30 {dimension_numbers = #tpu.dot_dimension_numbers<[1], [0], [0], [1], [0, 0, 1, 1], [], []>} : vector<32x128xbf16>, vector<128x128xbf16>, vector<32x128xf32> -> vector<32x128xf32>
    %c48_i32 = arith.constant 48 : i32
    %44 = tpu.dynamic_rotate %43 by %c48_i32 dim 1 : vector<32x128xf32>, i32 -> vector<32x128xf32>
    %45 = arith.addf %40, %44 : vector<32x128xf32>
    %c7 = arith.constant 7 : index
    %c0_31 = arith.constant 0 : index
    %c0_32 = arith.constant 0 : index
    %46 = vector.load %arg8[%c7, %c0_31, %c0_32] : memref<9x32x128xbf16, #tpu.memory_space<vmem>>, vector<1x32x128xbf16>
    %47 = vector.shape_cast %46 : vector<1x32x128xbf16> to vector<32x128xbf16>
    %cst_33 = arith.constant dense<0.000000e+00> : vector<32x128xf32>
    %48 = tpu.matmul %47, %12, %cst_33 {dimension_numbers = #tpu.dot_dimension_numbers<[1], [0], [0], [1], [0, 0, 1, 1], [], []>} : vector<32x128xbf16>, vector<128x128xbf16>, vector<32x128xf32> -> vector<32x128xf32>
    %c56_i32 = arith.constant 56 : i32
    %49 = tpu.dynamic_rotate %48 by %c56_i32 dim 1 : vector<32x128xf32>, i32 -> vector<32x128xf32>
    %50 = arith.addf %45, %49 : vector<32x128xf32>
    %c8 = arith.constant 8 : index
    %c0_34 = arith.constant 0 : index
    %c0_35 = arith.constant 0 : index
    %51 = vector.load %arg8[%c8, %c0_34, %c0_35] : memref<9x32x128xbf16, #tpu.memory_space<vmem>>, vector<1x32x128xbf16>
    %52 = vector.shape_cast %51 : vector<1x32x128xbf16> to vector<32x128xbf16>
    %cst_36 = arith.constant dense<0.000000e+00> : vector<32x128xf32>
    %53 = tpu.matmul %52, %12, %cst_36 {dimension_numbers = #tpu.dot_dimension_numbers<[1], [0], [0], [1], [0, 0, 1, 1], [], []>} : vector<32x128xbf16>, vector<128x128xbf16>, vector<32x128xf32> -> vector<32x128xf32>
    %c64_i32 = arith.constant 64 : i32
    %54 = tpu.dynamic_rotate %53 by %c64_i32 dim 1 : vector<32x128xf32>, i32 -> vector<32x128xf32>
    %55 = arith.addf %50, %54 : vector<32x128xf32>
    %56 = arith.truncf %55 : vector<32x128xf32> to vector<32x128xbf16>
    %c0_37 = arith.constant 0 : index
    %c0_38 = arith.constant 0 : index
    %c0_39 = arith.constant 0 : index
    %57 = vector.load %arg4[%c0_37, %c0_38, %c0_39] : memref<3x128x128xbf16, #tpu.memory_space<vmem>>, vector<1x128x128xbf16>
    %58 = vector.shape_cast %57 : vector<1x128x128xbf16> to vector<128x128xbf16>
    %cst_40 = arith.constant dense<0.000000e+00> : vector<32x128xf32>
    %59 = tpu.matmul %56, %58, %cst_40 {dimension_numbers = #tpu.dot_dimension_numbers<[1], [0], [0], [1], [0, 0, 1, 1], [], []>} : vector<32x128xbf16>, vector<128x128xbf16>, vector<32x128xf32> -> vector<32x128xf32>
    %c0_41 = arith.constant 0 : index
    %c0_42 = arith.constant 0 : index
    %c0_43 = arith.constant 0 : index
    %60 = vector.load %arg5[%c0_41, %c0_42, %c0_43] : memref<3x1x128xf32, #tpu.memory_space<vmem>>, vector<1x1x128xf32>
    %61 = vector.shape_cast %60 : vector<1x1x128xf32> to vector<1x128xf32>
    %62 = vector.broadcast %61 : vector<1x128xf32> to vector<32x128xf32>
    %63 = arith.addf %59, %62 : vector<32x128xf32>
    %cst_44 = arith.constant 0.000000e+00 : f32
    %64 = vector.broadcast %cst_44 : f32 to vector<32x128xf32>
    %65 = arith.maximumf %63, %64 : vector<32x128xf32>
    %66 = vector.extract_strided_slice %65 {offsets = [0, 0], sizes = [32, 8], strides = [1, 1]} : vector<32x128xf32> to vector<32x8xf32>
    %67 = arith.truncf %66 : vector<32x8xf32> to vector<32x8xbf16>
    %c0_45 = arith.constant 0 : index
    %c0_46 = arith.constant 0 : index
    %c0_47 = arith.constant 0 : index
    %68 = vector.load %arg6[%c0_45, %c0_46, %c0_47] : memref<3x8x128xbf16, #tpu.memory_space<vmem>>, vector<1x8x128xbf16>
    %69 = vector.shape_cast %68 : vector<1x8x128xbf16> to vector<8x128xbf16>
    %cst_48 = arith.constant dense<0.000000e+00> : vector<32x128xf32>
    %70 = tpu.matmul %67, %69, %cst_48 {dimension_numbers = #tpu.dot_dimension_numbers<[1], [0], [0], [1], [0, 0, 1, 1], [], []>} : vector<32x8xbf16>, vector<8x128xbf16>, vector<32x128xf32> -> vector<32x128xf32>
    %c0_49 = arith.constant 0 : index
    %c0_50 = arith.constant 0 : index
    %c0_51 = arith.constant 0 : index
    %71 = vector.load %arg7[%c0_49, %c0_50, %c0_51] : memref<3x1x128xf32, #tpu.memory_space<vmem>>, vector<1x1x128xf32>
    %72 = vector.shape_cast %71 : vector<1x1x128xf32> to vector<1x128xf32>
    %73 = vector.broadcast %72 : vector<1x128xf32> to vector<32x128xf32>
    %74 = arith.addf %70, %73 : vector<32x128xf32>
    %c0_52 = arith.constant 0 : index
    %c0_53 = arith.constant 0 : index
    %75 = vector.load %arg9[%c0_52, %c0_53] : memref<32x128xbf16, #tpu.memory_space<vmem>>, vector<32x128xbf16>
    %cst_54 = arith.constant dense<0.000000e+00> : vector<32x32xf32>
    %76 = tpu.matmul %75, %2, %cst_54 {dimension_numbers = #tpu.dot_dimension_numbers<[1], [0], [0], [1], [0, 0, 1, 1], [], []>} : vector<32x128xbf16>, vector<128x32xbf16>, vector<32x32xf32> -> vector<32x32xf32>
    %77 = vector.extract_strided_slice %76 {offsets = [0, 0], sizes = [32, 16], strides = [1, 1]} : vector<32x32xf32> to vector<32x16xf32>
    %78 = arith.truncf %77 : vector<32x16xf32> to vector<32x16xbf16>
    %c0_55 = arith.constant 0 : index
    %c0_56 = arith.constant 0 : index
    %79 = vector.load %arg10[%c0_55, %c0_56] : memref<16x128xbf16, #tpu.memory_space<vmem>>, vector<16x128xbf16>
    %cst_57 = arith.constant dense<0.000000e+00> : vector<32x128xf32>
    %80 = tpu.matmul %78, %79, %cst_57 {dimension_numbers = #tpu.dot_dimension_numbers<[1], [0], [0], [1], [0, 0, 1, 1], [], []>} : vector<32x16xbf16>, vector<16x128xbf16>, vector<32x128xf32> -> vector<32x128xf32>
    %c0_58 = arith.constant 0 : index
    %c0_59 = arith.constant 0 : index
    %81 = vector.load %arg11[%c0_58, %c0_59] : memref<1x128xf32, #tpu.memory_space<vmem>>, vector<1x128xf32>
    %82 = vector.broadcast %81 : vector<1x128xf32> to vector<32x128xf32>
    %83 = arith.addf %80, %82 : vector<32x128xf32>
    %84 = arith.addf %74, %83 : vector<32x128xf32>
    %cst_60 = arith.constant 0.000000e+00 : f32
    %85 = vector.broadcast %cst_60 : f32 to vector<32x128xf32>
    %86 = arith.maximumf %84, %85 : vector<32x128xf32>
    %87 = vector.extract_strided_slice %86 {offsets = [0, 0], sizes = [32, 32], strides = [1, 1]} : vector<32x128xf32> to vector<32x32xf32>
    %88 = arith.truncf %87 : vector<32x32xf32> to vector<32x32xbf16>
    %c1_61 = arith.constant 1 : index
    %c0_62 = arith.constant 0 : index
    %c0_63 = arith.constant 0 : index
    %89 = vector.load %arg2[%c1_61, %c0_62, %c0_63] : memref<3x32x128xbf16, #tpu.memory_space<vmem>>, vector<1x32x128xbf16>
    %90 = vector.shape_cast %89 : vector<1x32x128xbf16> to vector<32x128xbf16>
    %cst_64 = arith.constant dense<0.000000e+00> : vector<32x128xf32>
    %91 = tpu.matmul %88, %90, %cst_64 {dimension_numbers = #tpu.dot_dimension_numbers<[1], [0], [0], [1], [0, 0, 1, 1], [], []>} : vector<32x32xbf16>, vector<32x128xbf16>, vector<32x128xf32> -> vector<32x128xf32>
    %c1_65 = arith.constant 1 : index
    %c0_66 = arith.constant 0 : index
    %c0_67 = arith.constant 0 : index
    %92 = vector.load %arg3[%c1_65, %c0_66, %c0_67] : memref<3x1x128xf32, #tpu.memory_space<vmem>>, vector<1x1x128xf32>
    %93 = vector.shape_cast %92 : vector<1x1x128xf32> to vector<1x128xf32>
    %94 = vector.broadcast %93 : vector<1x128xf32> to vector<32x128xf32>
    %95 = arith.addf %91, %94 : vector<32x128xf32>
    %cst_68 = arith.constant 0.000000e+00 : f32
    %96 = vector.broadcast %cst_68 : f32 to vector<32x128xf32>
    %97 = arith.maximumf %95, %96 : vector<32x128xf32>
    %c5_i32 = arith.constant 5 : i32
    %98 = tpu.dynamic_rotate %97 by %c5_i32 dim 0 : vector<32x128xf32>, i32 -> vector<32x128xf32>
    %c0_69 = arith.constant 0 : index
    %c0_70 = arith.constant 0 : index
    %c0_71 = arith.constant 0 : index
    %99 = vector.load %arg12[%c0_69, %c0_70, %c0_71] : memref<9x32x1xf32, #tpu.memory_space<vmem>>, vector<1x32x1xf32>
    %100 = vector.shape_cast %99 : vector<1x32x1xf32> to vector<32x1xf32>
    %101 = vector.broadcast %100 : vector<32x1xf32> to vector<32x128xf32>
    %102 = arith.mulf %98, %101 : vector<32x128xf32>
    %c4_i32 = arith.constant 4 : i32
    %103 = tpu.dynamic_rotate %97 by %c4_i32 dim 0 : vector<32x128xf32>, i32 -> vector<32x128xf32>
    %c1_72 = arith.constant 1 : index
    %c0_73 = arith.constant 0 : index
    %c0_74 = arith.constant 0 : index
    %104 = vector.load %arg12[%c1_72, %c0_73, %c0_74] : memref<9x32x1xf32, #tpu.memory_space<vmem>>, vector<1x32x1xf32>
    %105 = vector.shape_cast %104 : vector<1x32x1xf32> to vector<32x1xf32>
    %106 = vector.broadcast %105 : vector<32x1xf32> to vector<32x128xf32>
    %107 = arith.mulf %103, %106 : vector<32x128xf32>
    %c8_i32_75 = arith.constant 8 : i32
    %108 = tpu.dynamic_rotate %107 by %c8_i32_75 dim 1 : vector<32x128xf32>, i32 -> vector<32x128xf32>
    %109 = arith.addf %102, %108 : vector<32x128xf32>
    %c3_i32 = arith.constant 3 : i32
    %110 = tpu.dynamic_rotate %97 by %c3_i32 dim 0 : vector<32x128xf32>, i32 -> vector<32x128xf32>
    %c2_76 = arith.constant 2 : index
    %c0_77 = arith.constant 0 : index
    %c0_78 = arith.constant 0 : index
    %111 = vector.load %arg12[%c2_76, %c0_77, %c0_78] : memref<9x32x1xf32, #tpu.memory_space<vmem>>, vector<1x32x1xf32>
    %112 = vector.shape_cast %111 : vector<1x32x1xf32> to vector<32x1xf32>
    %113 = vector.broadcast %112 : vector<32x1xf32> to vector<32x128xf32>
    %114 = arith.mulf %110, %113 : vector<32x128xf32>
    %c16_i32_79 = arith.constant 16 : i32
    %115 = tpu.dynamic_rotate %114 by %c16_i32_79 dim 1 : vector<32x128xf32>, i32 -> vector<32x128xf32>
    %116 = arith.addf %109, %115 : vector<32x128xf32>
    %c1_i32 = arith.constant 1 : i32
    %117 = tpu.dynamic_rotate %97 by %c1_i32 dim 0 : vector<32x128xf32>, i32 -> vector<32x128xf32>
    %c3_80 = arith.constant 3 : index
    %c0_81 = arith.constant 0 : index
    %c0_82 = arith.constant 0 : index
    %118 = vector.load %arg12[%c3_80, %c0_81, %c0_82] : memref<9x32x1xf32, #tpu.memory_space<vmem>>, vector<1x32x1xf32>
    %119 = vector.shape_cast %118 : vector<1x32x1xf32> to vector<32x1xf32>
    %120 = vector.broadcast %119 : vector<32x1xf32> to vector<32x128xf32>
    %121 = arith.mulf %117, %120 : vector<32x128xf32>
    %c24_i32_83 = arith.constant 24 : i32
    %122 = tpu.dynamic_rotate %121 by %c24_i32_83 dim 1 : vector<32x128xf32>, i32 -> vector<32x128xf32>
    %123 = arith.addf %116, %122 : vector<32x128xf32>
    %c4_84 = arith.constant 4 : index
    %c0_85 = arith.constant 0 : index
    %c0_86 = arith.constant 0 : index
    %124 = vector.load %arg12[%c4_84, %c0_85, %c0_86] : memref<9x32x1xf32, #tpu.memory_space<vmem>>, vector<1x32x1xf32>
    %125 = vector.shape_cast %124 : vector<1x32x1xf32> to vector<32x1xf32>
    %126 = vector.broadcast %125 : vector<32x1xf32> to vector<32x128xf32>
    %127 = arith.mulf %97, %126 : vector<32x128xf32>
    %c32_i32_87 = arith.constant 32 : i32
    %128 = tpu.dynamic_rotate %127 by %c32_i32_87 dim 1 : vector<32x128xf32>, i32 -> vector<32x128xf32>
    %129 = arith.addf %123, %128 : vector<32x128xf32>
    %c31_i32 = arith.constant 31 : i32
    %130 = tpu.dynamic_rotate %97 by %c31_i32 dim 0 : vector<32x128xf32>, i32 -> vector<32x128xf32>
    %c5_88 = arith.constant 5 : index
    %c0_89 = arith.constant 0 : index
    %c0_90 = arith.constant 0 : index
    %131 = vector.load %arg12[%c5_88, %c0_89, %c0_90] : memref<9x32x1xf32, #tpu.memory_space<vmem>>, vector<1x32x1xf32>
    %132 = vector.shape_cast %131 : vector<1x32x1xf32> to vector<32x1xf32>
    %133 = vector.broadcast %132 : vector<32x1xf32> to vector<32x128xf32>
    %134 = arith.mulf %130, %133 : vector<32x128xf32>
    %c40_i32_91 = arith.constant 40 : i32
    %135 = tpu.dynamic_rotate %134 by %c40_i32_91 dim 1 : vector<32x128xf32>, i32 -> vector<32x128xf32>
    %136 = arith.addf %129, %135 : vector<32x128xf32>
    %c29_i32 = arith.constant 29 : i32
    %137 = tpu.dynamic_rotate %97 by %c29_i32 dim 0 : vector<32x128xf32>, i32 -> vector<32x128xf32>
    %c6_92 = arith.constant 6 : index
    %c0_93 = arith.constant 0 : index
    %c0_94 = arith.constant 0 : index
    %138 = vector.load %arg12[%c6_92, %c0_93, %c0_94] : memref<9x32x1xf32, #tpu.memory_space<vmem>>, vector<1x32x1xf32>
    %139 = vector.shape_cast %138 : vector<1x32x1xf32> to vector<32x1xf32>
    %140 = vector.broadcast %139 : vector<32x1xf32> to vector<32x128xf32>
    %141 = arith.mulf %137, %140 : vector<32x128xf32>
    %c48_i32_95 = arith.constant 48 : i32
    %142 = tpu.dynamic_rotate %141 by %c48_i32_95 dim 1 : vector<32x128xf32>, i32 -> vector<32x128xf32>
    %143 = arith.addf %136, %142 : vector<32x128xf32>
    %c28_i32 = arith.constant 28 : i32
    %144 = tpu.dynamic_rotate %97 by %c28_i32 dim 0 : vector<32x128xf32>, i32 -> vector<32x128xf32>
    %c7_96 = arith.constant 7 : index
    %c0_97 = arith.constant 0 : index
    %c0_98 = arith.constant 0 : index
    %145 = vector.load %arg12[%c7_96, %c0_97, %c0_98] : memref<9x32x1xf32, #tpu.memory_space<vmem>>, vector<1x32x1xf32>
    %146 = vector.shape_cast %145 : vector<1x32x1xf32> to vector<32x1xf32>
    %147 = vector.broadcast %146 : vector<32x1xf32> to vector<32x128xf32>
    %148 = arith.mulf %144, %147 : vector<32x128xf32>
    %c56_i32_99 = arith.constant 56 : i32
    %149 = tpu.dynamic_rotate %148 by %c56_i32_99 dim 1 : vector<32x128xf32>, i32 -> vector<32x128xf32>
    %150 = arith.addf %143, %149 : vector<32x128xf32>
    %c27_i32 = arith.constant 27 : i32
    %151 = tpu.dynamic_rotate %97 by %c27_i32 dim 0 : vector<32x128xf32>, i32 -> vector<32x128xf32>
    %c8_100 = arith.constant 8 : index
    %c0_101 = arith.constant 0 : index
    %c0_102 = arith.constant 0 : index
    %152 = vector.load %arg12[%c8_100, %c0_101, %c0_102] : memref<9x32x1xf32, #tpu.memory_space<vmem>>, vector<1x32x1xf32>
    %153 = vector.shape_cast %152 : vector<1x32x1xf32> to vector<32x1xf32>
    %154 = vector.broadcast %153 : vector<32x1xf32> to vector<32x128xf32>
    %155 = arith.mulf %151, %154 : vector<32x128xf32>
    %c64_i32_103 = arith.constant 64 : i32
    %156 = tpu.dynamic_rotate %155 by %c64_i32_103 dim 1 : vector<32x128xf32>, i32 -> vector<32x128xf32>
    %157 = arith.addf %150, %156 : vector<32x128xf32>
    %158 = arith.truncf %157 : vector<32x128xf32> to vector<32x128xbf16>
    %c1_104 = arith.constant 1 : index
    %c0_105 = arith.constant 0 : index
    %c0_106 = arith.constant 0 : index
    %159 = vector.load %arg4[%c1_104, %c0_105, %c0_106] : memref<3x128x128xbf16, #tpu.memory_space<vmem>>, vector<1x128x128xbf16>
    %160 = vector.shape_cast %159 : vector<1x128x128xbf16> to vector<128x128xbf16>
    %cst_107 = arith.constant dense<0.000000e+00> : vector<32x128xf32>
    %161 = tpu.matmul %158, %160, %cst_107 {dimension_numbers = #tpu.dot_dimension_numbers<[1], [0], [0], [1], [0, 0, 1, 1], [], []>} : vector<32x128xbf16>, vector<128x128xbf16>, vector<32x128xf32> -> vector<32x128xf32>
    %c1_108 = arith.constant 1 : index
    %c0_109 = arith.constant 0 : index
    %c0_110 = arith.constant 0 : index
    %162 = vector.load %arg5[%c1_108, %c0_109, %c0_110] : memref<3x1x128xf32, #tpu.memory_space<vmem>>, vector<1x1x128xf32>
    %163 = vector.shape_cast %162 : vector<1x1x128xf32> to vector<1x128xf32>
    %164 = vector.broadcast %163 : vector<1x128xf32> to vector<32x128xf32>
    %165 = arith.addf %161, %164 : vector<32x128xf32>
    %cst_111 = arith.constant 0.000000e+00 : f32
    %166 = vector.broadcast %cst_111 : f32 to vector<32x128xf32>
    %167 = arith.maximumf %165, %166 : vector<32x128xf32>
    %168 = vector.extract_strided_slice %167 {offsets = [0, 0], sizes = [32, 8], strides = [1, 1]} : vector<32x128xf32> to vector<32x8xf32>
    %169 = arith.truncf %168 : vector<32x8xf32> to vector<32x8xbf16>
    %c1_112 = arith.constant 1 : index
    %c0_113 = arith.constant 0 : index
    %c0_114 = arith.constant 0 : index
    %170 = vector.load %arg6[%c1_112, %c0_113, %c0_114] : memref<3x8x128xbf16, #tpu.memory_space<vmem>>, vector<1x8x128xbf16>
    %171 = vector.shape_cast %170 : vector<1x8x128xbf16> to vector<8x128xbf16>
    %cst_115 = arith.constant dense<0.000000e+00> : vector<32x128xf32>
    %172 = tpu.matmul %169, %171, %cst_115 {dimension_numbers = #tpu.dot_dimension_numbers<[1], [0], [0], [1], [0, 0, 1, 1], [], []>} : vector<32x8xbf16>, vector<8x128xbf16>, vector<32x128xf32> -> vector<32x128xf32>
    %c1_116 = arith.constant 1 : index
    %c0_117 = arith.constant 0 : index
    %c0_118 = arith.constant 0 : index
    %173 = vector.load %arg7[%c1_116, %c0_117, %c0_118] : memref<3x1x128xf32, #tpu.memory_space<vmem>>, vector<1x1x128xf32>
    %174 = vector.shape_cast %173 : vector<1x1x128xf32> to vector<1x128xf32>
    %175 = vector.broadcast %174 : vector<1x128xf32> to vector<32x128xf32>
    %176 = arith.addf %172, %175 : vector<32x128xf32>
    %177 = arith.addf %176, %86 : vector<32x128xf32>
    %cst_119 = arith.constant 0.000000e+00 : f32
    %178 = vector.broadcast %cst_119 : f32 to vector<32x128xf32>
    %179 = arith.maximumf %177, %178 : vector<32x128xf32>
    %180 = vector.extract_strided_slice %179 {offsets = [0, 0], sizes = [32, 32], strides = [1, 1]} : vector<32x128xf32> to vector<32x32xf32>
    %181 = arith.truncf %180 : vector<32x32xf32> to vector<32x32xbf16>
    %c2_120 = arith.constant 2 : index
    %c0_121 = arith.constant 0 : index
    %c0_122 = arith.constant 0 : index
    %182 = vector.load %arg2[%c2_120, %c0_121, %c0_122] : memref<3x32x128xbf16, #tpu.memory_space<vmem>>, vector<1x32x128xbf16>
    %183 = vector.shape_cast %182 : vector<1x32x128xbf16> to vector<32x128xbf16>
    %cst_123 = arith.constant dense<0.000000e+00> : vector<32x128xf32>
    %184 = tpu.matmul %181, %183, %cst_123 {dimension_numbers = #tpu.dot_dimension_numbers<[1], [0], [0], [1], [0, 0, 1, 1], [], []>} : vector<32x32xbf16>, vector<32x128xbf16>, vector<32x128xf32> -> vector<32x128xf32>
    %c2_124 = arith.constant 2 : index
    %c0_125 = arith.constant 0 : index
    %c0_126 = arith.constant 0 : index
    %185 = vector.load %arg3[%c2_124, %c0_125, %c0_126] : memref<3x1x128xf32, #tpu.memory_space<vmem>>, vector<1x1x128xf32>
    %186 = vector.shape_cast %185 : vector<1x1x128xf32> to vector<1x128xf32>
    %187 = vector.broadcast %186 : vector<1x128xf32> to vector<32x128xf32>
    %188 = arith.addf %184, %187 : vector<32x128xf32>
    %cst_127 = arith.constant 0.000000e+00 : f32
    %189 = vector.broadcast %cst_127 : f32 to vector<32x128xf32>
    %190 = arith.maximumf %188, %189 : vector<32x128xf32>
    %c5_i32_128 = arith.constant 5 : i32
    %191 = tpu.dynamic_rotate %190 by %c5_i32_128 dim 0 : vector<32x128xf32>, i32 -> vector<32x128xf32>
    %c0_129 = arith.constant 0 : index
    %c0_130 = arith.constant 0 : index
    %c0_131 = arith.constant 0 : index
    %192 = vector.load %arg12[%c0_129, %c0_130, %c0_131] : memref<9x32x1xf32, #tpu.memory_space<vmem>>, vector<1x32x1xf32>
    %193 = vector.shape_cast %192 : vector<1x32x1xf32> to vector<32x1xf32>
    %194 = vector.broadcast %193 : vector<32x1xf32> to vector<32x128xf32>
    %195 = arith.mulf %191, %194 : vector<32x128xf32>
    %c4_i32_132 = arith.constant 4 : i32
    %196 = tpu.dynamic_rotate %190 by %c4_i32_132 dim 0 : vector<32x128xf32>, i32 -> vector<32x128xf32>
    %c1_133 = arith.constant 1 : index
    %c0_134 = arith.constant 0 : index
    %c0_135 = arith.constant 0 : index
    %197 = vector.load %arg12[%c1_133, %c0_134, %c0_135] : memref<9x32x1xf32, #tpu.memory_space<vmem>>, vector<1x32x1xf32>
    %198 = vector.shape_cast %197 : vector<1x32x1xf32> to vector<32x1xf32>
    %199 = vector.broadcast %198 : vector<32x1xf32> to vector<32x128xf32>
    %200 = arith.mulf %196, %199 : vector<32x128xf32>
    %c8_i32_136 = arith.constant 8 : i32
    %201 = tpu.dynamic_rotate %200 by %c8_i32_136 dim 1 : vector<32x128xf32>, i32 -> vector<32x128xf32>
    %202 = arith.addf %195, %201 : vector<32x128xf32>
    %c3_i32_137 = arith.constant 3 : i32
    %203 = tpu.dynamic_rotate %190 by %c3_i32_137 dim 0 : vector<32x128xf32>, i32 -> vector<32x128xf32>
    %c2_138 = arith.constant 2 : index
    %c0_139 = arith.constant 0 : index
    %c0_140 = arith.constant 0 : index
    %204 = vector.load %arg12[%c2_138, %c0_139, %c0_140] : memref<9x32x1xf32, #tpu.memory_space<vmem>>, vector<1x32x1xf32>
    %205 = vector.shape_cast %204 : vector<1x32x1xf32> to vector<32x1xf32>
    %206 = vector.broadcast %205 : vector<32x1xf32> to vector<32x128xf32>
    %207 = arith.mulf %203, %206 : vector<32x128xf32>
    %c16_i32_141 = arith.constant 16 : i32
    %208 = tpu.dynamic_rotate %207 by %c16_i32_141 dim 1 : vector<32x128xf32>, i32 -> vector<32x128xf32>
    %209 = arith.addf %202, %208 : vector<32x128xf32>
    %c1_i32_142 = arith.constant 1 : i32
    %210 = tpu.dynamic_rotate %190 by %c1_i32_142 dim 0 : vector<32x128xf32>, i32 -> vector<32x128xf32>
    %c3_143 = arith.constant 3 : index
    %c0_144 = arith.constant 0 : index
    %c0_145 = arith.constant 0 : index
    %211 = vector.load %arg12[%c3_143, %c0_144, %c0_145] : memref<9x32x1xf32, #tpu.memory_space<vmem>>, vector<1x32x1xf32>
    %212 = vector.shape_cast %211 : vector<1x32x1xf32> to vector<32x1xf32>
    %213 = vector.broadcast %212 : vector<32x1xf32> to vector<32x128xf32>
    %214 = arith.mulf %210, %213 : vector<32x128xf32>
    %c24_i32_146 = arith.constant 24 : i32
    %215 = tpu.dynamic_rotate %214 by %c24_i32_146 dim 1 : vector<32x128xf32>, i32 -> vector<32x128xf32>
    %216 = arith.addf %209, %215 : vector<32x128xf32>
    %c4_147 = arith.constant 4 : index
    %c0_148 = arith.constant 0 : index
    %c0_149 = arith.constant 0 : index
    %217 = vector.load %arg12[%c4_147, %c0_148, %c0_149] : memref<9x32x1xf32, #tpu.memory_space<vmem>>, vector<1x32x1xf32>
    %218 = vector.shape_cast %217 : vector<1x32x1xf32> to vector<32x1xf32>
    %219 = vector.broadcast %218 : vector<32x1xf32> to vector<32x128xf32>
    %220 = arith.mulf %190, %219 : vector<32x128xf32>
    %c32_i32_150 = arith.constant 32 : i32
    %221 = tpu.dynamic_rotate %220 by %c32_i32_150 dim 1 : vector<32x128xf32>, i32 -> vector<32x128xf32>
    %222 = arith.addf %216, %221 : vector<32x128xf32>
    %c31_i32_151 = arith.constant 31 : i32
    %223 = tpu.dynamic_rotate %190 by %c31_i32_151 dim 0 : vector<32x128xf32>, i32 -> vector<32x128xf32>
    %c5_152 = arith.constant 5 : index
    %c0_153 = arith.constant 0 : index
    %c0_154 = arith.constant 0 : index
    %224 = vector.load %arg12[%c5_152, %c0_153, %c0_154] : memref<9x32x1xf32, #tpu.memory_space<vmem>>, vector<1x32x1xf32>
    %225 = vector.shape_cast %224 : vector<1x32x1xf32> to vector<32x1xf32>
    %226 = vector.broadcast %225 : vector<32x1xf32> to vector<32x128xf32>
    %227 = arith.mulf %223, %226 : vector<32x128xf32>
    %c40_i32_155 = arith.constant 40 : i32
    %228 = tpu.dynamic_rotate %227 by %c40_i32_155 dim 1 : vector<32x128xf32>, i32 -> vector<32x128xf32>
    %229 = arith.addf %222, %228 : vector<32x128xf32>
    %c29_i32_156 = arith.constant 29 : i32
    %230 = tpu.dynamic_rotate %190 by %c29_i32_156 dim 0 : vector<32x128xf32>, i32 -> vector<32x128xf32>
    %c6_157 = arith.constant 6 : index
    %c0_158 = arith.constant 0 : index
    %c0_159 = arith.constant 0 : index
    %231 = vector.load %arg12[%c6_157, %c0_158, %c0_159] : memref<9x32x1xf32, #tpu.memory_space<vmem>>, vector<1x32x1xf32>
    %232 = vector.shape_cast %231 : vector<1x32x1xf32> to vector<32x1xf32>
    %233 = vector.broadcast %232 : vector<32x1xf32> to vector<32x128xf32>
    %234 = arith.mulf %230, %233 : vector<32x128xf32>
    %c48_i32_160 = arith.constant 48 : i32
    %235 = tpu.dynamic_rotate %234 by %c48_i32_160 dim 1 : vector<32x128xf32>, i32 -> vector<32x128xf32>
    %236 = arith.addf %229, %235 : vector<32x128xf32>
    %c28_i32_161 = arith.constant 28 : i32
    %237 = tpu.dynamic_rotate %190 by %c28_i32_161 dim 0 : vector<32x128xf32>, i32 -> vector<32x128xf32>
    %c7_162 = arith.constant 7 : index
    %c0_163 = arith.constant 0 : index
    %c0_164 = arith.constant 0 : index
    %238 = vector.load %arg12[%c7_162, %c0_163, %c0_164] : memref<9x32x1xf32, #tpu.memory_space<vmem>>, vector<1x32x1xf32>
    %239 = vector.shape_cast %238 : vector<1x32x1xf32> to vector<32x1xf32>
    %240 = vector.broadcast %239 : vector<32x1xf32> to vector<32x128xf32>
    %241 = arith.mulf %237, %240 : vector<32x128xf32>
    %c56_i32_165 = arith.constant 56 : i32
    %242 = tpu.dynamic_rotate %241 by %c56_i32_165 dim 1 : vector<32x128xf32>, i32 -> vector<32x128xf32>
    %243 = arith.addf %236, %242 : vector<32x128xf32>
    %c27_i32_166 = arith.constant 27 : i32
    %244 = tpu.dynamic_rotate %190 by %c27_i32_166 dim 0 : vector<32x128xf32>, i32 -> vector<32x128xf32>
    %c8_167 = arith.constant 8 : index
    %c0_168 = arith.constant 0 : index
    %c0_169 = arith.constant 0 : index
    %245 = vector.load %arg12[%c8_167, %c0_168, %c0_169] : memref<9x32x1xf32, #tpu.memory_space<vmem>>, vector<1x32x1xf32>
    %246 = vector.shape_cast %245 : vector<1x32x1xf32> to vector<32x1xf32>
    %247 = vector.broadcast %246 : vector<32x1xf32> to vector<32x128xf32>
    %248 = arith.mulf %244, %247 : vector<32x128xf32>
    %c64_i32_170 = arith.constant 64 : i32
    %249 = tpu.dynamic_rotate %248 by %c64_i32_170 dim 1 : vector<32x128xf32>, i32 -> vector<32x128xf32>
    %250 = arith.addf %243, %249 : vector<32x128xf32>
    %251 = arith.truncf %250 : vector<32x128xf32> to vector<32x128xbf16>
    %c2_171 = arith.constant 2 : index
    %c0_172 = arith.constant 0 : index
    %c0_173 = arith.constant 0 : index
    %252 = vector.load %arg4[%c2_171, %c0_172, %c0_173] : memref<3x128x128xbf16, #tpu.memory_space<vmem>>, vector<1x128x128xbf16>
    %253 = vector.shape_cast %252 : vector<1x128x128xbf16> to vector<128x128xbf16>
    %cst_174 = arith.constant dense<0.000000e+00> : vector<32x128xf32>
    %254 = tpu.matmul %251, %253, %cst_174 {dimension_numbers = #tpu.dot_dimension_numbers<[1], [0], [0], [1], [0, 0, 1, 1], [], []>} : vector<32x128xbf16>, vector<128x128xbf16>, vector<32x128xf32> -> vector<32x128xf32>
    %c2_175 = arith.constant 2 : index
    %c0_176 = arith.constant 0 : index
    %c0_177 = arith.constant 0 : index
    %255 = vector.load %arg5[%c2_175, %c0_176, %c0_177] : memref<3x1x128xf32, #tpu.memory_space<vmem>>, vector<1x1x128xf32>
    %256 = vector.shape_cast %255 : vector<1x1x128xf32> to vector<1x128xf32>
    %257 = vector.broadcast %256 : vector<1x128xf32> to vector<32x128xf32>
    %258 = arith.addf %254, %257 : vector<32x128xf32>
    %cst_178 = arith.constant 0.000000e+00 : f32
    %259 = vector.broadcast %cst_178 : f32 to vector<32x128xf32>
    %260 = arith.maximumf %258, %259 : vector<32x128xf32>
    %261 = vector.extract_strided_slice %260 {offsets = [0, 0], sizes = [32, 8], strides = [1, 1]} : vector<32x128xf32> to vector<32x8xf32>
    %262 = arith.truncf %261 : vector<32x8xf32> to vector<32x8xbf16>
    %c2_179 = arith.constant 2 : index
    %c0_180 = arith.constant 0 : index
    %c0_181 = arith.constant 0 : index
    %263 = vector.load %arg6[%c2_179, %c0_180, %c0_181] : memref<3x8x128xbf16, #tpu.memory_space<vmem>>, vector<1x8x128xbf16>
    %264 = vector.shape_cast %263 : vector<1x8x128xbf16> to vector<8x128xbf16>
    %cst_182 = arith.constant dense<0.000000e+00> : vector<32x128xf32>
    %265 = tpu.matmul %262, %264, %cst_182 {dimension_numbers = #tpu.dot_dimension_numbers<[1], [0], [0], [1], [0, 0, 1, 1], [], []>} : vector<32x8xbf16>, vector<8x128xbf16>, vector<32x128xf32> -> vector<32x128xf32>
    %c2_183 = arith.constant 2 : index
    %c0_184 = arith.constant 0 : index
    %c0_185 = arith.constant 0 : index
    %266 = vector.load %arg7[%c2_183, %c0_184, %c0_185] : memref<3x1x128xf32, #tpu.memory_space<vmem>>, vector<1x1x128xf32>
    %267 = vector.shape_cast %266 : vector<1x1x128xf32> to vector<1x128xf32>
    %268 = vector.broadcast %267 : vector<1x128xf32> to vector<32x128xf32>
    %269 = arith.addf %265, %268 : vector<32x128xf32>
    %270 = arith.addf %269, %179 : vector<32x128xf32>
    %cst_186 = arith.constant 0.000000e+00 : f32
    %271 = vector.broadcast %cst_186 : f32 to vector<32x128xf32>
    %272 = arith.maximumf %270, %271 : vector<32x128xf32>
    %c0_187 = arith.constant 0 : index
    %c0_188 = arith.constant 0 : index
    %273 = vector.load %arg13[%c0_187, %c0_188] : memref<8x32xbf16, #tpu.memory_space<vmem>>, vector<8x32xbf16>
    %274 = vector.extract_strided_slice %272 {offsets = [0, 0], sizes = [32, 32], strides = [1, 1]} : vector<32x128xf32> to vector<32x32xf32>
    %275 = arith.truncf %274 : vector<32x32xf32> to vector<32x32xbf16>
    %cst_189 = arith.constant dense<0.000000e+00> : vector<8x32xf32>
    %276 = tpu.matmul %273, %275, %cst_189 {dimension_numbers = #tpu.dot_dimension_numbers<[1], [0], [0], [1], [0, 0, 1, 1], [], []>} : vector<8x32xbf16>, vector<32x32xbf16>, vector<8x32xf32> -> vector<8x32xf32>
    %277 = arith.truncf %276 : vector<8x32xf32> to vector<8x32xbf16>
    %c0_190 = arith.constant 0 : index
    %c0_191 = arith.constant 0 : index
    %278 = vector.load %arg14[%c0_190, %c0_191] : memref<32x128xbf16, #tpu.memory_space<vmem>>, vector<32x128xbf16>
    %cst_192 = arith.constant dense<0.000000e+00> : vector<8x128xf32>
    %279 = tpu.matmul %277, %278, %cst_192 {dimension_numbers = #tpu.dot_dimension_numbers<[1], [0], [0], [1], [0, 0, 1, 1], [], []>} : vector<8x32xbf16>, vector<32x128xbf16>, vector<8x128xf32> -> vector<8x128xf32>
    %c0_193 = arith.constant 0 : index
    %c0_194 = arith.constant 0 : index
    %280 = vector.load %arg15[%c0_193, %c0_194] : memref<1x128xf32, #tpu.memory_space<vmem>>, vector<1x128xf32>
    %281 = vector.broadcast %280 : vector<1x128xf32> to vector<8x128xf32>
    %282 = arith.addf %279, %281 : vector<8x128xf32>
    %c0_195 = arith.constant 0 : index
    %c0_196 = arith.constant 0 : index
    %c0_197 = arith.constant 0 : index
    %283 = vector.load %arg16[%c0_195, %c0_196, %c0_197] : memref<1x8x128xf32, #tpu.memory_space<vmem>>, vector<1x8x128xf32>
    %284 = vector.shape_cast %283 : vector<1x8x128xf32> to vector<8x128xf32>
    %285 = vector.shape_cast %282 : vector<8x128xf32> to vector<1x8x128xf32>
    tpu.vector_store %arg16[%c0_195, %c0_196, %c0_197], %285 {strides = array<i32>} : memref<1x8x128xf32, #tpu.memory_space<vmem>>, vector<1x8x128xf32>,
    return
  }
  func.func @transform_0(%arg0: i32) -> (i32, i32, i32) {
    %c0_i32 = arith.constant 0 : i32
    %c0_i32_0 = arith.constant 0 : i32
    %c0_i32_1 = arith.constant 0 : i32
    return %arg0, %c0_i32, %c0_i32_0 : i32, i32, i32
  }
  func.func @transform_1(%arg0: i32) -> (i32, i32, i32) {
    %c0_i32 = arith.constant 0 : i32
    %c0_i32_0 = arith.constant 0 : i32
    %c0_i32_1 = arith.constant 0 : i32
    %c0_i32_2 = arith.constant 0 : i32
    return %c0_i32, %c0_i32_0, %c0_i32_1 : i32, i32, i32
  }
  func.func @transform_2(%arg0: i32) -> (i32, i32, i32) {
    %c0_i32 = arith.constant 0 : i32
    %c0_i32_0 = arith.constant 0 : i32
    %c0_i32_1 = arith.constant 0 : i32
    %c0_i32_2 = arith.constant 0 : i32
    return %c0_i32, %c0_i32_0, %c0_i32_1 : i32, i32, i32
  }
  func.func @transform_3(%arg0: i32) -> (i32, i32, i32) {
    %c0_i32 = arith.constant 0 : i32
    %c0_i32_0 = arith.constant 0 : i32
    %c0_i32_1 = arith.constant 0 : i32
    %c0_i32_2 = arith.constant 0 : i32
    return %c0_i32, %c0_i32_0, %c0_i32_1 : i32, i32, i32
  }
  func.func @transform_4(%arg0: i32) -> (i32, i32, i32) {
    %c0_i32 = arith.constant 0 : i32
    %c0_i32_0 = arith.constant 0 : i32
    %c0_i32_1 = arith.constant 0 : i32
    %c0_i32_2 = arith.constant 0 : i32
    return %c0_i32, %c0_i32_0, %c0_i32_1 : i32, i32, i32
  }
  func.func @transform_5(%arg0: i32) -> (i32, i32, i32) {
    %c0_i32 = arith.constant 0 : i32
    %c0_i32_0 = arith.constant 0 : i32
    %c0_i32_1 = arith.constant 0 : i32
    %c0_i32_2 = arith.constant 0 : i32
    return %c0_i32, %c0_i32_0, %c0_i32_1 : i32, i32, i32
  }
  func.func @transform_6(%arg0: i32) -> (i32, i32, i32) {
    %c0_i32 = arith.constant 0 : i32
    %c0_i32_0 = arith.constant 0 : i32
    %c0_i32_1 = arith.constant 0 : i32
    %c0_i32_2 = arith.constant 0 : i32
    return %c0_i32, %c0_i32_0, %c0_i32_1 : i32, i32, i32
  }
  func.func @transform_7(%arg0: i32) -> (i32, i32, i32) {
    %c0_i32 = arith.constant 0 : i32
    %c0_i32_0 = arith.constant 0 : i32
    %c0_i32_1 = arith.constant 0 : i32
    %c0_i32_2 = arith.constant 0 : i32
    return %c0_i32, %c0_i32_0, %c0_i32_1 : i32, i32, i32
  }
  func.func @transform_8(%arg0: i32) -> (i32, i32) {
    %c0_i32 = arith.constant 0 : i32
    %c0_i32_0 = arith.constant 0 : i32
    %c0_i32_1 = arith.constant 0 : i32
    return %c0_i32, %c0_i32_0 : i32, i32
  }
  func.func @transform_9(%arg0: i32) -> (i32, i32) {
    %c0_i32 = arith.constant 0 : i32
    %c0_i32_0 = arith.constant 0 : i32
    %c0_i32_1 = arith.constant 0 : i32
    return %c0_i32, %c0_i32_0 : i32, i32
  }
  func.func @transform_10(%arg0: i32) -> (i32, i32) {
    %c0_i32 = arith.constant 0 : i32
    %c0_i32_0 = arith.constant 0 : i32
    %c0_i32_1 = arith.constant 0 : i32
    return %c0_i32, %c0_i32_0 : i32, i32
  }
  func.func @transform_11(%arg0: i32) -> (i32, i32, i32) {
    %c0_i32 = arith.constant 0 : i32
    %c0_i32_0 = arith.constant 0 : i32
    %c0_i32_1 = arith.constant 0 : i32
    %c0_i32_2 = arith.constant 0 : i32
    return %c0_i32, %c0_i32_0, %c0_i32_1 : i32, i32, i32
  }
  func.func @transform_12(%arg0: i32) -> (i32, i32) {
    %c0_i32 = arith.constant 0 : i32
    %c0_i32_0 = arith.constant 0 : i32
    %c0_i32_1 = arith.constant 0 : i32
    return %c0_i32, %c0_i32_0 : i32, i32
  }
  func.func @transform_13(%arg0: i32) -> (i32, i32) {
    %c0_i32 = arith.constant 0 : i32
    %c0_i32_0 = arith.constant 0 : i32
    %c0_i32_1 = arith.constant 0 : i32
    return %c0_i32, %c0_i32_0 : i32, i32
  }
  func.func @transform_14(%arg0: i32) -> (i32, i32) {
    %c0_i32 = arith.constant 0 : i32
    %c0_i32_0 = arith.constant 0 : i32
    %c0_i32_1 = arith.constant 0 : i32
    return %c0_i32, %c0_i32_0 : i32, i32
  }
  func.func @transform_15(%arg0: i32) -> (i32, i32, i32) {
    %c0_i32 = arith.constant 0 : i32
    %c0_i32_0 = arith.constant 0 : i32
    %c0_i32_1 = arith.constant 0 : i32
    return %arg0, %c0_i32, %c0_i32_0 : i32, i32, i32
  }
}

</mosaic_0001>

<llo_original>
// kernel: conv_classify_forward.1
$region0: #{conv_classify_forward.1}
  #allocation0 [shape = 'u32[]', space=smem, size = 0x4, offset = 0x4, fixed_abs, tag = 'smem constant byte address 0x4 - core index']
  #allocation1 [shape = 'u32[144,128]{1,0:T(1,128)}', space=vmem, size = 0x12000, scoped, tag = 'internal scratch']
  %s0 = inlined_call_operand.vmem [shape: f32[1,128,32], index: 0, kind: input, shape index: {}]
  %s1 = inlined_call_operand.vmem [shape: bf16[3,32,128], index: 1, kind: input, shape index: {}]
  %s2 = inlined_call_operand.vmem [shape: f32[3,1,128], index: 2, kind: input, shape index: {}]
  %s3 = inlined_call_operand.vmem [shape: bf16[3,128,128], index: 3, kind: input, shape index: {}]
  %s4 = inlined_call_operand.vmem [shape: f32[3,1,128], index: 4, kind: input, shape index: {}]
  %s5 = inlined_call_operand.vmem [shape: bf16[3,8,128], index: 5, kind: input, shape index: {}]
  %s6 = inlined_call_operand.vmem [shape: f32[3,1,128], index: 6, kind: input, shape index: {}]
  %s7 = inlined_call_operand.vmem [shape: bf16[9,32,128], index: 7, kind: input, shape index: {}]
  %s8 = inlined_call_operand.vmem [shape: bf16[32,128], index: 8, kind: input, shape index: {}]
  %s9 = inlined_call_operand.vmem [shape: bf16[16,128], index: 9, kind: input, shape index: {}]
  %s10 = inlined_call_operand.vmem [shape: f32[1,128], index: 10, kind: input, shape index: {}]
  %s11 = inlined_call_operand.vmem [shape: f32[9,32,1], index: 11, kind: input, shape index: {}]
  %s12 = inlined_call_operand.vmem [shape: bf16[8,32], index: 12, kind: input, shape index: {}]
  %s13 = inlined_call_operand.vmem [shape: bf16[32,128], index: 13, kind: input, shape index: {}]
  %s14 = inlined_call_operand.vmem [shape: f32[1,128], index: 14, kind: input, shape index: {}]
  %s15 = inlined_call_operand.vmem [shape: f32[1,8,128], index: 15, kind: output, shape index: {}]
  %s16 = sld [smem:[#allocation0]]
  $region70: #{conv_classify_forward.1} parent=0
    _
  %s18 = ssub.s32 1, %s16
  %s19 = scalar_select 0, %s18, %s16
  // Predicated region
  $region2: #{conv_classify_forward.1} parent=0 // pred_check
    _
  $region3: #{conv_classify_forward.1} parent=0 // pred_check_branch
    %21 = sbr.rel (0) target = $region5
  $region4: #{conv_classify_forward.1} parent=0 // pred_region
    _
  $region5: #{conv_classify_forward.1} parent=0 // pred_fallthru
    _
  // Predicated region
  $region6: #{conv_classify_forward.1} parent=0 // pred_check
    _
  $region7: #{conv_classify_forward.1} parent=0 // pred_check_branch
    %23 = sbr.rel (0) target = $region9
  $region8: #{conv_classify_forward.1} parent=0 // pred_region
    _
  $region9: #{conv_classify_forward.1} parent=0 // pred_fallthru
    _
  // Predicated region
  $region10: #{conv_classify_forward.1} parent=0 // pred_check
    _
  $region11: #{conv_classify_forward.1} parent=0 // pred_check_branch
    %25 = sbr.rel (0) target = $region13
  $region12: #{conv_classify_forward.1} parent=0 // pred_region
    _
  $region13: #{conv_classify_forward.1} parent=0 // pred_fallthru
    _
  // Predicated region
  $region14: #{conv_classify_forward.1} parent=0 // pred_check
    _
  $region15: #{conv_classify_forward.1} parent=0 // pred_check_branch
    %27 = sbr.rel (0) target = $region17
  $region16: #{conv_classify_forward.1} parent=0 // pred_region
    _
  $region17: #{conv_classify_forward.1} parent=0 // pred_fallthru
    _
  // Predicated region
  $region18: #{conv_classify_forward.1} parent=0 // pred_check
    _
  $region19: #{conv_classify_forward.1} parent=0 // pred_check_branch
    %29 = sbr.rel (0) target = $region21
  $region20: #{conv_classify_forward.1} parent=0 // pred_region
    _
  $region21: #{conv_classify_forward.1} parent=0 // pred_fallthru
    _
  // Predicated region
  $region22: #{conv_classify_forward.1} parent=0 // pred_check
    _
  $region23: #{conv_classify_forward.1} parent=0 // pred_check_branch
    %31 = sbr.rel (0) target = $region25
  $region24: #{conv_classify_forward.1} parent=0 // pred_region
    _
  $region25: #{conv_classify_forward.1} parent=0 // pred_fallthru
    _
  // Predicated region
  $region26: #{conv_classify_forward.1} parent=0 // pred_check
    _
  $region27: #{conv_classify_forward.1} parent=0 // pred_check_branch
    %33 = sbr.rel (0) target = $region29
  $region28: #{conv_classify_forward.1} parent=0 // pred_region
    _
  $region29: #{conv_classify_forward.1} parent=0 // pred_fallthru
    _
  // Predicated region
  $region30: #{conv_classify_forward.1} parent=0 // pred_check
    _
  $region31: #{conv_classify_forward.1} parent=0 // pred_check_branch
    %35 = sbr.rel (0) target = $region33
  $region32: #{conv_classify_forward.1} parent=0 // pred_region
    _
  $region33: #{conv_classify_forward.1} parent=0 // pred_fallthru
    _
  // Predicated region
  $region34: #{conv_classify_forward.1} parent=0 // pred_check
    _
  $region35: #{conv_classify_forward.1} parent=0 // pred_check_branch
    %37 = sbr.rel (0) target = $region37
  $region36: #{conv_classify_forward.1} parent=0 // pred_region
    _
  $region37: #{conv_classify_forward.1} parent=0 // pred_fallthru
    _
  // Predicated region
  $region38: #{conv_classify_forward.1} parent=0 // pred_check
    _
  $region39: #{conv_classify_forward.1} parent=0 // pred_check_branch
    %39 = sbr.rel (0) target = $region41
  $region40: #{conv_classify_forward.1} parent=0 // pred_region
    _
  $region41: #{conv_classify_forward.1} parent=0 // pred_fallthru
    _
  // Predicated region
  $region42: #{conv_classify_forward.1} parent=0 // pred_check
    _
  $region43: #{conv_classify_forward.1} parent=0 // pred_check_branch
    %41 = sbr.rel (0) target = $region45
  $region44: #{conv_classify_forward.1} parent=0 // pred_region
    _
  $region45: #{conv_classify_forward.1} parent=0 // pred_fallthru
    _
  // Predicated region
  $region46: #{conv_classify_forward.1} parent=0 // pred_check
    _
  $region47: #{conv_classify_forward.1} parent=0 // pred_check_branch
    %43 = sbr.rel (0) target = $region49
  $region48: #{conv_classify_forward.1} parent=0 // pred_region
    _
  $region49: #{conv_classify_forward.1} parent=0 // pred_fallthru
    _
  // Predicated region
  $region50: #{conv_classify_forward.1} parent=0 // pred_check
    _
  $region51: #{conv_classify_forward.1} parent=0 // pred_check_branch
    %45 = sbr.rel (0) target = $region53
  $region52: #{conv_classify_forward.1} parent=0 // pred_region
    _
  $region53: #{conv_classify_forward.1} parent=0 // pred_fallthru
    _
  // Predicated region
  $region54: #{conv_classify_forward.1} parent=0 // pred_check
    _
  $region55: #{conv_classify_forward.1} parent=0 // pred_check_branch
    %47 = sbr.rel (0) target = $region57
  $region56: #{conv_classify_forward.1} parent=0 // pred_region
    _
  $region57: #{conv_classify_forward.1} parent=0 // pred_fallthru
    _
  // Predicated region
  $region58: #{conv_classify_forward.1} parent=0 // pred_check
    _
  $region59: #{conv_classify_forward.1} parent=0 // pred_check_branch
    %49 = sbr.rel (0) target = $region61
  $region60: #{conv_classify_forward.1} parent=0 // pred_region
    _
  $region61: #{conv_classify_forward.1} parent=0 // pred_fallthru
    _
  %v51 = vld [vmem:[%s0] sm:$0xff]
  %v52 = vld [vmem:[%s0 + $0x8] sm:$0xff]
  %v53 = vld [vmem:[%s0 + $0x10] sm:$0xff]
  %v54 = vld [vmem:[%s0 + $0x18] sm:$0xff]
  %v55 = vld [vmem:[%s0 + $0x20] sm:$0xff]
  %v56 = vld [vmem:[%s0 + $0x28] sm:$0xff]
  %v57 = vld [vmem:[%s0 + $0x30] sm:$0xff]
  %v58 = vld [vmem:[%s0 + $0x38] sm:$0xff]
  %v59 = vld [vmem:[%s0 + $0x40] sm:$0xff]
  %v60 = vld [vmem:[%s0 + $0x48] sm:$0xff]
  %v61 = vld [vmem:[%s0 + $0x50] sm:$0xff]
  %v62 = vld [vmem:[%s0 + $0x58] sm:$0xff]
  %v63 = vld [vmem:[%s0 + $0x60] sm:$0xff]
  %v64 = vld [vmem:[%s0 + $0x68] sm:$0xff]
  %v65 = vld [vmem:[%s0 + $0x70] sm:$0xff]
  %v66 = vld [vmem:[%s0 + $0x78] sm:$0xff]
  %v67 = vpack.c.bf16 %v52, %v51
  %v68 = vpack.c.bf16 %v54, %v53
  %v69 = vpack.c.bf16 %v56, %v55
  %v70 = vpack.c.bf16 %v58, %v57
  %v71 = vpack.c.bf16 %v60, %v59
  %v72 = vpack.c.bf16 %v62, %v61
  %v73 = vpack.c.bf16 %v64, %v63
  %v74 = vpack.c.bf16 %v66, %v65
  %v75 = vld [vmem:[%s1] sm:$0xf]
  %v76 = vld [vmem:[%s1 + $0x4] sm:$0xf]
  %v77 = vld [vmem:[%s1 + $0x8] sm:$0xf]
  %v78 = vld [vmem:[%s1 + $0xc] sm:$0xf]
  %v79 = vld [vmem:[%s2] sm:$0x1]
  %v81 = vlaneseq
  %v82 = vshrl.u32 %v81, 7
  %v83 = vsub.s32 0, %v82
  %v84 = vrot.slane %v79, %v83
  %v90 = vunpack.c.l.b16 %v75
  %v91 = vunpack.c.l.b16 %v76
  %v92 = vunpack.c.l.b16 %v77
  %v93 = vunpack.c.l.b16 %v78
  %v94 = vpack.c.b16 %v91, %v90
  %v95 = vpack.c.b16 %v93, %v92
  %vm98 = vcmask 261120
  %v100 = vsel %vm98, %v67, 0
  %v103 = vsel %vm98, %v68, 0
  %v106 = vsel %vm98, %v69, 0
  %v109 = vsel %vm98, %v70, 0
  %v112 = vsel %vm98, %v71, 0
  %v115 = vsel %vm98, %v72, 0
  %v118 = vsel %vm98, %v73, 0
  %v121 = vsel %vm98, %v74, 0
  %123 = vmatprep.subr.bf16.mxu0 0
  %124 = vmatpush1.bf16.msra.mxu0 %v94
  %125 = vmatprep.subr.bf16.mxu0 0
  %126 = vmatpush1.bf16.msra.mxu0 %v95
  %127 = vmatprep.subr.bf16.mxu0 0
  %128 = vmatpush1.bf16.msra.mxu0 0
  %129 = vmatprep.subr.bf16.mxu0 0
  %130 = vmatpush1.bf16.msra.mxu0 0
  %131 = vmatprep.subr.bf16.mxu0 0
  %132 = vmatpush1.bf16.msra.mxu0 0
  %133 = vmatprep.subr.bf16.mxu0 0
  %134 = vmatpush1.bf16.msra.mxu0 0
  %135 = vmatprep.subr.bf16.mxu0 0
  %136 = vmatpush1.bf16.msra.mxu0 0
  %137 = vmatprep.subr.bf16.mxu0 0
  %138 = vmatpush1.bf16.msra.mxu0 0
  %139 = vmatprep.subr.bf16.mxu0 0
  %140 = vmatpush1.bf16.msra.mxu0 0
  %141 = vmatprep.subr.bf16.mxu0 0
  %142 = vmatpush1.bf16.msra.mxu0 0
  %143 = vmatprep.subr.bf16.mxu0 0
  %144 = vmatpush1.bf16.msra.mxu0 0
  %145 = vmatprep.subr.bf16.mxu0 0
  %146 = vmatpush1.bf16.msra.mxu0 0
  %147 = vmatprep.subr.bf16.mxu0 0
  %148 = vmatpush1.bf16.msra.mxu0 0
  %149 = vmatprep.subr.bf16.mxu0 0
  %150 = vmatpush1.bf16.msra.mxu0 0
  %151 = vmatprep.subr.bf16.mxu0 0
  %152 = vmatpush1.bf16.msra.mxu0 0
  %153 = vmatprep.subr.bf16.mxu0 0
  %154 = vmatpush1.bf16.msra.mxu0 0
  %155 = vmatprep.mubr.bf16.mxu0 0
  %156 = vmatmul.mubr.bf16.gmra.mrb[0].mxu0 %v100
  %v157 = vpop.f32.mrb[0].mxu0
  %v158 = vadd.f32 %v84, %v157
  %v159 = vpop.f32.mrb[0].mxu0
  %v160 = vpop.f32.mrb[0].mxu0
  %v161 = vadd.f32 %v84, %v160
  %v162 = vpop.f32.mrb[0].mxu0
  %163 = vmatprep.mubr.bf16.mxu0 0
  %164 = vmatmul.mubr.bf16.gmra.mrb[0].mxu0 %v103
  %v165 = vpop.f32.mrb[0].mxu0
  %v166 = vadd.f32 %v84, %v165
  %v167 = vpop.f32.mrb[0].mxu0
  %v168 = vpop.f32.mrb[0].mxu0
  %v169 = vadd.f32 %v84, %v168
  %v170 = vpop.f32.mrb[0].mxu0
  %171 = vmatprep.mubr.bf16.mxu0 0
  %172 = vmatmul.mubr.bf16.gmra.mrb[0].mxu0 %v106
  %v173 = vpop.f32.mrb[0].mxu0
  %v174 = vadd.f32 %v84, %v173
  %v175 = vpop.f32.mrb[0].mxu0
  %v176 = vpop.f32.mrb[0].mxu0
  %v177 = vadd.f32 %v84, %v176
  %v178 = vpop.f32.mrb[0].mxu0
  %179 = vmatprep.mubr.bf16.mxu0 0
  %180 = vmatmul.mubr.bf16.gmra.mrb[0].mxu0 %v109
  %v181 = vpop.f32.mrb[0].mxu0
  %v182 = vadd.f32 %v84, %v181
  %v183 = vpop.f32.mrb[0].mxu0
  %v184 = vpop.f32.mrb[0].mxu0
  %v185 = vadd.f32 %v84, %v184
  %v186 = vpop.f32.mrb[0].mxu0
  %187 = vmatprep.mubr.bf16.mxu0 0
  %188 = vmatmul.mubr.bf16.gmra.mrb[0].mxu0 %v112
  %v189 = vpop.f32.mrb[0].mxu0
  %v190 = vadd.f32 %v84, %v189
  %v191 = vpop.f32.mrb[0].mxu0
  %v192 = vpop.f32.mrb[0].mxu0
  %v193 = vadd.f32 %v84, %v192
  %v194 = vpop.f32.mrb[0].mxu0
  %195 = vmatprep.mubr.bf16.mxu0 0
  %196 = vmatmul.mubr.bf16.gmra.mrb[0].mxu0 %v115
  %v197 = vpop.f32.mrb[0].mxu0
  %v198 = vadd.f32 %v84, %v197
  %v199 = vpop.f32.mrb[0].mxu0
  %v200 = vpop.f32.mrb[0].mxu0
  %v201 = vadd.f32 %v84, %v200
  %v202 = vpop.f32.mrb[0].mxu0
  %203 = vmatprep.mubr.bf16.mxu0 0
  %204 = vmatmul.mubr.bf16.gmra.mrb[0].mxu0 %v118
  %v205 = vpop.f32.mrb[0].mxu0
  %v206 = vadd.f32 %v84, %v205
  %v207 = vpop.f32.mrb[0].mxu0
  %v208 = vpop.f32.mrb[0].mxu0
  %v209 = vadd.f32 %v84, %v208
  %v210 = vpop.f32.mrb[0].mxu0
  %211 = vmatprep.mubr.bf16.mxu0 0
  %212 = vmatmul.mubr.bf16.gmra.mrb[0].mxu0 %v121
  %v213 = vpop.f32.mrb[0].mxu0
  %v214 = vadd.f32 %v84, %v213
  %v215 = vpop.f32.mrb[0].mxu0
  %v216 = vpop.f32.mrb[0].mxu0
  %v217 = vadd.f32 %v84, %v216
  %v218 = vpop.f32.mrb[0].mxu0
  %219 = vdwg.mxu0
  %v220 = vmax.f32 %v158, 0.0
  %v221 = vmax.f32 %v161, 0.0
  %v222 = vmax.f32 %v166, 0.0
  %v223 = vmax.f32 %v169, 0.0
  %v224 = vmax.f32 %v174, 0.0
  %v225 = vmax.f32 %v177, 0.0
  %v226 = vmax.f32 %v182, 0.0
  %v227 = vmax.f32 %v185, 0.0
  %v228 = vmax.f32 %v190, 0.0
  %v229 = vmax.f32 %v193, 0.0
  %v230 = vmax.f32 %v198, 0.0
  %v231 = vmax.f32 %v201, 0.0
  %v232 = vmax.f32 %v206, 0.0
  %v233 = vmax.f32 %v209, 0.0
  %v234 = vmax.f32 %v214, 0.0
  %v235 = vmax.f32 %v217, 0.0
  %v236 = vpack.c.bf16 %v221, %v220
  %v237 = vpack.c.bf16 %v223, %v222
  %v238 = vpack.c.bf16 %v225, %v224
  %v239 = vpack.c.bf16 %v227, %v226
  %v240 = vpack.c.bf16 %v229, %v228
  %v241 = vpack.c.bf16 %v231, %v230
  %v242 = vpack.c.bf16 %v233, %v232
  %v243 = vpack.c.bf16 %v235, %v234
  %v244 = vld [vmem:[%s7] sm:$0xf]
  %v245 = vld [vmem:[%s7 + $0x4] sm:$0xf]
  %v246 = vld [vmem:[%s7 + $0x8] sm:$0xf]
  %v247 = vld [vmem:[%s7 + $0xc] sm:$0xf]
  %s248 = scalar_lea.vmem %s7, 16
  %v249 = vld [vmem:[%s248] sm:$0xf]
  %v250 = vld [vmem:[%s248 + $0x4] sm:$0xf]
  %v251 = vld [vmem:[%s248 + $0x8] sm:$0xf]
  %v252 = vld [vmem:[%s248 + $0xc] sm:$0xf]
  %v257 = vunpack.c.l.b16 %v249
  %v258 = vunpack.c.l.b16 %v250
  %v259 = vunpack.c.l.b16 %v251
  %v260 = vunpack.c.l.b16 %v252
  %v261 = vpack.c.b16 %v258, %v257
  %v262 = vpack.c.b16 %v260, %v259
  %265 = vmatprep.subr.bf16.mxu0 0
  %266 = vmatpush1.bf16.msra.mxu0 %v236
  %267 = vmatprep.subr.bf16.mxu0 0
  %268 = vmatpush1.bf16.msra.mxu0 %v237
  %269 = vmatprep.subr.bf16.mxu0 0
  %270 = vmatpush1.bf16.msra.mxu0 %v238
  %271 = vmatprep.subr.bf16.mxu0 0
  %272 = vmatpush1.bf16.msra.mxu0 %v239
  %273 = vmatprep.subr.bf16.mxu0 0
  %274 = vmatpush1.bf16.msra.mxu0 %v240
  %275 = vmatprep.subr.bf16.mxu0 0
  %276 = vmatpush1.bf16.msra.mxu0 %v241
  %277 = vmatprep.subr.bf16.mxu0 0
  %278 = vmatpush1.bf16.msra.mxu0 %v242
  %279 = vmatprep.subr.bf16.mxu0 0
  %280 = vmatpush1.bf16.msra.mxu0 %v243
  %281 = vmatprep.subr.bf16.mxu0 0
  %282 = vmatpush1.bf16.msra.mxu0 0
  %283 = vmatprep.subr.bf16.mxu0 0
  %284 = vmatpush1.bf16.msra.mxu0 0
  %285 = vmatprep.subr.bf16.mxu0 0
  %286 = vmatpush1.bf16.msra.mxu0 0
  %287 = vmatprep.subr.bf16.mxu0 0
  %288 = vmatpush1.bf16.msra.mxu0 0
  %289 = vmatprep.subr.bf16.mxu0 0
  %290 = vmatpush1.bf16.msra.mxu0 0
  %291 = vmatprep.subr.bf16.mxu0 0
  %292 = vmatpush1.bf16.msra.mxu0 0
  %293 = vmatprep.subr.bf16.mxu0 0
  %294 = vmatpush1.bf16.msra.mxu0 0
  %295 = vmatprep.subr.bf16.mxu0 0
  %296 = vmatpush1.bf16.msra.mxu0 0
  %297 = vmatprep.mubr.bf16.mxu0 0
  %298 = vmatmul.mubr.bf16.gmra.mrb[0].mxu0 %v261
  %v299 = vpop.f32.mrb[0].mxu0
  %v300 = vadd.f32 0.0, %v299
  %v301 = vpop.f32.mrb[0].mxu0
  %v302 = vpop.f32.mrb[0].mxu0
  %v303 = vadd.f32 0.0, %v302
  %v304 = vpop.f32.mrb[0].mxu0
  %305 = vmatprep.mubr.bf16.mxu0 0
  %306 = vmatmul.mubr.bf16.gmra.mrb[0].mxu0 %v262
  %v307 = vpop.f32.mrb[0].mxu0
  %v308 = vadd.f32 0.0, %v307
  %v309 = vpop.f32.mrb[0].mxu0
  %v310 = vpop.f32.mrb[0].mxu0
  %v311 = vadd.f32 0.0, %v310
  %v312 = vpop.f32.mrb[0].mxu0
  %313 = vdwg.mxu0
  %314 = vrot.lane.b32.xlu0 %v300, 8
  %v315 = vpop.permute.xlu0 %314
  %316 = vrot.lane.b32.xlu0 %v303, 8
  %v317 = vpop.permute.xlu0 %316
  %318 = vrot.lane.b32.xlu0 %v308, 8
  %v319 = vpop.permute.xlu0 %318
  %320 = vrot.lane.b32.xlu0 %v311, 8
  %v321 = vpop.permute.xlu0 %320
  %v326 = vunpack.c.l.b16 %v244
  %v327 = vunpack.c.l.b16 %v245
  %v328 = vunpack.c.l.b16 %v246
  %v329 = vunpack.c.l.b16 %v247
  %v330 = vpack.c.b16 %v327, %v326
  %v331 = vpack.c.b16 %v329, %v328
  %334 = vmatprep.subr.bf16.mxu0 0
  %335 = vmatpush1.bf16.msra.mxu0 %v236
  %336 = vmatprep.subr.bf16.mxu0 0
  %337 = vmatpush1.bf16.msra.mxu0 %v237
  %338 = vmatprep.subr.bf16.mxu0 0
  %339 = vmatpush1.bf16.msra.mxu0 %v238
  %340 = vmatprep.subr.bf16.mxu0 0
  %341 = vmatpush1.bf16.msra.mxu0 %v239
  %342 = vmatprep.subr.bf16.mxu0 0
  %343 = vmatpush1.bf16.msra.mxu0 %v240
  %344 = vmatprep.subr.bf16.mxu0 0
  %345 = vmatpush1.bf16.msra.mxu0 %v241
  %346 = vmatprep.subr.bf16.mxu0 0
  %347 = vmatpush1.bf16.msra.mxu0 %v242
  %348 = vmatprep.subr.bf16.mxu0 0
  %349 = vmatpush1.bf16.msra.mxu0 %v243
  %350 = vmatprep.subr.bf16.mxu0 0
  %351 = vmatpush1.bf16.msra.mxu0 0
  %352 = vmatprep.subr.bf16.mxu0 0
  %353 = vmatpush1.bf16.msra.mxu0 0
  %354 = vmatprep.subr.bf16.mxu0 0
  %355 = vmatpush1.bf16.msra.mxu0 0
  %356 = vmatprep.subr.bf16.mxu0 0
  %357 = vmatpush1.bf16.msra.mxu0 0
  %358 = vmatprep.subr.bf16.mxu0 0
  %359 = vmatpush1.bf16.msra.mxu0 0
  %360 = vmatprep.subr.bf16.mxu0 0
  %361 = vmatpush1.bf16.msra.mxu0 0
  %362 = vmatprep.subr.bf16.mxu0 0
  %363 = vmatpush1.bf16.msra.mxu0 0
  %364 = vmatprep.subr.bf16.mxu0 0
  %365 = vmatpush1.bf16.msra.mxu0 0
  %366 = vmatprep.mubr.bf16.mxu0 0
  %367 = vmatmul.mubr.bf16.gmra.mrb[0].mxu0 %v330
  %v368 = vpop.f32.mrb[0].mxu0
  %v369 = vadd.f32 %v315, %v368
  %v370 = vpop.f32.mrb[0].mxu0
  %v371 = vpop.f32.mrb[0].mxu0
  %v372 = vadd.f32 %v317, %v371
  %v373 = vpop.f32.mrb[0].mxu0
  %374 = vmatprep.mubr.bf16.mxu0 0
  %375 = vmatmul.mubr.bf16.gmra.mrb[0].mxu0 %v331
  %v376 = vpop.f32.mrb[0].mxu0
  %v377 = vadd.f32 %v319, %v376
  %v378 = vpop.f32.mrb[0].mxu0
  %v379 = vpop.f32.mrb[0].mxu0
  %v380 = vadd.f32 %v321, %v379
  %v381 = vpop.f32.mrb[0].mxu0
  %382 = vdwg.mxu0
  %s383 = scalar_lea.vmem %s7, 32
  %v384 = vld [vmem:[%s383] sm:$0xf]
  %v385 = vld [vmem:[%s383 + $0x4] sm:$0xf]
  %v386 = vld [vmem:[%s383 + $0x8] sm:$0xf]
  %v387 = vld [vmem:[%s383 + $0xc] sm:$0xf]
  %v392 = vunpack.c.l.b16 %v384
  %v393 = vunpack.c.l.b16 %v385
  %v394 = vunpack.c.l.b16 %v386
  %v395 = vunpack.c.l.b16 %v387
  %v396 = vpack.c.b16 %v393, %v392
  %v397 = vpack.c.b16 %v395, %v394
  %400 = vmatprep.subr.bf16.mxu0 0
  %401 = vmatpush1.bf16.msra.mxu0 %v236
  %402 = vmatprep.subr.bf16.mxu0 0
  %403 = vmatpush1.bf16.msra.mxu0 %v237
  %404 = vmatprep.subr.bf16.mxu0 0
  %405 = vmatpush1.bf16.msra.mxu0 %v238
  %406 = vmatprep.subr.bf16.mxu0 0
  %407 = vmatpush1.bf16.msra.mxu0 %v239
  %408 = vmatprep.subr.bf16.mxu0 0
  %409 = vmatpush1.bf16.msra.mxu0 %v240
  %410 = vmatprep.subr.bf16.mxu0 0
  %411 = vmatpush1.bf16.msra.mxu0 %v241
  %412 = vmatprep.subr.bf16.mxu0 0
  %413 = vmatpush1.bf16.msra.mxu0 %v242
  %414 = vmatprep.subr.bf16.mxu0 0
  %415 = vmatpush1.bf16.msra.mxu0 %v243
  %416 = vmatprep.subr.bf16.mxu0 0
  %417 = vmatpush1.bf16.msra.mxu0 0
  %418 = vmatprep.subr.bf16.mxu0 0
  %419 = vmatpush1.bf16.msra.mxu0 0
  %420 = vmatprep.subr.bf16.mxu0 0
  %421 = vmatpush1.bf16.msra.mxu0 0
  %422 = vmatprep.subr.bf16.mxu0 0
  %423 = vmatpush1.bf16.msra.mxu0 0
  %424 = vmatprep.subr.bf16.mxu0 0
  %425 = vmatpush1.bf16.msra.mxu0 0
  %426 = vmatprep.subr.bf16.mxu0 0
  %427 = vmatpush1.bf16.msra.mxu0 0
  %428 = vmatprep.subr.bf16.mxu0 0
  %429 = vmatpush1.bf16.msra.mxu0 0
  %430 = vmatprep.subr.bf16.mxu0 0
  %431 = vmatpush1.bf16.msra.mxu0 0
  %432 = vmatprep.mubr.bf16.mxu0 0
  %433 = vmatmul.mubr.bf16.gmra.mrb[0].mxu0 %v396
  %v434 = vpop.f32.mrb[0].mxu0
  %v435 = vadd.f32 0.0, %v434
  %v436 = vpop.f32.mrb[0].mxu0
  %v437 = vpop.f32.mrb[0].mxu0
  %v438 = vadd.f32 0.0, %v437
  %v439 = vpop.f32.mrb[0].mxu0
  %440 = vmatprep.mubr.bf16.mxu0 0
  %441 = vmatmul.mubr.bf16.gmra.mrb[0].mxu0 %v397
  %v442 = vpop.f32.mrb[0].mxu0
  %v443 = vadd.f32 0.0, %v442
  %v444 = vpop.f32.mrb[0].mxu0
  %v445 = vpop.f32.mrb[0].mxu0
  %v446 = vadd.f32 0.0, %v445
  %v447 = vpop.f32.mrb[0].mxu0
  %448 = vdwg.mxu0
  %449 = vrot.lane.b32.xlu0 %v435, 16
  %v450 = vpop.permute.xlu0 %449
  %451 = vrot.lane.b32.xlu0 %v438, 16
  %v452 = vpop.permute.xlu0 %451
  %453 = vrot.lane.b32.xlu0 %v443, 16
  %v454 = vpop.permute.xlu0 %453
  %455 = vrot.lane.b32.xlu0 %v446, 16
  %v456 = vpop.permute.xlu0 %455
  %v457 = vadd.f32 %v369, %v450
  %v458 = vadd.f32 %v372, %v452
  %v459 = vadd.f32 %v377, %v454
  %v460 = vadd.f32 %v380, %v456
  %s461 = scalar_lea.vmem %s7, 48
  %v462 = vld [vmem:[%s461] sm:$0xf]
  %v463 = vld [vmem:[%s461 + $0x4] sm:$0xf]
  %v464 = vld [vmem:[%s461 + $0x8] sm:$0xf]
  %v465 = vld [vmem:[%s461 + $0xc] sm:$0xf]
  %v470 = vunpack.c.l.b16 %v462
  %v471 = vunpack.c.l.b16 %v463
  %v472 = vunpack.c.l.b16 %v464
  %v473 = vunpack.c.l.b16 %v465
  %v474 = vpack.c.b16 %v471, %v470
  %v475 = vpack.c.b16 %v473, %v472
  %478 = vmatprep.subr.bf16.mxu0 0
  %479 = vmatpush1.bf16.msra.mxu0 %v236
  %480 = vmatprep.subr.bf16.mxu0 0
  %481 = vmatpush1.bf16.msra.mxu0 %v237
  %482 = vmatprep.subr.bf16.mxu0 0
  %483 = vmatpush1.bf16.msra.mxu0 %v238
  %484 = vmatprep.subr.bf16.mxu0 0
  %485 = vmatpush1.bf16.msra.mxu0 %v239
  %486 = vmatprep.subr.bf16.mxu0 0
  %487 = vmatpush1.bf16.msra.mxu0 %v240
  %488 = vmatprep.subr.bf16.mxu0 0
  %489 = vmatpush1.bf16.msra.mxu0 %v241
  %490 = vmatprep.subr.bf16.mxu0 0
  %491 = vmatpush1.bf16.msra.mxu0 %v242
  %492 = vmatprep.subr.bf16.mxu0 0
  %493 = vmatpush1.bf16.msra.mxu0 %v243
  %494 = vmatprep.subr.bf16.mxu0 0
  %495 = vmatpush1.bf16.msra.mxu0 0
  %496 = vmatprep.subr.bf16.mxu0 0
  %497 = vmatpush1.bf16.msra.mxu0 0
  %498 = vmatprep.subr.bf16.mxu0 0
  %499 = vmatpush1.bf16.msra.mxu0 0
  %500 = vmatprep.subr.bf16.mxu0 0
  %501 = vmatpush1.bf16.msra.mxu0 0
  %502 = vmatprep.subr.bf16.mxu0 0
  %503 = vmatpush1.bf16.msra.mxu0 0
  %504 = vmatprep.subr.bf16.mxu0 0
  %505 = vmatpush1.bf16.msra.mxu0 0
  %506 = vmatprep.subr.bf16.mxu0 0
  %507 = vmatpush1.bf16.msra.mxu0 0
  %508 = vmatprep.subr.bf16.mxu0 0
  %509 = vmatpush1.bf16.msra.mxu0 0
  %510 = vmatprep.mubr.bf16.mxu0 0
  %511 = vmatmul.mubr.bf16.gmra.mrb[0].mxu0 %v474
  %v512 = vpop.f32.mrb[0].mxu0
  %v513 = vadd.f32 0.0, %v512
  %v514 = vpop.f32.mrb[0].mxu0
  %v515 = vpop.f32.mrb[0].mxu0
  %v516 = vadd.f32 0.0, %v515
  %v517 = vpop.f32.mrb[0].mxu0
  %518 = vmatprep.mubr.bf16.mxu0 0
  %519 = vmatmul.mubr.bf16.gmra.mrb[0].mxu0 %v475
  %v520 = vpop.f32.mrb[0].mxu0
  %v521 = vadd.f32 0.0, %v520
  %v522 = vpop.f32.mrb[0].mxu0
  %v523 = vpop.f32.mrb[0].mxu0
  %v524 = vadd.f32 0.0, %v523
  %v525 = vpop.f32.mrb[0].mxu0
  %526 = vdwg.mxu0
  %527 = vrot.lane.b32.xlu0 %v513, 24
  %v528 = vpop.permute.xlu0 %527
  %529 = vrot.lane.b32.xlu0 %v516, 24
  %v530 = vpop.permute.xlu0 %529
  %531 = vrot.lane.b32.xlu0 %v521, 24
  %v532 = vpop.permute.xlu0 %531
  %533 = vrot.lane.b32.xlu0 %v524, 24
  %v534 = vpop.permute.xlu0 %533
  %v535 = vadd.f32 %v457, %v528
  %v536 = vadd.f32 %v458, %v530
  %v537 = vadd.f32 %v459, %v532
  %v538 = vadd.f32 %v460, %v534
  %s539 = scalar_lea.vmem %s7, 64
  %v540 = vld [vmem:[%s539] sm:$0xf]
  %v541 = vld [vmem:[%s539 + $0x4] sm:$0xf]
  %v542 = vld [vmem:[%s539 + $0x8] sm:$0xf]
  %v543 = vld [vmem:[%s539 + $0xc] sm:$0xf]
  %v548 = vunpack.c.l.b16 %v540
  %v549 = vunpack.c.l.b16 %v541
  %v550 = vunpack.c.l.b16 %v542
  %v551 = vunpack.c.l.b16 %v543
  %v552 = vpack.c.b16 %v549, %v548
  %v553 = vpack.c.b16 %v551, %v550
  %556 = vmatprep.subr.bf16.mxu0 0
  %557 = vmatpush1.bf16.msra.mxu0 %v236
  %558 = vmatprep.subr.bf16.mxu0 0
  %559 = vmatpush1.bf16.msra.mxu0 %v237
  %560 = vmatprep.subr.bf16.mxu0 0
  %561 = vmatpush1.bf16.msra.mxu0 %v238
  %562 = vmatprep.subr.bf16.mxu0 0
  %563 = vmatpush1.bf16.msra.mxu0 %v239
  %564 = vmatprep.subr.bf16.mxu0 0
  %565 = vmatpush1.bf16.msra.mxu0 %v240
  %566 = vmatprep.subr.bf16.mxu0 0
  %567 = vmatpush1.bf16.msra.mxu0 %v241
  %568 = vmatprep.subr.bf16.mxu0 0
  %569 = vmatpush1.bf16.msra.mxu0 %v242
  %570 = vmatprep.subr.bf16.mxu0 0
  %571 = vmatpush1.bf16.msra.mxu0 %v243
  %572 = vmatprep.subr.bf16.mxu0 0
  %573 = vmatpush1.bf16.msra.mxu0 0
  %574 = vmatprep.subr.bf16.mxu0 0
  %575 = vmatpush1.bf16.msra.mxu0 0
  %576 = vmatprep.subr.bf16.mxu0 0
  %577 = vmatpush1.bf16.msra.mxu0 0
  %578 = vmatprep.subr.bf16.mxu0 0
  %579 = vmatpush1.bf16.msra.mxu0 0
  %580 = vmatprep.subr.bf16.mxu0 0
  %581 = vmatpush1.bf16.msra.mxu0 0
  %582 = vmatprep.subr.bf16.mxu0 0
  %583 = vmatpush1.bf16.msra.mxu0 0
  %584 = vmatprep.subr.bf16.mxu0 0
  %585 = vmatpush1.bf16.msra.mxu0 0
  %586 = vmatprep.subr.bf16.mxu0 0
  %587 = vmatpush1.bf16.msra.mxu0 0
  %588 = vmatprep.mubr.bf16.mxu0 0
  %589 = vmatmul.mubr.bf16.gmra.mrb[0].mxu0 %v552
  %v590 = vpop.f32.mrb[0].mxu0
  %v591 = vadd.f32 0.0, %v590
  %v592 = vpop.f32.mrb[0].mxu0
  %v593 = vpop.f32.mrb[0].mxu0
  %v594 = vadd.f32 0.0, %v593
  %v595 = vpop.f32.mrb[0].mxu0
  %596 = vmatprep.mubr.bf16.mxu0 0
  %597 = vmatmul.mubr.bf16.gmra.mrb[0].mxu0 %v553
  %v598 = vpop.f32.mrb[0].mxu0
  %v599 = vadd.f32 0.0, %v598
  %v600 = vpop.f32.mrb[0].mxu0
  %v601 = vpop.f32.mrb[0].mxu0
  %v602 = vadd.f32 0.0, %v601
  %v603 = vpop.f32.mrb[0].mxu0
  %604 = vdwg.mxu0
  %605 = vrot.lane.b32.xlu0 %v591, 32
  %v606 = vpop.permute.xlu0 %605
  %607 = vrot.lane.b32.xlu0 %v594, 32
  %v608 = vpop.permute.xlu0 %607
  %609 = vrot.lane.b32.xlu0 %v599, 32
  %v610 = vpop.permute.xlu0 %609
  %611 = vrot.lane.b32.xlu0 %v602, 32
  %v612 = vpop.permute.xlu0 %611
  %v613 = vadd.f32 %v535, %v606
  %v614 = vadd.f32 %v536, %v608
  %v615 = vadd.f32 %v537, %v610
  %v616 = vadd.f32 %v538, %v612
  %s617 = scalar_lea.vmem %s7, 80
  %v618 = vld [vmem:[%s617] sm:$0xf]
  %v619 = vld [vmem:[%s617 + $0x4] sm:$0xf]
  %v620 = vld [vmem:[%s617 + $0x8] sm:$0xf]
  %v621 = vld [vmem:[%s617 + $0xc] sm:$0xf]
  %v626 = vunpack.c.l.b16 %v618
  %v627 = vunpack.c.l.b16 %v619
  %v628 = vunpack.c.l.b16 %v620
  %v629 = vunpack.c.l.b16 %v621
  %v630 = vpack.c.b16 %v627, %v626
  %v631 = vpack.c.b16 %v629, %v628
  %634 = vmatprep.subr.bf16.mxu0 0
  %635 = vmatpush1.bf16.msra.mxu0 %v236
  %636 = vmatprep.subr.bf16.mxu0 0
  %637 = vmatpush1.bf16.msra.mxu0 %v237
  %638 = vmatprep.subr.bf16.mxu0 0
  %639 = vmatpush1.bf16.msra.mxu0 %v238
  %640 = vmatprep.subr.bf16.mxu0 0
  %641 = vmatpush1.bf16.msra.mxu0 %v239
  %642 = vmatprep.subr.bf16.mxu0 0
  %643 = vmatpush1.bf16.msra.mxu0 %v240
  %644 = vmatprep.subr.bf16.mxu0 0
  %645 = vmatpush1.bf16.msra.mxu0 %v241
  %646 = vmatprep.subr.bf16.mxu0 0
  %647 = vmatpush1.bf16.msra.mxu0 %v242
  %648 = vmatprep.subr.bf16.mxu0 0
  %649 = vmatpush1.bf16.msra.mxu0 %v243
  %650 = vmatprep.subr.bf16.mxu0 0
  %651 = vmatpush1.bf16.msra.mxu0 0
  %652 = vmatprep.subr.bf16.mxu0 0
  %653 = vmatpush1.bf16.msra.mxu0 0
  %654 = vmatprep.subr.bf16.mxu0 0
  %655 = vmatpush1.bf16.msra.mxu0 0
  %656 = vmatprep.subr.bf16.mxu0 0
  %657 = vmatpush1.bf16.msra.mxu0 0
  %658 = vmatprep.subr.bf16.mxu0 0
  %659 = vmatpush1.bf16.msra.mxu0 0
  %660 = vmatprep.subr.bf16.mxu0 0
  %661 = vmatpush1.bf16.msra.mxu0 0
  %662 = vmatprep.subr.bf16.mxu0 0
  %663 = vmatpush1.bf16.msra.mxu0 0
  %664 = vmatprep.subr.bf16.mxu0 0
  %665 = vmatpush1.bf16.msra.mxu0 0
  %666 = vmatprep.mubr.bf16.mxu0 0
  %667 = vmatmul.mubr.bf16.gmra.mrb[0].mxu0 %v630
  %v668 = vpop.f32.mrb[0].mxu0
  %v669 = vadd.f32 0.0, %v668
  %v670 = vpop.f32.mrb[0].mxu0
  %v671 = vpop.f32.mrb[0].mxu0
  %v672 = vadd.f32 0.0, %v671
  %v673 = vpop.f32.mrb[0].mxu0
  %674 = vmatprep.mubr.bf16.mxu0 0
  %675 = vmatmul.mubr.bf16.gmra.mrb[0].mxu0 %v631
  %v676 = vpop.f32.mrb[0].mxu0
  %v677 = vadd.f32 0.0, %v676
  %v678 = vpop.f32.mrb[0].mxu0
  %v679 = vpop.f32.mrb[0].mxu0
  %v680 = vadd.f32 0.0, %v679
  %v681 = vpop.f32.mrb[0].mxu0
  %682 = vdwg.mxu0
  %683 = vrot.lane.b32.xlu0 %v669, 40
  %v684 = vpop.permute.xlu0 %683
  %685 = vrot.lane.b32.xlu0 %v672, 40
  %v686 = vpop.permute.xlu0 %685
  %687 = vrot.lane.b32.xlu0 %v677, 40
  %v688 = vpop.permute.xlu0 %687
  %689 = vrot.lane.b32.xlu0 %v680, 40
  %v690 = vpop.permute.xlu0 %689
  %v691 = vadd.f32 %v613, %v684
  %v692 = vadd.f32 %v614, %v686
  %v693 = vadd.f32 %v615, %v688
  %v694 = vadd.f32 %v616, %v690
  %s695 = scalar_lea.vmem %s7, 96
  %v696 = vld [vmem:[%s695] sm:$0xf]
  %v697 = vld [vmem:[%s695 + $0x4] sm:$0xf]
  %v698 = vld [vmem:[%s695 + $0x8] sm:$0xf]
  %v699 = vld [vmem:[%s695 + $0xc] sm:$0xf]
  %v704 = vunpack.c.l.b16 %v696
  %v705 = vunpack.c.l.b16 %v697
  %v706 = vunpack.c.l.b16 %v698
  %v707 = vunpack.c.l.b16 %v699
  %v708 = vpack.c.b16 %v705, %v704
  %v709 = vpack.c.b16 %v707, %v706
  %712 = vmatprep.subr.bf16.mxu0 0
  %713 = vmatpush1.bf16.msra.mxu0 %v236
  %714 = vmatprep.subr.bf16.mxu0 0
  %715 = vmatpush1.bf16.msra.mxu0 %v237
  %716 = vmatprep.subr.bf16.mxu0 0
  %717 = vmatpush1.bf16.msra.mxu0 %v238
  %718 = vmatprep.subr.bf16.mxu0 0
  %719 = vmatpush1.bf16.msra.mxu0 %v239
  %720 = vmatprep.subr.bf16.mxu0 0
  %721 = vmatpush1.bf16.msra.mxu0 %v240
  %722 = vmatprep.subr.bf16.mxu0 0
  %723 = vmatpush1.bf16.msra.mxu0 %v241
  %724 = vmatprep.subr.bf16.mxu0 0
  %725 = vmatpush1.bf16.msra.mxu0 %v242
  %726 = vmatprep.subr.bf16.mxu0 0
  %727 = vmatpush1.bf16.msra.mxu0 %v243
  %728 = vmatprep.subr.bf16.mxu0 0
  %729 = vmatpush1.bf16.msra.mxu0 0
  %730 = vmatprep.subr.bf16.mxu0 0
  %731 = vmatpush1.bf16.msra.mxu0 0
  %732 = vmatprep.subr.bf16.mxu0 0
  %733 = vmatpush1.bf16.msra.mxu0 0
  %734 = vmatprep.subr.bf16.mxu0 0
  %735 = vmatpush1.bf16.msra.mxu0 0
  %736 = vmatprep.subr.bf16.mxu0 0
  %737 = vmatpush1.bf16.msra.mxu0 0
  %738 = vmatprep.subr.bf16.mxu0 0
  %739 = vmatpush1.bf16.msra.mxu0 0
  %740 = vmatprep.subr.bf16.mxu0 0
  %741 = vmatpush1.bf16.msra.mxu0 0
  %742 = vmatprep.subr.bf16.mxu0 0
  %743 = vmatpush1.bf16.msra.mxu0 0
  %744 = vmatprep.mubr.bf16.mxu0 0
  %745 = vmatmul.mubr.bf16.gmra.mrb[0].mxu0 %v708
  %v746 = vpop.f32.mrb[0].mxu0
  %v747 = vadd.f32 0.0, %v746
  %v748 = vpop.f32.mrb[0].mxu0
  %v749 = vpop.f32.mrb[0].mxu0
  %v750 = vadd.f32 0.0, %v749
  %v751 = vpop.f32.mrb[0].mxu0
  %752 = vmatprep.mubr.bf16.mxu0 0
  %753 = vmatmul.mubr.bf16.gmra.mrb[0].mxu0 %v709
  %v754 = vpop.f32.mrb[0].mxu0
  %v755 = vadd.f32 0.0, %v754
  %v756 = vpop.f32.mrb[0].mxu0
  %v757 = vpop.f32.mrb[0].mxu0
  %v758 = vadd.f32 0.0, %v757
  %v759 = vpop.f32.mrb[0].mxu0
  %760 = vdwg.mxu0
  %761 = vrot.lane.b32.xlu0 %v747, 48
  %v762 = vpop.permute.xlu0 %761
  %763 = vrot.lane.b32.xlu0 %v750, 48
  %v764 = vpop.permute.xlu0 %763
  %765 = vrot.lane.b32.xlu0 %v755, 48
  %v766 = vpop.permute.xlu0 %765
  %767 = vrot.lane.b32.xlu0 %v758, 48
  %v768 = vpop.permute.xlu0 %767
  %v769 = vadd.f32 %v691, %v762
  %v770 = vadd.f32 %v692, %v764
  %v771 = vadd.f32 %v693, %v766
  %v772 = vadd.f32 %v694, %v768
  %s773 = scalar_lea.vmem %s7, 112
  %v774 = vld [vmem:[%s773] sm:$0xf]
  %v775 = vld [vmem:[%s773 + $0x4] sm:$0xf]
  %v776 = vld [vmem:[%s773 + $0x8] sm:$0xf]
  %v777 = vld [vmem:[%s773 + $0xc] sm:$0xf]
  %v782 = vunpack.c.l.b16 %v774
  %v783 = vunpack.c.l.b16 %v775
  %v784 = vunpack.c.l.b16 %v776
  %v785 = vunpack.c.l.b16 %v777
  %v786 = vpack.c.b16 %v783, %v782
  %v787 = vpack.c.b16 %v785, %v784
  %790 = vmatprep.subr.bf16.mxu0 0
  %791 = vmatpush1.bf16.msra.mxu0 %v236
  %792 = vmatprep.subr.bf16.mxu0 0
  %793 = vmatpush1.bf16.msra.mxu0 %v237
  %794 = vmatprep.subr.bf16.mxu0 0
  %795 = vmatpush1.bf16.msra.mxu0 %v238
  %796 = vmatprep.subr.bf16.mxu0 0
  %797 = vmatpush1.bf16.msra.mxu0 %v239
  %798 = vmatprep.subr.bf16.mxu0 0
  %799 = vmatpush1.bf16.msra.mxu0 %v240
  %800 = vmatprep.subr.bf16.mxu0 0
  %801 = vmatpush1.bf16.msra.mxu0 %v241
  %802 = vmatprep.subr.bf16.mxu0 0
  %803 = vmatpush1.bf16.msra.mxu0 %v242
  %804 = vmatprep.subr.bf16.mxu0 0
  %805 = vmatpush1.bf16.msra.mxu0 %v243
  %806 = vmatprep.subr.bf16.mxu0 0
  %807 = vmatpush1.bf16.msra.mxu0 0
  %808 = vmatprep.subr.bf16.mxu0 0
  %809 = vmatpush1.bf16.msra.mxu0 0
  %810 = vmatprep.subr.bf16.mxu0 0
  %811 = vmatpush1.bf16.msra.mxu0 0
  %812 = vmatprep.subr.bf16.mxu0 0
  %813 = vmatpush1.bf16.msra.mxu0 0
  %814 = vmatprep.subr.bf16.mxu0 0
  %815 = vmatpush1.bf16.msra.mxu0 0
  %816 = vmatprep.subr.bf16.mxu0 0
  %817 = vmatpush1.bf16.msra.mxu0 0
  %818 = vmatprep.subr.bf16.mxu0 0
  %819 = vmatpush1.bf16.msra.mxu0 0
  %820 = vmatprep.subr.bf16.mxu0 0
  %821 = vmatpush1.bf16.msra.mxu0 0
  %822 = vmatprep.mubr.bf16.mxu0 0
  %823 = vmatmul.mubr.bf16.gmra.mrb[0].mxu0 %v786
  %v824 = vpop.f32.mrb[0].mxu0
  %v825 = vadd.f32 0.0, %v824
  %v826 = vpop.f32.mrb[0].mxu0
  %v827 = vpop.f32.mrb[0].mxu0
  %v828 = vadd.f32 0.0, %v827
  %v829 = vpop.f32.mrb[0].mxu0
  %830 = vmatprep.mubr.bf16.mxu0 0
  %831 = vmatmul.mubr.bf16.gmra.mrb[0].mxu0 %v787
  %v832 = vpop.f32.mrb[0].mxu0
  %v833 = vadd.f32 0.0, %v832
  %v834 = vpop.f32.mrb[0].mxu0
  %v835 = vpop.f32.mrb[0].mxu0
  %v836 = vadd.f32 0.0, %v835
  %v837 = vpop.f32.mrb[0].mxu0
  %838 = vdwg.mxu0
  %839 = vrot.lane.b32.xlu0 %v825, 56
  %v840 = vpop.permute.xlu0 %839
  %841 = vrot.lane.b32.xlu0 %v828, 56
  %v842 = vpop.permute.xlu0 %841
  %843 = vrot.lane.b32.xlu0 %v833, 56
  %v844 = vpop.permute.xlu0 %843
  %845 = vrot.lane.b32.xlu0 %v836, 56
  %v846 = vpop.permute.xlu0 %845
  %v847 = vadd.f32 %v769, %v840
  %v848 = vadd.f32 %v770, %v842
  %v849 = vadd.f32 %v771, %v844
  %v850 = vadd.f32 %v772, %v846
  %s851 = scalar_lea.vmem %s7, 128
  %v852 = vld [vmem:[%s851] sm:$0xf]
  %v853 = vld [vmem:[%s851 + $0x4] sm:$0xf]
  %v854 = vld [vmem:[%s851 + $0x8] sm:$0xf]
  %v855 = vld [vmem:[%s851 + $0xc] sm:$0xf]
  %v860 = vunpack.c.l.b16 %v852
  %v861 = vunpack.c.l.b16 %v853
  %v862 = vunpack.c.l.b16 %v854
  %v863 = vunpack.c.l.b16 %v855
  %v864 = vpack.c.b16 %v861, %v860
  %v865 = vpack.c.b16 %v863, %v862
  %868 = vmatprep.subr.bf16.mxu0 0
  %869 = vmatpush1.bf16.msra.mxu0 %v236
  %870 = vmatprep.subr.bf16.mxu0 0
  %871 = vmatpush1.bf16.msra.mxu0 %v237
  %872 = vmatprep.subr.bf16.mxu0 0
  %873 = vmatpush1.bf16.msra.mxu0 %v238
  %874 = vmatprep.subr.bf16.mxu0 0
  %875 = vmatpush1.bf16.msra.mxu0 %v239
  %876 = vmatprep.subr.bf16.mxu0 0
  %877 = vmatpush1.bf16.msra.mxu0 %v240
  %878 = vmatprep.subr.bf16.mxu0 0
  %879 = vmatpush1.bf16.msra.mxu0 %v241
  %880 = vmatprep.subr.bf16.mxu0 0
  %881 = vmatpush1.bf16.msra.mxu0 %v242
  %882 = vmatprep.subr.bf16.mxu0 0
  %883 = vmatpush1.bf16.msra.mxu0 %v243
  %884 = vmatprep.subr.bf16.mxu0 0
  %885 = vmatpush1.bf16.msra.mxu0 0
  %886 = vmatprep.subr.bf16.mxu0 0
  %887 = vmatpush1.bf16.msra.mxu0 0
  %888 = vmatprep.subr.bf16.mxu0 0
  %889 = vmatpush1.bf16.msra.mxu0 0
  %890 = vmatprep.subr.bf16.mxu0 0
  %891 = vmatpush1.bf16.msra.mxu0 0
  %892 = vmatprep.subr.bf16.mxu0 0
  %893 = vmatpush1.bf16.msra.mxu0 0
  %894 = vmatprep.subr.bf16.mxu0 0
  %895 = vmatpush1.bf16.msra.mxu0 0
  %896 = vmatprep.subr.bf16.mxu0 0
  %897 = vmatpush1.bf16.msra.mxu0 0
  %898 = vmatprep.subr.bf16.mxu0 0
  %899 = vmatpush1.bf16.msra.mxu0 0
  %900 = vmatprep.mubr.bf16.mxu0 0
  %901 = vmatmul.mubr.bf16.gmra.mrb[0].mxu0 %v864
  %v902 = vpop.f32.mrb[0].mxu0
  %v903 = vadd.f32 0.0, %v902
  %v904 = vpop.f32.mrb[0].mxu0
  %v905 = vpop.f32.mrb[0].mxu0
  %v906 = vadd.f32 0.0, %v905
  %v907 = vpop.f32.mrb[0].mxu0
  %908 = vmatprep.mubr.bf16.mxu0 0
  %909 = vmatmul.mubr.bf16.gmra.mrb[0].mxu0 %v865
  %v910 = vpop.f32.mrb[0].mxu0
  %v911 = vadd.f32 0.0, %v910
  %v912 = vpop.f32.mrb[0].mxu0
  %v913 = vpop.f32.mrb[0].mxu0
  %v914 = vadd.f32 0.0, %v913
  %v915 = vpop.f32.mrb[0].mxu0
  %916 = vdwg.mxu0
  %917 = vrot.lane.b32.xlu0 %v903, 64
  %v918 = vpop.permute.xlu0 %917
  %919 = vrot.lane.b32.xlu0 %v906, 64
  %v920 = vpop.permute.xlu0 %919
  %921 = vrot.lane.b32.xlu0 %v911, 64
  %v922 = vpop.permute.xlu0 %921
  %923 = vrot.lane.b32.xlu0 %v914, 64
  %v924 = vpop.permute.xlu0 %923
  %v925 = vadd.f32 %v847, %v918
  %v926 = vadd.f32 %v848, %v920
  %v927 = vadd.f32 %v849, %v922
  %v928 = vadd.f32 %v850, %v924
  %v929 = vpack.c.bf16 %v926, %v925
  %v930 = vpack.c.bf16 %v928, %v927
  %v931 = vld [vmem:[%s3] sm:$0xf]
  %v932 = vld [vmem:[%s3 + $0x4] sm:$0xf]
  %v933 = vld [vmem:[%s3 + $0x8] sm:$0xf]
  %v934 = vld [vmem:[%s3 + $0xc] sm:$0xf]
  %v935 = vld [vmem:[%s3 + $0x10] sm:$0xf]
  %v936 = vld [vmem:[%s3 + $0x14] sm:$0xf]
  %v937 = vld [vmem:[%s3 + $0x18] sm:$0xf]
  %v938 = vld [vmem:[%s3 + $0x1c] sm:$0xf]
  %v939 = vld [vmem:[%s3 + $0x20] sm:$0xf]
  %v940 = vld [vmem:[%s3 + $0x24] sm:$0xf]
  %v941 = vld [vmem:[%s3 + $0x28] sm:$0xf]
  %v942 = vld [vmem:[%s3 + $0x2c] sm:$0xf]
  %v943 = vld [vmem:[%s3 + $0x30] sm:$0xf]
  %v944 = vld [vmem:[%s3 + $0x34] sm:$0xf]
  %v945 = vld [vmem:[%s3 + $0x38] sm:$0xf]
  %v946 = vld [vmem:[%s3 + $0x3c] sm:$0xf]
  %v947 = vld [vmem:[%s4] sm:$0x1]
  %v949 = vlaneseq
  %v950 = vshrl.u32 %v949, 7
  %v951 = vsub.s32 0, %v950
  %v952 = vrot.slane %v947, %v951
  %v970 = vunpack.c.l.b16 %v931
  %v971 = vunpack.c.l.b16 %v932
  %v972 = vunpack.c.l.b16 %v933
  %v973 = vunpack.c.l.b16 %v934
  %v974 = vunpack.c.l.b16 %v935
  %v975 = vunpack.c.l.b16 %v936
  %v976 = vunpack.c.l.b16 %v937
  %v977 = vunpack.c.l.b16 %v938
  %v978 = vunpack.c.l.b16 %v939
  %v979 = vunpack.c.l.b16 %v940
  %v980 = vunpack.c.l.b16 %v941
  %v981 = vunpack.c.l.b16 %v942
  %v982 = vunpack.c.l.b16 %v943
  %v983 = vunpack.c.l.b16 %v944
  %v984 = vunpack.c.l.b16 %v945
  %v985 = vunpack.c.l.b16 %v946
  %v986 = vpack.c.b16 %v971, %v970
  %v987 = vpack.c.b16 %v973, %v972
  %v988 = vpack.c.b16 %v975, %v974
  %v989 = vpack.c.b16 %v977, %v976
  %v990 = vpack.c.b16 %v979, %v978
  %v991 = vpack.c.b16 %v981, %v980
  %v992 = vpack.c.b16 %v983, %v982
  %v993 = vpack.c.b16 %v985, %v984
  %1002 = vmatprep.subr.bf16.mxu0 0
  %1003 = vmatpush1.bf16.msra.mxu0 %v986
  %1004 = vmatprep.subr.bf16.mxu0 0
  %1005 = vmatpush1.bf16.msra.mxu0 %v987
  %1006 = vmatprep.subr.bf16.mxu0 0
  %1007 = vmatpush1.bf16.msra.mxu0 %v988
  %1008 = vmatprep.subr.bf16.mxu0 0
  %1009 = vmatpush1.bf16.msra.mxu0 %v989
  %1010 = vmatprep.subr.bf16.mxu0 0
  %1011 = vmatpush1.bf16.msra.mxu0 %v990
  %1012 = vmatprep.subr.bf16.mxu0 0
  %1013 = vmatpush1.bf16.msra.mxu0 %v991
  %1014 = vmatprep.subr.bf16.mxu0 0
  %1015 = vmatpush1.bf16.msra.mxu0 %v992
  %1016 = vmatprep.subr.bf16.mxu0 0
  %1017 = vmatpush1.bf16.msra.mxu0 %v993
  %1018 = vmatprep.subr.bf16.mxu0 0
  %1019 = vmatpush1.bf16.msra.mxu0 0
  %1020 = vmatprep.subr.bf16.mxu0 0
  %1021 = vmatpush1.bf16.msra.mxu0 0
  %1022 = vmatprep.subr.bf16.mxu0 0
  %1023 = vmatpush1.bf16.msra.mxu0 0
  %1024 = vmatprep.subr.bf16.mxu0 0
  %1025 = vmatpush1.bf16.msra.mxu0 0
  %1026 = vmatprep.subr.bf16.mxu0 0
  %1027 = vmatpush1.bf16.msra.mxu0 0
  %1028 = vmatprep.subr.bf16.mxu0 0
  %1029 = vmatpush1.bf16.msra.mxu0 0
  %1030 = vmatprep.subr.bf16.mxu0 0
  %1031 = vmatpush1.bf16.msra.mxu0 0
  %1032 = vmatprep.subr.bf16.mxu0 0
  %1033 = vmatpush1.bf16.msra.mxu0 0
  %1034 = vmatprep.mubr.bf16.mxu0 0
  %1035 = vmatmul.mubr.bf16.gmra.mrb[0].mxu0 %v929
  %v1036 = vpop.f32.mrb[0].mxu0
  %v1037 = vadd.f32 %v952, %v1036
  %v1038 = vpop.f32.mrb[0].mxu0
  %v1039 = vpop.f32.mrb[0].mxu0
  %v1040 = vadd.f32 %v952, %v1039
  %v1041 = vpop.f32.mrb[0].mxu0
  %1042 = vmatprep.mubr.bf16.mxu0 0
  %1043 = vmatmul.mubr.bf16.gmra.mrb[0].mxu0 %v930
  %v1044 = vpop.f32.mrb[0].mxu0
  %v1045 = vadd.f32 %v952, %v1044
  %v1046 = vpop.f32.mrb[0].mxu0
  %v1047 = vpop.f32.mrb[0].mxu0
  %v1048 = vadd.f32 %v952, %v1047
  %v1049 = vpop.f32.mrb[0].mxu0
  %1050 = vdwg.mxu0
  %v1051 = vmax.f32 %v1037, 0.0
  %v1052 = vmax.f32 %v1040, 0.0
  %v1053 = vmax.f32 %v1045, 0.0
  %v1054 = vmax.f32 %v1048, 0.0
  %v1055 = vpack.c.bf16 %v1052, %v1051
  %v1056 = vpack.c.bf16 %v1054, %v1053
  %v1057 = vld [vmem:[%s5] sm:$0xf]
  %v1058 = vld [vmem:[%s6] sm:$0x1]
  %v1060 = vlaneseq
  %v1061 = vshrl.u32 %v1060, 7
  %v1062 = vsub.s32 0, %v1061
  %v1063 = vrot.slane %v1058, %v1062
  %vm1065 = vcmask 64512
  %v1067 = vsel %vm1065, %v1055, 0
  %v1070 = vsel %vm1065, %v1056, 0
  %vm1072 = vcmask 1043456
  %v1074 = vsel %vm1072, %v1057, 0
  %1076 = vmatprep.subr.bf16.mxu0 0
  %1077 = vmatpush1.bf16.msra.mxu0 %v1074
  %1078 = vmatprep.subr.bf16.mxu0 0
  %1079 = vmatpush1.bf16.msra.mxu0 0
  %1080 = vmatprep.subr.bf16.mxu0 0
  %1081 = vmatpush1.bf16.msra.mxu0 0
  %1082 = vmatprep.subr.bf16.mxu0 0
  %1083 = vmatpush1.bf16.msra.mxu0 0
  %1084 = vmatprep.subr.bf16.mxu0 0
  %1085 = vmatpush1.bf16.msra.mxu0 0
  %1086 = vmatprep.subr.bf16.mxu0 0
  %1087 = vmatpush1.bf16.msra.mxu0 0
  %1088 = vmatprep.subr.bf16.mxu0 0
  %1089 = vmatpush1.bf16.msra.mxu0 0
  %1090 = vmatprep.subr.bf16.mxu0 0
  %1091 = vmatpush1.bf16.msra.mxu0 0
  %1092 = vmatprep.subr.bf16.mxu0 0
  %1093 = vmatpush1.bf16.msra.mxu0 0
  %1094 = vmatprep.subr.bf16.mxu0 0
  %1095 = vmatpush1.bf16.msra.mxu0 0
  %1096 = vmatprep.subr.bf16.mxu0 0
  %1097 = vmatpush1.bf16.msra.mxu0 0
  %1098 = vmatprep.subr.bf16.mxu0 0
  %1099 = vmatpush1.bf16.msra.mxu0 0
  %1100 = vmatprep.subr.bf16.mxu0 0
  %1101 = vmatpush1.bf16.msra.mxu0 0
  %1102 = vmatprep.subr.bf16.mxu0 0
  %1103 = vmatpush1.bf16.msra.mxu0 0
  %1104 = vmatprep.subr.bf16.mxu0 0
  %1105 = vmatpush1.bf16.msra.mxu0 0
  %1106 = vmatprep.subr.bf16.mxu0 0
  %1107 = vmatpush1.bf16.msra.mxu0 0
  %1108 = vmatprep.mubr.bf16.mxu0 0
  %1109 = vmatmul.mubr.bf16.gmra.mrb[0].mxu0 %v1067
  %v1110 = vpop.f32.mrb[0].mxu0
  %v1111 = vadd.f32 %v1063, %v1110
  %v1112 = vpop.f32.mrb[0].mxu0
  %v1113 = vpop.f32.mrb[0].mxu0
  %v1114 = vadd.f32 %v1063, %v1113
  %v1115 = vpop.f32.mrb[0].mxu0
  %1116 = vmatprep.mubr.bf16.mxu0 0
  %1117 = vmatmul.mubr.bf16.gmra.mrb[0].mxu0 %v1070
  %v1118 = vpop.f32.mrb[0].mxu0
  %v1119 = vadd.f32 %v1063, %v1118
  %v1120 = vpop.f32.mrb[0].mxu0
  %v1121 = vpop.f32.mrb[0].mxu0
  %v1122 = vadd.f32 %v1063, %v1121
  %v1123 = vpop.f32.mrb[0].mxu0
  %1124 = vdwg.mxu0
  %v1125 = vld [vmem:[%s8] sm:$0xf]
  %v1126 = vld [vmem:[%s8 + $0x4] sm:$0xf]
  %v1127 = vld [vmem:[%s8 + $0x8] sm:$0xf]
  %v1128 = vld [vmem:[%s8 + $0xc] sm:$0xf]
  %v1133 = vunpack.c.l.b16 %v1125
  %v1134 = vunpack.c.l.b16 %v1126
  %v1135 = vunpack.c.l.b16 %v1127
  %v1136 = vunpack.c.l.b16 %v1128
  %v1137 = vpack.c.b16 %v1134, %v1133
  %v1138 = vpack.c.b16 %v1136, %v1135
  %1141 = vmatprep.subr.bf16.mxu0 0
  %1142 = vmatpush1.bf16.msra.mxu0 %v67
  %1143 = vmatprep.subr.bf16.mxu0 0
  %1144 = vmatpush1.bf16.msra.mxu0 %v68
  %1145 = vmatprep.subr.bf16.mxu0 0
  %1146 = vmatpush1.bf16.msra.mxu0 %v69
  %1147 = vmatprep.subr.bf16.mxu0 0
  %1148 = vmatpush1.bf16.msra.mxu0 %v70
  %1149 = vmatprep.subr.bf16.mxu0 0
  %1150 = vmatpush1.bf16.msra.mxu0 %v71
  %1151 = vmatprep.subr.bf16.mxu0 0
  %1152 = vmatpush1.bf16.msra.mxu0 %v72
  %1153 = vmatprep.subr.bf16.mxu0 0
  %1154 = vmatpush1.bf16.msra.mxu0 %v73
  %1155 = vmatprep.subr.bf16.mxu0 0
  %1156 = vmatpush1.bf16.msra.mxu0 %v74
  %1157 = vmatprep.subr.bf16.mxu0 0
  %1158 = vmatpush1.bf16.msra.mxu0 0
  %1159 = vmatprep.subr.bf16.mxu0 0
  %1160 = vmatpush1.bf16.msra.mxu0 0
  %1161 = vmatprep.subr.bf16.mxu0 0
  %1162 = vmatpush1.bf16.msra.mxu0 0
  %1163 = vmatprep.subr.bf16.mxu0 0
  %1164 = vmatpush1.bf16.msra.mxu0 0
  %1165 = vmatprep.subr.bf16.mxu0 0
  %1166 = vmatpush1.bf16.msra.mxu0 0
  %1167 = vmatprep.subr.bf16.mxu0 0
  %1168 = vmatpush1.bf16.msra.mxu0 0
  %1169 = vmatprep.subr.bf16.mxu0 0
  %1170 = vmatpush1.bf16.msra.mxu0 0
  %1171 = vmatprep.subr.bf16.mxu0 0
  %1172 = vmatpush1.bf16.msra.mxu0 0
  %1173 = vmatprep.mubr.bf16.mxu0 0
  %1174 = vmatmul.mubr.bf16.gmra.mrb[0].mxu0 %v1137
  %v1175 = vpop.f32.mrb[0].mxu0
  %v1176 = vadd.f32 0.0, %v1175
  %v1177 = vpop.f32.mrb[0].mxu0
  %v1178 = vpop.f32.mrb[0].mxu0
  %v1179 = vadd.f32 0.0, %v1178
  %v1180 = vpop.f32.mrb[0].mxu0
  %1181 = vmatprep.mubr.bf16.mxu0 0
  %1182 = vmatmul.mubr.bf16.gmra.mrb[0].mxu0 %v1138
  %v1183 = vpop.f32.mrb[0].mxu0
  %v1184 = vadd.f32 0.0, %v1183
  %v1185 = vpop.f32.mrb[0].mxu0
  %v1186 = vpop.f32.mrb[0].mxu0
  %v1187 = vadd.f32 0.0, %v1186
  %v1188 = vpop.f32.mrb[0].mxu0
  %1189 = vdwg.mxu0
  %v1190 = vpack.c.bf16 %v1179, %v1176
  %v1191 = vpack.c.bf16 %v1187, %v1184
  %v1192 = vld [vmem:[%s9] sm:$0xf]
  %v1193 = vld [vmem:[%s9 + $0x4] sm:$0xf]
  %v1194 = vld [vmem:[%s10] sm:$0x1]
  %v1196 = vlaneseq
  %v1197 = vshrl.u32 %v1196, 7
  %v1198 = vsub.s32 0, %v1197
  %v1199 = vrot.slane %v1194, %v1198
  %v1203 = vunpack.c.l.b16 %v1192
  %v1204 = vunpack.c.l.b16 %v1193
  %v1205 = vpack.c.b16 %v1204, %v1203
  %vm1207 = vcmask 130048
  %v1209 = vsel %vm1207, %v1190, 0
  %v1212 = vsel %vm1207, %v1191, 0
  %1214 = vmatprep.subr.bf16.mxu0 0
  %1215 = vmatpush1.bf16.msra.mxu0 %v1205
  %1216 = vmatprep.subr.bf16.mxu0 0
  %1217 = vmatpush1.bf16.msra.mxu0 0
  %1218 = vmatprep.subr.bf16.mxu0 0
  %1219 = vmatpush1.bf16.msra.mxu0 0
  %1220 = vmatprep.subr.bf16.mxu0 0
  %1221 = vmatpush1.bf16.msra.mxu0 0
  %1222 = vmatprep.subr.bf16.mxu0 0
  %1223 = vmatpush1.bf16.msra.mxu0 0
  %1224 = vmatprep.subr.bf16.mxu0 0
  %1225 = vmatpush1.bf16.msra.mxu0 0
  %1226 = vmatprep.subr.bf16.mxu0 0
  %1227 = vmatpush1.bf16.msra.mxu0 0
  %1228 = vmatprep.subr.bf16.mxu0 0
  %1229 = vmatpush1.bf16.msra.mxu0 0
  %1230 = vmatprep.subr.bf16.mxu0 0
  %1231 = vmatpush1.bf16.msra.mxu0 0
  %1232 = vmatprep.subr.bf16.mxu0 0
  %1233 = vmatpush1.bf16.msra.mxu0 0
  %1234 = vmatprep.subr.bf16.mxu0 0
  %1235 = vmatpush1.bf16.msra.mxu0 0
  %1236 = vmatprep.subr.bf16.mxu0 0
  %1237 = vmatpush1.bf16.msra.mxu0 0
  %1238 = vmatprep.subr.bf16.mxu0 0
  %1239 = vmatpush1.bf16.msra.mxu0 0
  %1240 = vmatprep.subr.bf16.mxu0 0
  %1241 = vmatpush1.bf16.msra.mxu0 0
  %1242 = vmatprep.subr.bf16.mxu0 0
  %1243 = vmatpush1.bf16.msra.mxu0 0
  %1244 = vmatprep.subr.bf16.mxu0 0
  %1245 = vmatpush1.bf16.msra.mxu0 0
  %1246 = vmatprep.mubr.bf16.mxu0 0
  %1247 = vmatmul.mubr.bf16.gmra.mrb[0].mxu0 %v1209
  %v1248 = vpop.f32.mrb[0].mxu0
  %v1249 = vadd.f32 %v1199, %v1248
  %v1250 = vpop.f32.mrb[0].mxu0
  %v1251 = vpop.f32.mrb[0].mxu0
  %v1252 = vadd.f32 %v1199, %v1251
  %v1253 = vpop.f32.mrb[0].mxu0
  %1254 = vmatprep.mubr.bf16.mxu0 0
  %1255 = vmatmul.mubr.bf16.gmra.mrb[0].mxu0 %v1212
  %v1256 = vpop.f32.mrb[0].mxu0
  %v1257 = vadd.f32 %v1199, %v1256
  %v1258 = vpop.f32.mrb[0].mxu0
  %v1259 = vpop.f32.mrb[0].mxu0
  %v1260 = vadd.f32 %v1199, %v1259
  %v1261 = vpop.f32.mrb[0].mxu0
  %1262 = vdwg.mxu0
  %v1263 = vadd.f32 %v1111, %v1249
  %v1264 = vadd.f32 %v1114, %v1252
  %v1265 = vadd.f32 %v1119, %v1257
  %v1266 = vadd.f32 %v1122, %v1260
  %v1267 = vmax.f32 %v1263, 0.0
  %v1268 = vmax.f32 %v1264, 0.0
  %v1269 = vmax.f32 %v1265, 0.0
  %v1270 = vmax.f32 %v1266, 0.0
  %v1271 = vpack.c.bf16 %v1268, %v1267
  %v1272 = vpack.c.bf16 %v1270, %v1269
  %s1273 = scalar_lea.vmem %s1, 16
  %v1274 = vld [vmem:[%s1273] sm:$0xf]
  %v1275 = vld [vmem:[%s1273 + $0x4] sm:$0xf]
  %v1276 = vld [vmem:[%s1273 + $0x8] sm:$0xf]
  %v1277 = vld [vmem:[%s1273 + $0xc] sm:$0xf]
  %s1278 = scalar_lea.vmem %s2, 1
  %v1279 = vld [vmem:[%s1278] sm:$0x1]
  %v1281 = vlaneseq
  %v1282 = vshrl.u32 %v1281, 7
  %v1283 = vsub.s32 0, %v1282
  %v1284 = vrot.slane %v1279, %v1283
  %v1290 = vunpack.c.l.b16 %v1274
  %v1291 = vunpack.c.l.b16 %v1275
  %v1292 = vunpack.c.l.b16 %v1276
  %v1293 = vunpack.c.l.b16 %v1277
  %v1294 = vpack.c.b16 %v1291, %v1290
  %v1295 = vpack.c.b16 %v1293, %v1292
  %v1299 = vsel %vm98, %v1271, 0
  %v1302 = vsel %vm98, %v1272, 0
  %1304 = vmatprep.subr.bf16.mxu0 0
  %1305 = vmatpush1.bf16.msra.mxu0 %v1294
  %1306 = vmatprep.subr.bf16.mxu0 0
  %1307 = vmatpush1.bf16.msra.mxu0 %v1295
  %1308 = vmatprep.subr.bf16.mxu0 0
  %1309 = vmatpush1.bf16.msra.mxu0 0
  %1310 = vmatprep.subr.bf16.mxu0 0
  %1311 = vmatpush1.bf16.msra.mxu0 0
  %1312 = vmatprep.subr.bf16.mxu0 0
  %1313 = vmatpush1.bf16.msra.mxu0 0
  %1314 = vmatprep.subr.bf16.mxu0 0
  %1315 = vmatpush1.bf16.msra.mxu0 0
  %1316 = vmatprep.subr.bf16.mxu0 0
  %1317 = vmatpush1.bf16.msra.mxu0 0
  %1318 = vmatprep.subr.bf16.mxu0 0
  %1319 = vmatpush1.bf16.msra.mxu0 0
  %1320 = vmatprep.subr.bf16.mxu0 0
  %1321 = vmatpush1.bf16.msra.mxu0 0
  %1322 = vmatprep.subr.bf16.mxu0 0
  %1323 = vmatpush1.bf16.msra.mxu0 0
  %1324 = vmatprep.subr.bf16.mxu0 0
  %1325 = vmatpush1.bf16.msra.mxu0 0
  %1326 = vmatprep.subr.bf16.mxu0 0
  %1327 = vmatpush1.bf16.msra.mxu0 0
  %1328 = vmatprep.subr.bf16.mxu0 0
  %1329 = vmatpush1.bf16.msra.mxu0 0
  %1330 = vmatprep.subr.bf16.mxu0 0
  %1331 = vmatpush1.bf16.msra.mxu0 0
  %1332 = vmatprep.subr.bf16.mxu0 0
  %1333 = vmatpush1.bf16.msra.mxu0 0
  %1334 = vmatprep.subr.bf16.mxu0 0
  %1335 = vmatpush1.bf16.msra.mxu0 0
  %1336 = vmatprep.mubr.bf16.mxu0 0
  %1337 = vmatmul.mubr.bf16.gmra.mrb[0].mxu0 %v1299
  %v1338 = vpop.f32.mrb[0].mxu0
  %v1339 = vadd.f32 %v1284, %v1338
  %v1340 = vpop.f32.mrb[0].mxu0
  %v1341 = vpop.f32.mrb[0].mxu0
  %v1342 = vadd.f32 %v1284, %v1341
  %v1343 = vpop.f32.mrb[0].mxu0
  %1344 = vmatprep.mubr.bf16.mxu0 0
  %1345 = vmatmul.mubr.bf16.gmra.mrb[0].mxu0 %v1302
  %v1346 = vpop.f32.mrb[0].mxu0
  %v1347 = vadd.f32 %v1284, %v1346
  %v1348 = vpop.f32.mrb[0].mxu0
  %v1349 = vpop.f32.mrb[0].mxu0
  %v1350 = vadd.f32 %v1284, %v1349
  %v1351 = vpop.f32.mrb[0].mxu0
  %1352 = vdwg.mxu0
  %v1353 = vmax.f32 %v1339, 0.0
  %v1354 = vmax.f32 %v1342, 0.0
  %v1355 = vmax.f32 %v1347, 0.0
  %v1356 = vmax.f32 %v1350, 0.0
  %v1357 = vrot.slane %v1353, 3
  %v1358 = vrot.slane %v1354, 3
  %v1359 = vrot.slane %v1355, 3
  %v1360 = vrot.slane %v1356, 3
  %v1361 = vlaneseq
  %v1362 = vshrl.u32 %v1361, 7
  %vm1363 = vcmp.lt.s32.totalorder %v1362, 5
  %v1364 = vsel %vm1363, %v1359, %v1360
  %v1365 = vsel %vm1363, %v1358, %v1359
  %v1366 = vsel %vm1363, %v1357, %v1358
  %v1367 = vsel %vm1363, %v1360, %v1357
  %v1368 = vld [vmem:[%s11] sm:$0xff]
  %v1369 = vld [vmem:[%s11 + $0x8] sm:$0xff]
  %v1370 = vld [vmem:[%s11 + $0x10] sm:$0xff]
  %v1371 = vld [vmem:[%s11 + $0x18] sm:$0xff]
  %1373 = vset.pattern.permute.xlu0 0
  %1374 = vperm.xlu0 %1373, %v1368
  %v1375 = vpop.permute.xlu0 %1374
  %1378 = vset.pattern.permute.xlu0 0
  %1379 = vperm.xlu0 %1378, %v1369
  %v1380 = vpop.permute.xlu0 %1379
  %1383 = vset.pattern.permute.xlu0 0
  %1384 = vperm.xlu0 %1383, %v1370
  %v1385 = vpop.permute.xlu0 %1384
  %1388 = vset.pattern.permute.xlu0 0
  %1389 = vperm.xlu0 %1388, %v1371
  %v1390 = vpop.permute.xlu0 %1389
  %v1392 = vmul.f32 %v1367, %v1375
  %v1393 = vmul.f32 %v1366, %v1380
  %v1394 = vmul.f32 %v1365, %v1385
  %v1395 = vmul.f32 %v1364, %v1390
  %v1396 = vrot.slane %v1353, 4
  %v1397 = vrot.slane %v1354, 4
  %v1398 = vrot.slane %v1355, 4
  %v1399 = vrot.slane %v1356, 4
  %vm1400 = vcmp.lt.s32.totalorder %v1362, 4
  %v1401 = vsel %vm1400, %v1398, %v1399
  %v1402 = vsel %vm1400, %v1397, %v1398
  %v1403 = vsel %vm1400, %v1396, %v1397
  %v1404 = vsel %vm1400, %v1399, %v1396
  %s1405 = scalar_lea.vmem %s11, 32
  %v1406 = vld [vmem:[%s1405] sm:$0xff]
  %v1407 = vld [vmem:[%s1405 + $0x8] sm:$0xff]
  %v1408 = vld [vmem:[%s1405 + $0x10] sm:$0xff]
  %v1409 = vld [vmem:[%s1405 + $0x18] sm:$0xff]
  %1411 = vset.pattern.permute.xlu0 0
  %1412 = vperm.xlu0 %1411, %v1406
  %v1413 = vpop.permute.xlu0 %1412
  %1416 = vset.pattern.permute.xlu0 0
  %1417 = vperm.xlu0 %1416, %v1407
  %v1418 = vpop.permute.xlu0 %1417
  %1421 = vset.pattern.permute.xlu0 0
  %1422 = vperm.xlu0 %1421, %v1408
  %v1423 = vpop.permute.xlu0 %1422
  %1426 = vset.pattern.permute.xlu0 0
  %1427 = vperm.xlu0 %1426, %v1409
  %v1428 = vpop.permute.xlu0 %1427
  %v1430 = vmul.f32 %v1404, %v1413
  %v1431 = vmul.f32 %v1403, %v1418
  %v1432 = vmul.f32 %v1402, %v1423
  %v1433 = vmul.f32 %v1401, %v1428
  %1434 = vrot.lane.b32.xlu0 %v1430, 8
  %v1435 = vpop.permute.xlu0 %1434
  %1436 = vrot.lane.b32.xlu0 %v1431, 8
  %v1437 = vpop.permute.xlu0 %1436
  %1438 = vrot.lane.b32.xlu0 %v1432, 8
  %v1439 = vpop.permute.xlu0 %1438
  %1440 = vrot.lane.b32.xlu0 %v1433, 8
  %v1441 = vpop.permute.xlu0 %1440
  %v1442 = vadd.f32 %v1392, %v1435
  %v1443 = vadd.f32 %v1393, %v1437
  %v1444 = vadd.f32 %v1394, %v1439
  %v1445 = vadd.f32 %v1395, %v1441
  %v1446 = vrot.slane %v1353, 5
  %v1447 = vrot.slane %v1354, 5
  %v1448 = vrot.slane %v1355, 5
  %v1449 = vrot.slane %v1356, 5
  %vm1450 = vcmp.lt.s32.totalorder %v1362, 3
  %v1451 = vsel %vm1450, %v1448, %v1449
  %v1452 = vsel %vm1450, %v1447, %v1448
  %v1453 = vsel %vm1450, %v1446, %v1447
  %v1454 = vsel %vm1450, %v1449, %v1446
  %s1455 = scalar_lea.vmem %s11, 64
  %v1456 = vld [vmem:[%s1455] sm:$0xff]
  %v1457 = vld [vmem:[%s1455 + $0x8] sm:$0xff]
  %v1458 = vld [vmem:[%s1455 + $0x10] sm:$0xff]
  %v1459 = vld [vmem:[%s1455 + $0x18] sm:$0xff]
  %1461 = vset.pattern.permute.xlu0 0
  %1462 = vperm.xlu0 %1461, %v1456
  %v1463 = vpop.permute.xlu0 %1462
  %1466 = vset.pattern.permute.xlu0 0
  %1467 = vperm.xlu0 %1466, %v1457
  %v1468 = vpop.permute.xlu0 %1467
  %1471 = vset.pattern.permute.xlu0 0
  %1472 = vperm.xlu0 %1471, %v1458
  %v1473 = vpop.permute.xlu0 %1472
  %1476 = vset.pattern.permute.xlu0 0
  %1477 = vperm.xlu0 %1476, %v1459
  %v1478 = vpop.permute.xlu0 %1477
  %v1480 = vmul.f32 %v1454, %v1463
  %v1481 = vmul.f32 %v1453, %v1468
  %v1482 = vmul.f32 %v1452, %v1473
  %v1483 = vmul.f32 %v1451, %v1478
  %1484 = vrot.lane.b32.xlu0 %v1480, 16
  %v1485 = vpop.permute.xlu0 %1484
  %1486 = vrot.lane.b32.xlu0 %v1481, 16
  %v1487 = vpop.permute.xlu0 %1486
  %1488 = vrot.lane.b32.xlu0 %v1482, 16
  %v1489 = vpop.permute.xlu0 %1488
  %1490 = vrot.lane.b32.xlu0 %v1483, 16
  %v1491 = vpop.permute.xlu0 %1490
  %v1492 = vadd.f32 %v1442, %v1485
  %v1493 = vadd.f32 %v1443, %v1487
  %v1494 = vadd.f32 %v1444, %v1489
  %v1495 = vadd.f32 %v1445, %v1491
  %v1496 = vrot.slane %v1353, 7
  %v1497 = vrot.slane %v1354, 7
  %v1498 = vrot.slane %v1355, 7
  %v1499 = vrot.slane %v1356, 7
  %vm1500 = vcmp.lt.s32.totalorder %v1362, 1
  %v1501 = vsel %vm1500, %v1498, %v1499
  %v1502 = vsel %vm1500, %v1497, %v1498
  %v1503 = vsel %vm1500, %v1496, %v1497
  %v1504 = vsel %vm1500, %v1499, %v1496
  %s1505 = scalar_lea.vmem %s11, 96
  %v1506 = vld [vmem:[%s1505] sm:$0xff]
  %v1507 = vld [vmem:[%s1505 + $0x8] sm:$0xff]
  %v1508 = vld [vmem:[%s1505 + $0x10] sm:$0xff]
  %v1509 = vld [vmem:[%s1505 + $0x18] sm:$0xff]
  %1511 = vset.pattern.permute.xlu0 0
  %1512 = vperm.xlu0 %1511, %v1506
  %v1513 = vpop.permute.xlu0 %1512
  %1516 = vset.pattern.permute.xlu0 0
  %1517 = vperm.xlu0 %1516, %v1507
  %v1518 = vpop.permute.xlu0 %1517
  %1521 = vset.pattern.permute.xlu0 0
  %1522 = vperm.xlu0 %1521, %v1508
  %v1523 = vpop.permute.xlu0 %1522
  %1526 = vset.pattern.permute.xlu0 0
  %1527 = vperm.xlu0 %1526, %v1509
  %v1528 = vpop.permute.xlu0 %1527
  %v1530 = vmul.f32 %v1504, %v1513
  %v1531 = vmul.f32 %v1503, %v1518
  %v1532 = vmul.f32 %v1502, %v1523
  %v1533 = vmul.f32 %v1501, %v1528
  %1534 = vrot.lane.b32.xlu0 %v1530, 24
  %v1535 = vpop.permute.xlu0 %1534
  %1536 = vrot.lane.b32.xlu0 %v1531, 24
  %v1537 = vpop.permute.xlu0 %1536
  %1538 = vrot.lane.b32.xlu0 %v1532, 24
  %v1539 = vpop.permute.xlu0 %1538
  %1540 = vrot.lane.b32.xlu0 %v1533, 24
  %v1541 = vpop.permute.xlu0 %1540
  %v1542 = vadd.f32 %v1492, %v1535
  %v1543 = vadd.f32 %v1493, %v1537
  %v1544 = vadd.f32 %v1494, %v1539
  %v1545 = vadd.f32 %v1495, %v1541
  %s1546 = scalar_lea.vmem %s11, 128
  %v1547 = vld [vmem:[%s1546] sm:$0xff]
  %v1548 = vld [vmem:[%s1546 + $0x8] sm:$0xff]
  %v1549 = vld [vmem:[%s1546 + $0x10] sm:$0xff]
  %v1550 = vld [vmem:[%s1546 + $0x18] sm:$0xff]
  %1552 = vset.pattern.permute.xlu0 0
  %1553 = vperm.xlu0 %1552, %v1547
  %v1554 = vpop.permute.xlu0 %1553
  %1557 = vset.pattern.permute.xlu0 0
  %1558 = vperm.xlu0 %1557, %v1548
  %v1559 = vpop.permute.xlu0 %1558
  %1562 = vset.pattern.permute.xlu0 0
  %1563 = vperm.xlu0 %1562, %v1549
  %v1564 = vpop.permute.xlu0 %1563
  %1567 = vset.pattern.permute.xlu0 0
  %1568 = vperm.xlu0 %1567, %v1550
  %v1569 = vpop.permute.xlu0 %1568
  %v1571 = vmul.f32 %v1353, %v1554
  %v1572 = vmul.f32 %v1354, %v1559
  %v1573 = vmul.f32 %v1355, %v1564
  %v1574 = vmul.f32 %v1356, %v1569
  %1575 = vrot.lane.b32.xlu0 %v1571, 32
  %v1576 = vpop.permute.xlu0 %1575
  %1577 = vrot.lane.b32.xlu0 %v1572, 32
  %v1578 = vpop.permute.xlu0 %1577
  %1579 = vrot.lane.b32.xlu0 %v1573, 32
  %v1580 = vpop.permute.xlu0 %1579
  %1581 = vrot.lane.b32.xlu0 %v1574, 32
  %v1582 = vpop.permute.xlu0 %1581
  %v1583 = vadd.f32 %v1542, %v1576
  %v1584 = vadd.f32 %v1543, %v1578
  %v1585 = vadd.f32 %v1544, %v1580
  %v1586 = vadd.f32 %v1545, %v1582
  %v1587 = vrot.slane %v1353, 1
  %v1588 = vrot.slane %v1354, 1
  %v1589 = vrot.slane %v1355, 1
  %v1590 = vrot.slane %v1356, 1
  %vm1591 = vcmp.lt.s32.totalorder %v1362, 7
  %v1592 = vsel %vm1591, %v1589, %v1590
  %v1593 = vsel %vm1591, %v1588, %v1589
  %v1594 = vsel %vm1591, %v1587, %v1588
  %v1595 = vsel %vm1591, %v1590, %v1587
  %s1596 = scalar_lea.vmem %s11, 160
  %v1597 = vld [vmem:[%s1596] sm:$0xff]
  %v1598 = vld [vmem:[%s1596 + $0x8] sm:$0xff]
  %v1599 = vld [vmem:[%s1596 + $0x10] sm:$0xff]
  %v1600 = vld [vmem:[%s1596 + $0x18] sm:$0xff]
  %1602 = vset.pattern.permute.xlu0 0
  %1603 = vperm.xlu0 %1602, %v1597
  %v1604 = vpop.permute.xlu0 %1603
  %1607 = vset.pattern.permute.xlu0 0
  %1608 = vperm.xlu0 %1607, %v1598
  %v1609 = vpop.permute.xlu0 %1608
  %1612 = vset.pattern.permute.xlu0 0
  %1613 = vperm.xlu0 %1612, %v1599
  %v1614 = vpop.permute.xlu0 %1613
  %1617 = vset.pattern.permute.xlu0 0
  %1618 = vperm.xlu0 %1617, %v1600
  %v1619 = vpop.permute.xlu0 %1618
  %v1621 = vmul.f32 %v1594, %v1604
  %v1622 = vmul.f32 %v1593, %v1609
  %v1623 = vmul.f32 %v1592, %v1614
  %v1624 = vmul.f32 %v1595, %v1619
  %1625 = vrot.lane.b32.xlu0 %v1621, 40
  %v1626 = vpop.permute.xlu0 %1625
  %1627 = vrot.lane.b32.xlu0 %v1622, 40
  %v1628 = vpop.permute.xlu0 %1627
  %1629 = vrot.lane.b32.xlu0 %v1623, 40
  %v1630 = vpop.permute.xlu0 %1629
  %1631 = vrot.lane.b32.xlu0 %v1624, 40
  %v1632 = vpop.permute.xlu0 %1631
  %v1633 = vadd.f32 %v1583, %v1626
  %v1634 = vadd.f32 %v1584, %v1628
  %v1635 = vadd.f32 %v1585, %v1630
  %v1636 = vadd.f32 %v1586, %v1632
  %s1637 = scalar_lea.vmem %s11, 192
  %v1638 = vld [vmem:[%s1637] sm:$0xff]
  %v1639 = vld [vmem:[%s1637 + $0x8] sm:$0xff]
  %v1640 = vld [vmem:[%s1637 + $0x10] sm:$0xff]
  %v1641 = vld [vmem:[%s1637 + $0x18] sm:$0xff]
  %1643 = vset.pattern.permute.xlu0 0
  %1644 = vperm.xlu0 %1643, %v1638
  %v1645 = vpop.permute.xlu0 %1644
  %1648 = vset.pattern.permute.xlu0 0
  %1649 = vperm.xlu0 %1648, %v1639
  %v1650 = vpop.permute.xlu0 %1649
  %1653 = vset.pattern.permute.xlu0 0
  %1654 = vperm.xlu0 %1653, %v1640
  %v1655 = vpop.permute.xlu0 %1654
  %1658 = vset.pattern.permute.xlu0 0
  %1659 = vperm.xlu0 %1658, %v1641
  %v1660 = vpop.permute.xlu0 %1659
  %v1662 = vmul.f32 %v1366, %v1645
  %v1663 = vmul.f32 %v1365, %v1650
  %v1664 = vmul.f32 %v1364, %v1655
  %v1665 = vmul.f32 %v1367, %v1660
  %1666 = vrot.lane.b32.xlu0 %v1662, 48
  %v1667 = vpop.permute.xlu0 %1666
  %1668 = vrot.lane.b32.xlu0 %v1663, 48
  %v1669 = vpop.permute.xlu0 %1668
  %1670 = vrot.lane.b32.xlu0 %v1664, 48
  %v1671 = vpop.permute.xlu0 %1670
  %1672 = vrot.lane.b32.xlu0 %v1665, 48
  %v1673 = vpop.permute.xlu0 %1672
  %v1674 = vadd.f32 %v1633, %v1667
  %v1675 = vadd.f32 %v1634, %v1669
  %v1676 = vadd.f32 %v1635, %v1671
  %v1677 = vadd.f32 %v1636, %v1673
  %s1678 = scalar_lea.vmem %s11, 224
  %v1679 = vld [vmem:[%s1678] sm:$0xff]
  %v1680 = vld [vmem:[%s1678 + $0x8] sm:$0xff]
  %v1681 = vld [vmem:[%s1678 + $0x10] sm:$0xff]
  %v1682 = vld [vmem:[%s1678 + $0x18] sm:$0xff]
  %1684 = vset.pattern.permute.xlu0 0
  %1685 = vperm.xlu0 %1684, %v1679
  %v1686 = vpop.permute.xlu0 %1685
  %1689 = vset.pattern.permute.xlu0 0
  %1690 = vperm.xlu0 %1689, %v1680
  %v1691 = vpop.permute.xlu0 %1690
  %1694 = vset.pattern.permute.xlu0 0
  %1695 = vperm.xlu0 %1694, %v1681
  %v1696 = vpop.permute.xlu0 %1695
  %1699 = vset.pattern.permute.xlu0 0
  %1700 = vperm.xlu0 %1699, %v1682
  %v1701 = vpop.permute.xlu0 %1700
  %v1703 = vmul.f32 %v1403, %v1686
  %v1704 = vmul.f32 %v1402, %v1691
  %v1705 = vmul.f32 %v1401, %v1696
  %v1706 = vmul.f32 %v1404, %v1701
  %1707 = vrot.lane.b32.xlu0 %v1703, 56
  %v1708 = vpop.permute.xlu0 %1707
  %1709 = vrot.lane.b32.xlu0 %v1704, 56
  %v1710 = vpop.permute.xlu0 %1709
  %1711 = vrot.lane.b32.xlu0 %v1705, 56
  %v1712 = vpop.permute.xlu0 %1711
  %1713 = vrot.lane.b32.xlu0 %v1706, 56
  %v1714 = vpop.permute.xlu0 %1713
  %v1715 = vadd.f32 %v1674, %v1708
  %v1716 = vadd.f32 %v1675, %v1710
  %v1717 = vadd.f32 %v1676, %v1712
  %v1718 = vadd.f32 %v1677, %v1714
  %s1719 = scalar_lea.vmem %s11, 256
  %v1720 = vld [vmem:[%s1719] sm:$0xff]
  %v1721 = vld [vmem:[%s1719 + $0x8] sm:$0xff]
  %v1722 = vld [vmem:[%s1719 + $0x10] sm:$0xff]
  %v1723 = vld [vmem:[%s1719 + $0x18] sm:$0xff]
  %1725 = vset.pattern.permute.xlu0 0
  %1726 = vperm.xlu0 %1725, %v1720
  %v1727 = vpop.permute.xlu0 %1726
  %1730 = vset.pattern.permute.xlu0 0
  %1731 = vperm.xlu0 %1730, %v1721
  %v1732 = vpop.permute.xlu0 %1731
  %1735 = vset.pattern.permute.xlu0 0
  %1736 = vperm.xlu0 %1735, %v1722
  %v1737 = vpop.permute.xlu0 %1736
  %1740 = vset.pattern.permute.xlu0 0
  %1741 = vperm.xlu0 %1740, %v1723
  %v1742 = vpop.permute.xlu0 %1741
  %v1744 = vmul.f32 %v1453, %v1727
  %v1745 = vmul.f32 %v1452, %v1732
  %v1746 = vmul.f32 %v1451, %v1737
  %v1747 = vmul.f32 %v1454, %v1742
  %1748 = vrot.lane.b32.xlu0 %v1744, 64
  %v1749 = vpop.permute.xlu0 %1748
  %1750 = vrot.lane.b32.xlu0 %v1745, 64
  %v1751 = vpop.permute.xlu0 %1750
  %1752 = vrot.lane.b32.xlu0 %v1746, 64
  %v1753 = vpop.permute.xlu0 %1752
  %1754 = vrot.lane.b32.xlu0 %v1747, 64
  %v1755 = vpop.permute.xlu0 %1754
  %v1756 = vadd.f32 %v1715, %v1749
  %v1757 = vadd.f32 %v1716, %v1751
  %v1758 = vadd.f32 %v1717, %v1753
  %v1759 = vadd.f32 %v1718, %v1755
  %v1760 = vpack.c.bf16 %v1757, %v1756
  %v1761 = vpack.c.bf16 %v1759, %v1758
  %s1762 = scalar_lea.vmem %s3, 64
  %v1763 = vld [vmem:[%s1762] sm:$0xf]
  %v1764 = vld [vmem:[%s1762 + $0x4] sm:$0xf]
  %v1765 = vld [vmem:[%s1762 + $0x8] sm:$0xf]
  %v1766 = vld [vmem:[%s1762 + $0xc] sm:$0xf]
  %v1767 = vld [vmem:[%s1762 + $0x10] sm:$0xf]
  %v1768 = vld [vmem:[%s1762 + $0x14] sm:$0xf]
  %v1769 = vld [vmem:[%s1762 + $0x18] sm:$0xf]
  %v1770 = vld [vmem:[%s1762 + $0x1c] sm:$0xf]
  %v1771 = vld [vmem:[%s1762 + $0x20] sm:$0xf]
  %v1772 = vld [vmem:[%s1762 + $0x24] sm:$0xf]
  %v1773 = vld [vmem:[%s1762 + $0x28] sm:$0xf]
  %v1774 = vld [vmem:[%s1762 + $0x2c] sm:$0xf]
  %v1775 = vld [vmem:[%s1762 + $0x30] sm:$0xf]
  %v1776 = vld [vmem:[%s1762 + $0x34] sm:$0xf]
  %v1777 = vld [vmem:[%s1762 + $0x38] sm:$0xf]
  %v1778 = vld [vmem:[%s1762 + $0x3c] sm:$0xf]
  %s1779 = scalar_lea.vmem %s4, 1
  %v1780 = vld [vmem:[%s1779] sm:$0x1]
  %v1782 = vlaneseq
  %v1783 = vshrl.u32 %v1782, 7
  %v1784 = vsub.s32 0, %v1783
  %v1785 = vrot.slane %v1780, %v1784
  %v1803 = vunpack.c.l.b16 %v1763
  %v1804 = vunpack.c.l.b16 %v1764
  %v1805 = vunpack.c.l.b16 %v1765
  %v1806 = vunpack.c.l.b16 %v1766
  %v1807 = vunpack.c.l.b16 %v1767
  %v1808 = vunpack.c.l.b16 %v1768
  %v1809 = vunpack.c.l.b16 %v1769
  %v1810 = vunpack.c.l.b16 %v1770
  %v1811 = vunpack.c.l.b16 %v1771
  %v1812 = vunpack.c.l.b16 %v1772
  %v1813 = vunpack.c.l.b16 %v1773
  %v1814 = vunpack.c.l.b16 %v1774
  %v1815 = vunpack.c.l.b16 %v1775
  %v1816 = vunpack.c.l.b16 %v1776
  %v1817 = vunpack.c.l.b16 %v1777
  %v1818 = vunpack.c.l.b16 %v1778
  %v1819 = vpack.c.b16 %v1804, %v1803
  %v1820 = vpack.c.b16 %v1806, %v1805
  %v1821 = vpack.c.b16 %v1808, %v1807
  %v1822 = vpack.c.b16 %v1810, %v1809
  %v1823 = vpack.c.b16 %v1812, %v1811
  %v1824 = vpack.c.b16 %v1814, %v1813
  %v1825 = vpack.c.b16 %v1816, %v1815
  %v1826 = vpack.c.b16 %v1818, %v1817
  %1835 = vmatprep.subr.bf16.mxu0 0
  %1836 = vmatpush1.bf16.msra.mxu0 %v1819
  %1837 = vmatprep.subr.bf16.mxu0 0
  %1838 = vmatpush1.bf16.msra.mxu0 %v1820
  %1839 = vmatprep.subr.bf16.mxu0 0
  %1840 = vmatpush1.bf16.msra.mxu0 %v1821
  %1841 = vmatprep.subr.bf16.mxu0 0
  %1842 = vmatpush1.bf16.msra.mxu0 %v1822
  %1843 = vmatprep.subr.bf16.mxu0 0
  %1844 = vmatpush1.bf16.msra.mxu0 %v1823
  %1845 = vmatprep.subr.bf16.mxu0 0
  %1846 = vmatpush1.bf16.msra.mxu0 %v1824
  %1847 = vmatprep.subr.bf16.mxu0 0
  %1848 = vmatpush1.bf16.msra.mxu0 %v1825
  %1849 = vmatprep.subr.bf16.mxu0 0
  %1850 = vmatpush1.bf16.msra.mxu0 %v1826
  %1851 = vmatprep.subr.bf16.mxu0 0
  %1852 = vmatpush1.bf16.msra.mxu0 0
  %1853 = vmatprep.subr.bf16.mxu0 0
  %1854 = vmatpush1.bf16.msra.mxu0 0
  %1855 = vmatprep.subr.bf16.mxu0 0
  %1856 = vmatpush1.bf16.msra.mxu0 0
  %1857 = vmatprep.subr.bf16.mxu0 0
  %1858 = vmatpush1.bf16.msra.mxu0 0
  %1859 = vmatprep.subr.bf16.mxu0 0
  %1860 = vmatpush1.bf16.msra.mxu0 0
  %1861 = vmatprep.subr.bf16.mxu0 0
  %1862 = vmatpush1.bf16.msra.mxu0 0
  %1863 = vmatprep.subr.bf16.mxu0 0
  %1864 = vmatpush1.bf16.msra.mxu0 0
  %1865 = vmatprep.subr.bf16.mxu0 0
  %1866 = vmatpush1.bf16.msra.mxu0 0
  %1867 = vmatprep.mubr.bf16.mxu0 0
  %1868 = vmatmul.mubr.bf16.gmra.mrb[0].mxu0 %v1760
  %v1869 = vpop.f32.mrb[0].mxu0
  %v1870 = vadd.f32 %v1785, %v1869
  %v1871 = vpop.f32.mrb[0].mxu0
  %v1872 = vpop.f32.mrb[0].mxu0
  %v1873 = vadd.f32 %v1785, %v1872
  %v1874 = vpop.f32.mrb[0].mxu0
  %1875 = vmatprep.mubr.bf16.mxu0 0
  %1876 = vmatmul.mubr.bf16.gmra.mrb[0].mxu0 %v1761
  %v1877 = vpop.f32.mrb[0].mxu0
  %v1878 = vadd.f32 %v1785, %v1877
  %v1879 = vpop.f32.mrb[0].mxu0
  %v1880 = vpop.f32.mrb[0].mxu0
  %v1881 = vadd.f32 %v1785, %v1880
  %v1882 = vpop.f32.mrb[0].mxu0
  %1883 = vdwg.mxu0
  %v1884 = vmax.f32 %v1870, 0.0
  %v1885 = vmax.f32 %v1873, 0.0
  %v1886 = vmax.f32 %v1878, 0.0
  %v1887 = vmax.f32 %v1881, 0.0
  %v1888 = vpack.c.bf16 %v1885, %v1884
  %v1889 = vpack.c.bf16 %v1887, %v1886
  %s1890 = scalar_lea.vmem %s5, 4
  %v1891 = vld [vmem:[%s1890] sm:$0xf]
  %s1892 = scalar_lea.vmem %s6, 1
  %v1893 = vld [vmem:[%s1892] sm:$0x1]
  %v1895 = vlaneseq
  %v1896 = vshrl.u32 %v1895, 7
  %v1897 = vsub.s32 0, %v1896
  %v1898 = vrot.slane %v1893, %v1897
  %v1901 = vsel %vm1065, %v1888, 0
  %v1904 = vsel %vm1065, %v1889, 0
  %v1907 = vsel %vm1072, %v1891, 0
  %1909 = vmatprep.subr.bf16.mxu0 0
  %1910 = vmatpush1.bf16.msra.mxu0 %v1907
  %1911 = vmatprep.subr.bf16.mxu0 0
  %1912 = vmatpush1.bf16.msra.mxu0 0
  %1913 = vmatprep.subr.bf16.mxu0 0
  %1914 = vmatpush1.bf16.msra.mxu0 0
  %1915 = vmatprep.subr.bf16.mxu0 0
  %1916 = vmatpush1.bf16.msra.mxu0 0
  %1917 = vmatprep.subr.bf16.mxu0 0
  %1918 = vmatpush1.bf16.msra.mxu0 0
  %1919 = vmatprep.subr.bf16.mxu0 0
  %1920 = vmatpush1.bf16.msra.mxu0 0
  %1921 = vmatprep.subr.bf16.mxu0 0
  %1922 = vmatpush1.bf16.msra.mxu0 0
  %1923 = vmatprep.subr.bf16.mxu0 0
  %1924 = vmatpush1.bf16.msra.mxu0 0
  %1925 = vmatprep.subr.bf16.mxu0 0
  %1926 = vmatpush1.bf16.msra.mxu0 0
  %1927 = vmatprep.subr.bf16.mxu0 0
  %1928 = vmatpush1.bf16.msra.mxu0 0
  %1929 = vmatprep.subr.bf16.mxu0 0
  %1930 = vmatpush1.bf16.msra.mxu0 0
  %1931 = vmatprep.subr.bf16.mxu0 0
  %1932 = vmatpush1.bf16.msra.mxu0 0
  %1933 = vmatprep.subr.bf16.mxu0 0
  %1934 = vmatpush1.bf16.msra.mxu0 0
  %1935 = vmatprep.subr.bf16.mxu0 0
  %1936 = vmatpush1.bf16.msra.mxu0 0
  %1937 = vmatprep.subr.bf16.mxu0 0
  %1938 = vmatpush1.bf16.msra.mxu0 0
  %1939 = vmatprep.subr.bf16.mxu0 0
  %1940 = vmatpush1.bf16.msra.mxu0 0
  %1941 = vmatprep.mubr.bf16.mxu0 0
  %1942 = vmatmul.mubr.bf16.gmra.mrb[0].mxu0 %v1901
  %v1943 = vpop.f32.mrb[0].mxu0
  %v1944 = vadd.f32 %v1898, %v1943
  %v1945 = vpop.f32.mrb[0].mxu0
  %v1946 = vpop.f32.mrb[0].mxu0
  %v1947 = vadd.f32 %v1898, %v1946
  %v1948 = vpop.f32.mrb[0].mxu0
  %1949 = vmatprep.mubr.bf16.mxu0 0
  %1950 = vmatmul.mubr.bf16.gmra.mrb[0].mxu0 %v1904
  %v1951 = vpop.f32.mrb[0].mxu0
  %v1952 = vadd.f32 %v1898, %v1951
  %v1953 = vpop.f32.mrb[0].mxu0
  %v1954 = vpop.f32.mrb[0].mxu0
  %v1955 = vadd.f32 %v1898, %v1954
  %v1956 = vpop.f32.mrb[0].mxu0
  %1957 = vdwg.mxu0
  %v1958 = vadd.f32 %v1944, %v1267
  %v1959 = vadd.f32 %v1947, %v1268
  %v1960 = vadd.f32 %v1952, %v1269
  %v1961 = vadd.f32 %v1955, %v1270
  %v1962 = vmax.f32 %v1958, 0.0
  %v1963 = vmax.f32 %v1959, 0.0
  %v1964 = vmax.f32 %v1960, 0.0
  %v1965 = vmax.f32 %v1961, 0.0
  %v1966 = vpack.c.bf16 %v1963, %v1962
  %v1967 = vpack.c.bf16 %v1965, %v1964
  %s1968 = scalar_lea.vmem %s1, 32
  %v1969 = vld [vmem:[%s1968] sm:$0xf]
  %v1970 = vld [vmem:[%s1968 + $0x4] sm:$0xf]
  %v1971 = vld [vmem:[%s1968 + $0x8] sm:$0xf]
  %v1972 = vld [vmem:[%s1968 + $0xc] sm:$0xf]
  %s1973 = scalar_lea.vmem %s2, 2
  %v1974 = vld [vmem:[%s1973] sm:$0x1]
  %v1976 = vlaneseq
  %v1977 = vshrl.u32 %v1976, 7
  %v1978 = vsub.s32 0, %v1977
  %v1979 = vrot.slane %v1974, %v1978
  %v1985 = vunpack.c.l.b16 %v1969
  %v1986 = vunpack.c.l.b16 %v1970
  %v1987 = vunpack.c.l.b16 %v1971
  %v1988 = vunpack.c.l.b16 %v1972
  %v1989 = vpack.c.b16 %v1986, %v1985
  %v1990 = vpack.c.b16 %v1988, %v1987
  %v1994 = vsel %vm98, %v1966, 0
  %v1997 = vsel %vm98, %v1967, 0
  %1999 = vmatprep.subr.bf16.mxu0 0
  %2000 = vmatpush1.bf16.msra.mxu0 %v1989
  %2001 = vmatprep.subr.bf16.mxu0 0
  %2002 = vmatpush1.bf16.msra.mxu0 %v1990
  %2003 = vmatprep.subr.bf16.mxu0 0
  %2004 = vmatpush1.bf16.msra.mxu0 0
  %2005 = vmatprep.subr.bf16.mxu0 0
  %2006 = vmatpush1.bf16.msra.mxu0 0
  %2007 = vmatprep.subr.bf16.mxu0 0
  %2008 = vmatpush1.bf16.msra.mxu0 0
  %2009 = vmatprep.subr.bf16.mxu0 0
  %2010 = vmatpush1.bf16.msra.mxu0 0
  %2011 = vmatprep.subr.bf16.mxu0 0
  %2012 = vmatpush1.bf16.msra.mxu0 0
  %2013 = vmatprep.subr.bf16.mxu0 0
  %2014 = vmatpush1.bf16.msra.mxu0 0
  %2015 = vmatprep.subr.bf16.mxu0 0
  %2016 = vmatpush1.bf16.msra.mxu0 0
  %2017 = vmatprep.subr.bf16.mxu0 0
  %2018 = vmatpush1.bf16.msra.mxu0 0
  %2019 = vmatprep.subr.bf16.mxu0 0
  %2020 = vmatpush1.bf16.msra.mxu0 0
  %2021 = vmatprep.subr.bf16.mxu0 0
  %2022 = vmatpush1.bf16.msra.mxu0 0
  %2023 = vmatprep.subr.bf16.mxu0 0
  %2024 = vmatpush1.bf16.msra.mxu0 0
  %2025 = vmatprep.subr.bf16.mxu0 0
  %2026 = vmatpush1.bf16.msra.mxu0 0
  %2027 = vmatprep.subr.bf16.mxu0 0
  %2028 = vmatpush1.bf16.msra.mxu0 0
  %2029 = vmatprep.subr.bf16.mxu0 0
  %2030 = vmatpush1.bf16.msra.mxu0 0
  %2031 = vmatprep.mubr.bf16.mxu0 0
  %2032 = vmatmul.mubr.bf16.gmra.mrb[0].mxu0 %v1994
  %v2033 = vpop.f32.mrb[0].mxu0
  %v2034 = vadd.f32 %v1979, %v2033
  %v2035 = vpop.f32.mrb[0].mxu0
  %v2036 = vpop.f32.mrb[0].mxu0
  %v2037 = vadd.f32 %v1979, %v2036
  %v2038 = vpop.f32.mrb[0].mxu0
  %2039 = vmatprep.mubr.bf16.mxu0 0
  %2040 = vmatmul.mubr.bf16.gmra.mrb[0].mxu0 %v1997
  %v2041 = vpop.f32.mrb[0].mxu0
  %v2042 = vadd.f32 %v1979, %v2041
  %v2043 = vpop.f32.mrb[0].mxu0
  %v2044 = vpop.f32.mrb[0].mxu0
  %v2045 = vadd.f32 %v1979, %v2044
  %v2046 = vpop.f32.mrb[0].mxu0
  %2047 = vdwg.mxu0
  %v2048 = vmax.f32 %v2034, 0.0
  %v2049 = vmax.f32 %v2037, 0.0
  %v2050 = vmax.f32 %v2042, 0.0
  %v2051 = vmax.f32 %v2045, 0.0
  %v2052 = vrot.slane %v2048, 3
  %v2053 = vrot.slane %v2049, 3
  %v2054 = vrot.slane %v2050, 3
  %v2055 = vrot.slane %v2051, 3
  %v2056 = vsel %vm1363, %v2054, %v2055
  %v2057 = vsel %vm1363, %v2053, %v2054
  %v2058 = vsel %vm1363, %v2052, %v2053
  %v2059 = vsel %vm1363, %v2055, %v2052
  %v2060 = vmul.f32 %v2059, %v1375
  %v2061 = vmul.f32 %v2058, %v1380
  %v2062 = vmul.f32 %v2057, %v1385
  %v2063 = vmul.f32 %v2056, %v1390
  %v2064 = vrot.slane %v2048, 4
  %v2065 = vrot.slane %v2049, 4
  %v2066 = vrot.slane %v2050, 4
  %v2067 = vrot.slane %v2051, 4
  %v2068 = vsel %vm1400, %v2066, %v2067
  %v2069 = vsel %vm1400, %v2065, %v2066
  %v2070 = vsel %vm1400, %v2064, %v2065
  %v2071 = vsel %vm1400, %v2067, %v2064
  %v2072 = vmul.f32 %v2071, %v1413
  %v2073 = vmul.f32 %v2070, %v1418
  %v2074 = vmul.f32 %v2069, %v1423
  %v2075 = vmul.f32 %v2068, %v1428
  %2076 = vrot.lane.b32.xlu0 %v2072, 8
  %v2077 = vpop.permute.xlu0 %2076
  %2078 = vrot.lane.b32.xlu0 %v2073, 8
  %v2079 = vpop.permute.xlu0 %2078
  %2080 = vrot.lane.b32.xlu0 %v2074, 8
  %v2081 = vpop.permute.xlu0 %2080
  %2082 = vrot.lane.b32.xlu0 %v2075, 8
  %v2083 = vpop.permute.xlu0 %2082
  %v2084 = vadd.f32 %v2060, %v2077
  %v2085 = vadd.f32 %v2061, %v2079
  %v2086 = vadd.f32 %v2062, %v2081
  %v2087 = vadd.f32 %v2063, %v2083
  %v2088 = vrot.slane %v2048, 5
  %v2089 = vrot.slane %v2049, 5
  %v2090 = vrot.slane %v2050, 5
  %v2091 = vrot.slane %v2051, 5
  %v2092 = vsel %vm1450, %v2090, %v2091
  %v2093 = vsel %vm1450, %v2089, %v2090
  %v2094 = vsel %vm1450, %v2088, %v2089
  %v2095 = vsel %vm1450, %v2091, %v2088
  %v2096 = vmul.f32 %v2095, %v1463
  %v2097 = vmul.f32 %v2094, %v1468
  %v2098 = vmul.f32 %v2093, %v1473
  %v2099 = vmul.f32 %v2092, %v1478
  %2100 = vrot.lane.b32.xlu0 %v2096, 16
  %v2101 = vpop.permute.xlu0 %2100
  %2102 = vrot.lane.b32.xlu0 %v2097, 16
  %v2103 = vpop.permute.xlu0 %2102
  %2104 = vrot.lane.b32.xlu0 %v2098, 16
  %v2105 = vpop.permute.xlu0 %2104
  %2106 = vrot.lane.b32.xlu0 %v2099, 16
  %v2107 = vpop.permute.xlu0 %2106
  %v2108 = vadd.f32 %v2084, %v2101
  %v2109 = vadd.f32 %v2085, %v2103
  %v2110 = vadd.f32 %v2086, %v2105
  %v2111 = vadd.f32 %v2087, %v2107
  %v2112 = vrot.slane %v2048, 7
  %v2113 = vrot.slane %v2049, 7
  %v2114 = vrot.slane %v2050, 7
  %v2115 = vrot.slane %v2051, 7
  %v2116 = vsel %vm1500, %v2114, %v2115
  %v2117 = vsel %vm1500, %v2113, %v2114
  %v2118 = vsel %vm1500, %v2112, %v2113
  %v2119 = vsel %vm1500, %v2115, %v2112
  %v2120 = vmul.f32 %v2119, %v1513
  %v2121 = vmul.f32 %v2118, %v1518
  %v2122 = vmul.f32 %v2117, %v1523
  %v2123 = vmul.f32 %v2116, %v1528
  %2124 = vrot.lane.b32.xlu0 %v2120, 24
  %v2125 = vpop.permute.xlu0 %2124
  %2126 = vrot.lane.b32.xlu0 %v2121, 24
  %v2127 = vpop.permute.xlu0 %2126
  %2128 = vrot.lane.b32.xlu0 %v2122, 24
  %v2129 = vpop.permute.xlu0 %2128
  %2130 = vrot.lane.b32.xlu0 %v2123, 24
  %v2131 = vpop.permute.xlu0 %2130
  %v2132 = vadd.f32 %v2108, %v2125
  %v2133 = vadd.f32 %v2109, %v2127
  %v2134 = vadd.f32 %v2110, %v2129
  %v2135 = vadd.f32 %v2111, %v2131
  %v2136 = vmul.f32 %v2048, %v1554
  %v2137 = vmul.f32 %v2049, %v1559
  %v2138 = vmul.f32 %v2050, %v1564
  %v2139 = vmul.f32 %v2051, %v1569
  %2140 = vrot.lane.b32.xlu0 %v2136, 32
  %v2141 = vpop.permute.xlu0 %2140
  %2142 = vrot.lane.b32.xlu0 %v2137, 32
  %v2143 = vpop.permute.xlu0 %2142
  %2144 = vrot.lane.b32.xlu0 %v2138, 32
  %v2145 = vpop.permute.xlu0 %2144
  %2146 = vrot.lane.b32.xlu0 %v2139, 32
  %v2147 = vpop.permute.xlu0 %2146
  %v2148 = vadd.f32 %v2132, %v2141
  %v2149 = vadd.f32 %v2133, %v2143
  %v2150 = vadd.f32 %v2134, %v2145
  %v2151 = vadd.f32 %v2135, %v2147
  %v2152 = vrot.slane %v2048, 1
  %v2153 = vrot.slane %v2049, 1
  %v2154 = vrot.slane %v2050, 1
  %v2155 = vrot.slane %v2051, 1
  %v2156 = vsel %vm1591, %v2154, %v2155
  %v2157 = vsel %vm1591, %v2153, %v2154
  %v2158 = vsel %vm1591, %v2152, %v2153
  %v2159 = vsel %vm1591, %v2155, %v2152
  %v2160 = vmul.f32 %v2158, %v1604
  %v2161 = vmul.f32 %v2157, %v1609
  %v2162 = vmul.f32 %v2156, %v1614
  %v2163 = vmul.f32 %v2159, %v1619
  %2164 = vrot.lane.b32.xlu0 %v2160, 40
  %v2165 = vpop.permute.xlu0 %2164
  %2166 = vrot.lane.b32.xlu0 %v2161, 40
  %v2167 = vpop.permute.xlu0 %2166
  %2168 = vrot.lane.b32.xlu0 %v2162, 40
  %v2169 = vpop.permute.xlu0 %2168
  %2170 = vrot.lane.b32.xlu0 %v2163, 40
  %v2171 = vpop.permute.xlu0 %2170
  %v2172 = vadd.f32 %v2148, %v2165
  %v2173 = vadd.f32 %v2149, %v2167
  %v2174 = vadd.f32 %v2150, %v2169
  %v2175 = vadd.f32 %v2151, %v2171
  %v2176 = vmul.f32 %v2058, %v1645
  %v2177 = vmul.f32 %v2057, %v1650
  %v2178 = vmul.f32 %v2056, %v1655
  %v2179 = vmul.f32 %v2059, %v1660
  %2180 = vrot.lane.b32.xlu0 %v2176, 48
  %v2181 = vpop.permute.xlu0 %2180
  %2182 = vrot.lane.b32.xlu0 %v2177, 48
  %v2183 = vpop.permute.xlu0 %2182
  %2184 = vrot.lane.b32.xlu0 %v2178, 48
  %v2185 = vpop.permute.xlu0 %2184
  %2186 = vrot.lane.b32.xlu0 %v2179, 48
  %v2187 = vpop.permute.xlu0 %2186
  %v2188 = vadd.f32 %v2172, %v2181
  %v2189 = vadd.f32 %v2173, %v2183
  %v2190 = vadd.f32 %v2174, %v2185
  %v2191 = vadd.f32 %v2175, %v2187
  %v2192 = vmul.f32 %v2070, %v1686
  %v2193 = vmul.f32 %v2069, %v1691
  %v2194 = vmul.f32 %v2068, %v1696
  %v2195 = vmul.f32 %v2071, %v1701
  %2196 = vrot.lane.b32.xlu0 %v2192, 56
  %v2197 = vpop.permute.xlu0 %2196
  %2198 = vrot.lane.b32.xlu0 %v2193, 56
  %v2199 = vpop.permute.xlu0 %2198
  %2200 = vrot.lane.b32.xlu0 %v2194, 56
  %v2201 = vpop.permute.xlu0 %2200
  %2202 = vrot.lane.b32.xlu0 %v2195, 56
  %v2203 = vpop.permute.xlu0 %2202
  %v2204 = vadd.f32 %v2188, %v2197
  %v2205 = vadd.f32 %v2189, %v2199
  %v2206 = vadd.f32 %v2190, %v2201
  %v2207 = vadd.f32 %v2191, %v2203
  %v2208 = vmul.f32 %v2094, %v1727
  %v2209 = vmul.f32 %v2093, %v1732
  %v2210 = vmul.f32 %v2092, %v1737
  %v2211 = vmul.f32 %v2095, %v1742
  %2212 = vrot.lane.b32.xlu0 %v2208, 64
  %v2213 = vpop.permute.xlu0 %2212
  %2214 = vrot.lane.b32.xlu0 %v2209, 64
  %v2215 = vpop.permute.xlu0 %2214
  %2216 = vrot.lane.b32.xlu0 %v2210, 64
  %v2217 = vpop.permute.xlu0 %2216
  %2218 = vrot.lane.b32.xlu0 %v2211, 64
  %v2219 = vpop.permute.xlu0 %2218
  %v2220 = vadd.f32 %v2204, %v2213
  %v2221 = vadd.f32 %v2205, %v2215
  %v2222 = vadd.f32 %v2206, %v2217
  %v2223 = vadd.f32 %v2207, %v2219
  %v2224 = vpack.c.bf16 %v2221, %v2220
  %v2225 = vpack.c.bf16 %v2223, %v2222
  %s2226 = scalar_lea.vmem %s3, 128
  %v2227 = vld [vmem:[%s2226] sm:$0xf]
  %v2228 = vld [vmem:[%s2226 + $0x4] sm:$0xf]
  %v2229 = vld [vmem:[%s2226 + $0x8] sm:$0xf]
  %v2230 = vld [vmem:[%s2226 + $0xc] sm:$0xf]
  %v2231 = vld [vmem:[%s2226 + $0x10] sm:$0xf]
  %v2232 = vld [vmem:[%s2226 + $0x14] sm:$0xf]
  %v2233 = vld [vmem:[%s2226 + $0x18] sm:$0xf]
  %v2234 = vld [vmem:[%s2226 + $0x1c] sm:$0xf]
  %v2235 = vld [vmem:[%s2226 + $0x20] sm:$0xf]
  %v2236 = vld [vmem:[%s2226 + $0x24] sm:$0xf]
  %v2237 = vld [vmem:[%s2226 + $0x28] sm:$0xf]
  %v2238 = vld [vmem:[%s2226 + $0x2c] sm:$0xf]
  %v2239 = vld [vmem:[%s2226 + $0x30] sm:$0xf]
  %v2240 = vld [vmem:[%s2226 + $0x34] sm:$0xf]
  %v2241 = vld [vmem:[%s2226 + $0x38] sm:$0xf]
  %v2242 = vld [vmem:[%s2226 + $0x3c] sm:$0xf]
  %s2243 = scalar_lea.vmem %s4, 2
  %v2244 = vld [vmem:[%s2243] sm:$0x1]
  %v2246 = vlaneseq
  %v2247 = vshrl.u32 %v2246, 7
  %v2248 = vsub.s32 0, %v2247
  %v2249 = vrot.slane %v2244, %v2248
  %v2267 = vunpack.c.l.b16 %v2227
  %v2268 = vunpack.c.l.b16 %v2228
  %v2269 = vunpack.c.l.b16 %v2229
  %v2270 = vunpack.c.l.b16 %v2230
  %v2271 = vunpack.c.l.b16 %v2231
  %v2272 = vunpack.c.l.b16 %v2232
  %v2273 = vunpack.c.l.b16 %v2233
  %v2274 = vunpack.c.l.b16 %v2234
  %v2275 = vunpack.c.l.b16 %v2235
  %v2276 = vunpack.c.l.b16 %v2236
  %v2277 = vunpack.c.l.b16 %v2237
  %v2278 = vunpack.c.l.b16 %v2238
  %v2279 = vunpack.c.l.b16 %v2239
  %v2280 = vunpack.c.l.b16 %v2240
  %v2281 = vunpack.c.l.b16 %v2241
  %v2282 = vunpack.c.l.b16 %v2242
  %v2283 = vpack.c.b16 %v2268, %v2267
  %v2284 = vpack.c.b16 %v2270, %v2269
  %v2285 = vpack.c.b16 %v2272, %v2271
  %v2286 = vpack.c.b16 %v2274, %v2273
  %v2287 = vpack.c.b16 %v2276, %v2275
  %v2288 = vpack.c.b16 %v2278, %v2277
  %v2289 = vpack.c.b16 %v2280, %v2279
  %v2290 = vpack.c.b16 %v2282, %v2281
  %2299 = vmatprep.subr.bf16.mxu0 0
  %2300 = vmatpush1.bf16.msra.mxu0 %v2283
  %2301 = vmatprep.subr.bf16.mxu0 0
  %2302 = vmatpush1.bf16.msra.mxu0 %v2284
  %2303 = vmatprep.subr.bf16.mxu0 0
  %2304 = vmatpush1.bf16.msra.mxu0 %v2285
  %2305 = vmatprep.subr.bf16.mxu0 0
  %2306 = vmatpush1.bf16.msra.mxu0 %v2286
  %2307 = vmatprep.subr.bf16.mxu0 0
  %2308 = vmatpush1.bf16.msra.mxu0 %v2287
  %2309 = vmatprep.subr.bf16.mxu0 0
  %2310 = vmatpush1.bf16.msra.mxu0 %v2288
  %2311 = vmatprep.subr.bf16.mxu0 0
  %2312 = vmatpush1.bf16.msra.mxu0 %v2289
  %2313 = vmatprep.subr.bf16.mxu0 0
  %2314 = vmatpush1.bf16.msra.mxu0 %v2290
  %2315 = vmatprep.subr.bf16.mxu0 0
  %2316 = vmatpush1.bf16.msra.mxu0 0
  %2317 = vmatprep.subr.bf16.mxu0 0
  %2318 = vmatpush1.bf16.msra.mxu0 0
  %2319 = vmatprep.subr.bf16.mxu0 0
  %2320 = vmatpush1.bf16.msra.mxu0 0
  %2321 = vmatprep.subr.bf16.mxu0 0
  %2322 = vmatpush1.bf16.msra.mxu0 0
  %2323 = vmatprep.subr.bf16.mxu0 0
  %2324 = vmatpush1.bf16.msra.mxu0 0
  %2325 = vmatprep.subr.bf16.mxu0 0
  %2326 = vmatpush1.bf16.msra.mxu0 0
  %2327 = vmatprep.subr.bf16.mxu0 0
  %2328 = vmatpush1.bf16.msra.mxu0 0
  %2329 = vmatprep.subr.bf16.mxu0 0
  %2330 = vmatpush1.bf16.msra.mxu0 0
  %2331 = vmatprep.mubr.bf16.mxu0 0
  %2332 = vmatmul.mubr.bf16.gmra.mrb[0].mxu0 %v2224
  %v2333 = vpop.f32.mrb[0].mxu0
  %v2334 = vadd.f32 %v2249, %v2333
  %v2335 = vpop.f32.mrb[0].mxu0
  %v2336 = vpop.f32.mrb[0].mxu0
  %v2337 = vadd.f32 %v2249, %v2336
  %v2338 = vpop.f32.mrb[0].mxu0
  %2339 = vmatprep.mubr.bf16.mxu0 0
  %2340 = vmatmul.mubr.bf16.gmra.mrb[0].mxu0 %v2225
  %v2341 = vpop.f32.mrb[0].mxu0
  %v2342 = vadd.f32 %v2249, %v2341
  %v2343 = vpop.f32.mrb[0].mxu0
  %v2344 = vpop.f32.mrb[0].mxu0
  %v2345 = vadd.f32 %v2249, %v2344
  %v2346 = vpop.f32.mrb[0].mxu0
  %2347 = vdwg.mxu0
  %v2348 = vmax.f32 %v2334, 0.0
  %v2349 = vmax.f32 %v2337, 0.0
  %v2350 = vmax.f32 %v2342, 0.0
  %v2351 = vmax.f32 %v2345, 0.0
  %v2352 = vpack.c.bf16 %v2349, %v2348
  %v2353 = vpack.c.bf16 %v2351, %v2350
  %s2354 = scalar_lea.vmem %s5, 8
  %v2355 = vld [vmem:[%s2354] sm:$0xf]
  %s2356 = scalar_lea.vmem %s6, 2
  %v2357 = vld [vmem:[%s2356] sm:$0x1]
  %v2359 = vlaneseq
  %v2360 = vshrl.u32 %v2359, 7
  %v2361 = vsub.s32 0, %v2360
  %v2362 = vrot.slane %v2357, %v2361
  %v2365 = vsel %vm1065, %v2352, 0
  %v2368 = vsel %vm1065, %v2353, 0
  %v2371 = vsel %vm1072, %v2355, 0
  %2373 = vmatprep.subr.bf16.mxu0 0
  %2374 = vmatpush1.bf16.msra.mxu0 %v2371
  %2375 = vmatprep.subr.bf16.mxu0 0
  %2376 = vmatpush1.bf16.msra.mxu0 0
  %2377 = vmatprep.subr.bf16.mxu0 0
  %2378 = vmatpush1.bf16.msra.mxu0 0
  %2379 = vmatprep.subr.bf16.mxu0 0
  %2380 = vmatpush1.bf16.msra.mxu0 0
  %2381 = vmatprep.subr.bf16.mxu0 0
  %2382 = vmatpush1.bf16.msra.mxu0 0
  %2383 = vmatprep.subr.bf16.mxu0 0
  %2384 = vmatpush1.bf16.msra.mxu0 0
  %2385 = vmatprep.subr.bf16.mxu0 0
  %2386 = vmatpush1.bf16.msra.mxu0 0
  %2387 = vmatprep.subr.bf16.mxu0 0
  %2388 = vmatpush1.bf16.msra.mxu0 0
  %2389 = vmatprep.subr.bf16.mxu0 0
  %2390 = vmatpush1.bf16.msra.mxu0 0
  %2391 = vmatprep.subr.bf16.mxu0 0
  %2392 = vmatpush1.bf16.msra.mxu0 0
  %2393 = vmatprep.subr.bf16.mxu0 0
  %2394 = vmatpush1.bf16.msra.mxu0 0
  %2395 = vmatprep.subr.bf16.mxu0 0
  %2396 = vmatpush1.bf16.msra.mxu0 0
  %2397 = vmatprep.subr.bf16.mxu0 0
  %2398 = vmatpush1.bf16.msra.mxu0 0
  %2399 = vmatprep.subr.bf16.mxu0 0
  %2400 = vmatpush1.bf16.msra.mxu0 0
  %2401 = vmatprep.subr.bf16.mxu0 0
  %2402 = vmatpush1.bf16.msra.mxu0 0
  %2403 = vmatprep.subr.bf16.mxu0 0
  %2404 = vmatpush1.bf16.msra.mxu0 0
  %2405 = vmatprep.mubr.bf16.mxu0 0
  %2406 = vmatmul.mubr.bf16.gmra.mrb[0].mxu0 %v2365
  %v2407 = vpop.f32.mrb[0].mxu0
  %v2408 = vadd.f32 %v2362, %v2407
  %v2409 = vpop.f32.mrb[0].mxu0
  %v2410 = vpop.f32.mrb[0].mxu0
  %v2411 = vadd.f32 %v2362, %v2410
  %v2412 = vpop.f32.mrb[0].mxu0
  %2413 = vmatprep.mubr.bf16.mxu0 0
  %2414 = vmatmul.mubr.bf16.gmra.mrb[0].mxu0 %v2368
  %v2415 = vpop.f32.mrb[0].mxu0
  %v2416 = vadd.f32 %v2362, %v2415
  %v2417 = vpop.f32.mrb[0].mxu0
  %v2418 = vpop.f32.mrb[0].mxu0
  %v2419 = vadd.f32 %v2362, %v2418
  %v2420 = vpop.f32.mrb[0].mxu0
  %2421 = vdwg.mxu0
  %v2422 = vadd.f32 %v2408, %v1962
  %v2423 = vadd.f32 %v2411, %v1963
  %v2424 = vadd.f32 %v2416, %v1964
  %v2425 = vadd.f32 %v2419, %v1965
  %v2426 = vmax.f32 %v2422, 0.0
  %v2427 = vmax.f32 %v2423, 0.0
  %v2428 = vmax.f32 %v2424, 0.0
  %v2429 = vmax.f32 %v2425, 0.0
  %v2430 = vld [vmem:[%s12] sm:$0xf]
  %v2431 = vpack.c.bf16 %v2427, %v2426
  %v2432 = vpack.c.bf16 %v2429, %v2428
  %v2434 = vsel %vm98, %v2430, 0
  %2436 = vmatprep.subr.bf16.mxu0 0
  %2437 = vmatpush1.bf16.msra.mxu0 %v2431
  %2438 = vmatprep.subr.bf16.mxu0 0
  %2439 = vmatpush1.bf16.msra.mxu0 %v2432
  %2440 = vmatprep.subr.bf16.mxu0 0
  %2441 = vmatpush1.bf16.msra.mxu0 0
  %2442 = vmatprep.subr.bf16.mxu0 0
  %2443 = vmatpush1.bf16.msra.mxu0 0
  %2444 = vmatprep.subr.bf16.mxu0 0
  %2445 = vmatpush1.bf16.msra.mxu0 0
  %2446 = vmatprep.subr.bf16.mxu0 0
  %2447 = vmatpush1.bf16.msra.mxu0 0
  %2448 = vmatprep.subr.bf16.mxu0 0
  %2449 = vmatpush1.bf16.msra.mxu0 0
  %2450 = vmatprep.subr.bf16.mxu0 0
  %2451 = vmatpush1.bf16.msra.mxu0 0
  %2452 = vmatprep.subr.bf16.mxu0 0
  %2453 = vmatpush1.bf16.msra.mxu0 0
  %2454 = vmatprep.subr.bf16.mxu0 0
  %2455 = vmatpush1.bf16.msra.mxu0 0
  %2456 = vmatprep.subr.bf16.mxu0 0
  %2457 = vmatpush1.bf16.msra.mxu0 0
  %2458 = vmatprep.subr.bf16.mxu0 0
  %2459 = vmatpush1.bf16.msra.mxu0 0
  %2460 = vmatprep.subr.bf16.mxu0 0
  %2461 = vmatpush1.bf16.msra.mxu0 0
  %2462 = vmatprep.subr.bf16.mxu0 0
  %2463 = vmatpush1.bf16.msra.mxu0 0
  %2464 = vmatprep.subr.bf16.mxu0 0
  %2465 = vmatpush1.bf16.msra.mxu0 0
  %2466 = vmatprep.subr.bf16.mxu0 0
  %2467 = vmatpush1.bf16.msra.mxu0 0
  %2468 = vmatprep.mubr.bf16.mxu0 0
  %2469 = vmatmul.mubr.bf16.gmra.mrb[0].mxu0 %v2434
  %v2470 = vpop.f32.mrb[0].mxu0
  %v2471 = vadd.f32 0.0, %v2470
  %v2472 = vpop.f32.mrb[0].mxu0
  %v2473 = vpop.f32.mrb[0].mxu0
  %v2474 = vpop.f32.mrb[0].mxu0
  %2475 = vdwg.mxu0
  %v2476 = vpack.c.bf16 %v2471, %v2471
  %v2477 = vld [vmem:[%s13] sm:$0xf]
  %v2478 = vld [vmem:[%s13 + $0x4] sm:$0xf]
  %v2479 = vld [vmem:[%s13 + $0x8] sm:$0xf]
  %v2480 = vld [vmem:[%s13 + $0xc] sm:$0xf]
  %v2481 = vld [vmem:[%s14] sm:$0x1]
  %v2483 = vlaneseq
  %v2484 = vshrl.u32 %v2483, 7
  %v2485 = vsub.s32 0, %v2484
  %v2486 = vrot.slane %v2481, %v2485
  %v2492 = vunpack.c.l.b16 %v2477
  %v2493 = vunpack.c.l.b16 %v2478
  %v2494 = vunpack.c.l.b16 %v2479
  %v2495 = vunpack.c.l.b16 %v2480
  %v2496 = vpack.c.b16 %v2493, %v2492
  %v2497 = vpack.c.b16 %v2495, %v2494
  %v2501 = vsel %vm98, %v2476, 0
  %2503 = vmatprep.subr.bf16.mxu0 0
  %2504 = vmatpush1.bf16.msra.mxu0 %v2496
  %2505 = vmatprep.subr.bf16.mxu0 0
  %2506 = vmatpush1.bf16.msra.mxu0 %v2497
  %2507 = vmatprep.subr.bf16.mxu0 0
  %2508 = vmatpush1.bf16.msra.mxu0 0
  %2509 = vmatprep.subr.bf16.mxu0 0
  %2510 = vmatpush1.bf16.msra.mxu0 0
  %2511 = vmatprep.subr.bf16.mxu0 0
  %2512 = vmatpush1.bf16.msra.mxu0 0
  %2513 = vmatprep.subr.bf16.mxu0 0
  %2514 = vmatpush1.bf16.msra.mxu0 0
  %2515 = vmatprep.subr.bf16.mxu0 0
  %2516 = vmatpush1.bf16.msra.mxu0 0
  %2517 = vmatprep.subr.bf16.mxu0 0
  %2518 = vmatpush1.bf16.msra.mxu0 0
  %2519 = vmatprep.subr.bf16.mxu0 0
  %2520 = vmatpush1.bf16.msra.mxu0 0
  %2521 = vmatprep.subr.bf16.mxu0 0
  %2522 = vmatpush1.bf16.msra.mxu0 0
  %2523 = vmatprep.subr.bf16.mxu0 0
  %2524 = vmatpush1.bf16.msra.mxu0 0
  %2525 = vmatprep.subr.bf16.mxu0 0
  %2526 = vmatpush1.bf16.msra.mxu0 0
  %2527 = vmatprep.subr.bf16.mxu0 0
  %2528 = vmatpush1.bf16.msra.mxu0 0
  %2529 = vmatprep.subr.bf16.mxu0 0
  %2530 = vmatpush1.bf16.msra.mxu0 0
  %2531 = vmatprep.subr.bf16.mxu0 0
  %2532 = vmatpush1.bf16.msra.mxu0 0
  %2533 = vmatprep.subr.bf16.mxu0 0
  %2534 = vmatpush1.bf16.msra.mxu0 0
  %2535 = vmatprep.mubr.bf16.mxu0 0
  %2536 = vmatmul.mubr.bf16.gmra.mrb[0].mxu0 %v2501
  %v2537 = vpop.f32.mrb[0].mxu0
  %v2538 = vadd.f32 %v2486, %v2537
  %v2539 = vpop.f32.mrb[0].mxu0
  %v2540 = vpop.f32.mrb[0].mxu0
  %v2541 = vpop.f32.mrb[0].mxu0
  %2542 = vdwg.mxu0
  %2543 = vst [vmem:[%s15] sm:$0xff] %v2538
  // Predicated region
  $region62: #{conv_classify_forward.1} parent=0 // pred_check
    _
  $region63: #{conv_classify_forward.1} parent=0 // pred_check_branch
    %2545 = sbr.rel (0) target = $region65
  $region64: #{conv_classify_forward.1} parent=0 // pred_region
    _
  $region65: #{conv_classify_forward.1} parent=0 // pred_fallthru
    _
  // Predicated region
  $region66: #{conv_classify_forward.1} parent=0 // pred_check
    _
  $region67: #{conv_classify_forward.1} parent=0 // pred_check_branch
    %2547 = sbr.rel (0) target = $region69
  $region68: #{conv_classify_forward.1} parent=0 // pred_region
    _
  $region69: #{conv_classify_forward.1} parent=0 // pred_fallthru
    _

</llo_original>
